<compile_context>
chip_gen: v7x
topology: tpu7x:2x2x1
jax: 0.10.0
libtpu: 0.0.40
codegen_flags: <defaults>
</compile_context>

<pallas_src>
import jax
import jax.numpy as jnp
from jax.experimental import pallas as pl
from jax.experimental.pallas import tpu as pltpu

EMBED = 300
HIDDEN = 128
NUM_CLASSES = 2


def _round_up(x, m):
    return -(-x // m) * m


def _sigmoid(x):
    # 1 EUP transcendental per element (tanh) instead of exp + reciprocal.
    return 0.5 * jnp.tanh(0.5 * x) + 0.5


def _make_lstm_kernel(t_blk, seq_len):
    """Kernel closure over static time-block size and true sequence length."""

    def kernel(emb_ref, wih_ref, bias_ref, whh_ref, h_out_ref,
               gx_ref, h_ref, c_ref):
        # emb_ref  : (T_BLK, B_TILE, E_PAD) bf16  embedded tokens for this time block
        # wih_ref  : (E_PAD, 4*HIDDEN)      bf16  W_ih^T (gate order i, f, g, o), zero-padded rows
        # bias_ref : (1, 4*HIDDEN)          f32   b_ih + b_hh
        # whh_ref  : (HIDDEN, 4*HIDDEN)     bf16  W_hh^T
        # h_out_ref: (B_TILE, HIDDEN)       f32   final hidden state (written on last block)
        # gx_ref   : (T_BLK, B_TILE, 4*HIDDEN) f32 VMEM scratch: hoisted input projection
        # h_ref/c_ref: (B_TILE, HIDDEN)     f32   VMEM scratch carried across time blocks
        tb = pl.program_id(1)

        @pl.when(tb == 0)
        def _():
            h_ref[...] = jnp.zeros_like(h_ref)
            c_ref[...] = jnp.zeros_like(c_ref)

        wih = wih_ref[...]
        bias = bias_ref[...]
        whh = whh_ref[...]
        whh_if = whh[:, : 2 * HIDDEN]   # columns for (i, f) gates
        whh_go = whh[:, 2 * HIDDEN:]    # columns for (g, o) gates

        # ---- Input projection for the whole time block, OFF the serial chain. ----
        # bf16 x bf16 -> f32 accumulate on the MXU (which otherwise idles during the
        # recurrence); result parked in VMEM scratch.
        def proj(i, carry):
            gx_ref[i] = (jnp.dot(emb_ref[i], wih,
                                 preferred_element_type=jnp.float32) + bias)
            return carry

        jax.lax.fori_loop(0, t_blk, proj, 0, unroll=min(t_blk, 8))

        # Number of valid (non-padded) timesteps inside this time block.
        valid = jnp.minimum(t_blk, seq_len - tb * t_blk)

        # ---- Serial recurrence: only h_prev @ W_hh^T + gate nonlinearities. ----
        def step(i, carry):
            h_prev, c_prev = carry
            h16 = h_prev.astype(jnp.bfloat16)
            # Two N=256 halves keep the live f32 pre-activation at 32 vregs (not 64).
            g_if = gx_ref[i, :, : 2 * HIDDEN] + jnp.dot(
                h16, whh_if, preferred_element_type=jnp.float32)
            i_g = _sigmoid(g_if[:, :HIDDEN])
            f_g = _sigmoid(g_if[:, HIDDEN:])
            g_go = gx_ref[i, :, 2 * HIDDEN:] + jnp.dot(
                h16, whh_go, preferred_element_type=jnp.float32)
            g_g = jnp.tanh(g_go[:, :HIDDEN])
            o_g = _sigmoid(g_go[:, HIDDEN:])
            c_new = f_g * c_prev + i_g * g_g
            h_new = o_g * jnp.tanh(c_new)
            keep = i < valid  # mask out time padding
            return (jnp.where(keep, h_new, h_prev),
                    jnp.where(keep, c_new, c_prev))

        h_fin, c_fin = jax.lax.fori_loop(
            0, t_blk, step, (h_ref[...], c_ref[...]), unroll=min(t_blk, 8))

        h_ref[...] = h_fin
        c_ref[...] = c_fin

        @pl.when(tb == pl.num_programs(1) - 1)
        def _():
            h_out_ref[...] = h_fin

    return kernel


def lstm_forward(sentence, params, *, t_blk=32):
    """sentence: (seq_len, batch) int32. Returns (batch, 2) float32.

    t_blk guidance: 32 is safe everywhere; v6e (128 MiB VMEM) can use 64 for long
    sequences; do not scale above 32-48 on v7x (64 MiB VMEM) or v5e.
    """
    embedding = params["embedding"]          # (vocab, EMBED) f32
    w_ih_t = params["w_ih_t"]                # (EMBED, 4*HIDDEN) f32
    w_hh_t = params["w_hh_t"]                # (HIDDEN, 4*HIDDEN) f32
    bias = params["bias"]                    # (1, 4*HIDDEN) f32, = b_ih + b_hh
    w_dec_t = params["w_dec_t"]              # (HIDDEN, NUM_CLASSES)
    b_dec = params["b_dec"]                  # (1, NUM_CLASSES)

    seq_len, batch = sentence.shape

    # Batch padding on token ids (nearly free), 16-row granularity so bf16 blocks are
    # sublane-tile aligned.  Aim for >=2 batch tiles so the "parallel" axis shards across
    # both TensorCores on v7x.
    b_pad = _round_up(max(batch, 16), 16)
    if b_pad >= 32:
        b_tile = min(128, _round_up(b_pad // 2, 16))
    else:
        b_tile = b_pad
    b_pad = _round_up(b_pad, b_tile)

    # Block multiple timesteps per grid step; pad sequence (with token 0) to a multiple.
    t_blk = max(1, min(t_blk, seq_len))
    s_pad = _round_up(seq_len, t_blk)

    ids = jnp.pad(sentence, ((0, s_pad - seq_len), (0, b_pad - batch)))

    # Pad the embedding dim 300 -> 384 (lane multiple) once, on the table and W_ih rows
    # (padded rows are zero, so the projection is exact); cast weights/embeddings to bf16.
    e_pad = _round_up(EMBED, 128)
    emb_table = jnp.pad(embedding, ((0, 0), (0, e_pad - EMBED))).astype(jnp.bfloat16)
    wih = jnp.pad(w_ih_t, ((0, e_pad - EMBED), (0, 0))).astype(jnp.bfloat16)
    whh = w_hh_t.astype(jnp.bfloat16)

    # Embedding lookup (gather) stays in plain JAX.
    embeds = jnp.take(emb_table, ids, axis=0)        # (s_pad, b_pad, e_pad) bf16

    nb = b_pad // b_tile
    nt = s_pad // t_blk

    grid_spec = pltpu.PrefetchScalarGridSpec(
        num_scalar_prefetch=0,
        grid=(nb, nt),
        in_specs=[
            pl.BlockSpec((t_blk, b_tile, e_pad), lambda b, t: (t, b, 0)),
            pl.BlockSpec((e_pad, 4 * HIDDEN), lambda b, t: (0, 0)),       # grid-invariant
            pl.BlockSpec((1, 4 * HIDDEN), lambda b, t: (0, 0)),           # grid-invariant
            pl.BlockSpec((HIDDEN, 4 * HIDDEN), lambda b, t: (0, 0)),      # grid-invariant
        ],
        out_specs=pl.BlockSpec((b_tile, HIDDEN), lambda b, t: (b, 0)),
        scratch_shapes=[
            pltpu.VMEM((t_blk, b_tile, 4 * HIDDEN), jnp.float32),  # gx (hoisted projection)
            pltpu.VMEM((b_tile, HIDDEN), jnp.float32),             # h carry
            pltpu.VMEM((b_tile, HIDDEN), jnp.float32),             # c carry
        ],
    )

    h_last = pl.pallas_call(
        _make_lstm_kernel(t_blk, seq_len),
        out_shape=jax.ShapeDtypeStruct((b_pad, HIDDEN), jnp.float32),
        grid_spec=grid_spec,
        compiler_params=pltpu.CompilerParams(
            dimension_semantics=("parallel", "arbitrary"),
            vmem_limit_bytes=48 << 20),
    )(embeds, wih, bias, whh)

    # Tiny (128, 2) decoder stays in XLA so the kernel output is lane-dense (128 lanes).
    return h_last[:batch] @ w_dec_t + b_dec


def reference_forward(sentence, params):
    """Pure-JAX reference mirroring PyTorch nn.LSTM semantics (gate order i,f,g,o) and the
    kernel's bf16-operand / f32-accumulate matmul numerics."""
    emb_bf = params["embedding"].astype(jnp.bfloat16)
    wih_bf = params["w_ih_t"].astype(jnp.bfloat16)
    whh_bf = params["w_hh_t"].astype(jnp.bfloat16)
    bias = params["bias"]

    embeds = jnp.take(emb_bf, sentence, axis=0)       # (seq, batch, EMBED) bf16
    batch = sentence.shape[1]
    h0 = jnp.zeros((batch, HIDDEN), jnp.float32)
    c0 = jnp.zeros((batch, HIDDEN), jnp.float32)

    def step(carry, x_t):
        h, c = carry
        gates = (jnp.dot(x_t, wih_bf, preferred_element_type=jnp.float32) + bias
                 + jnp.dot(h.astype(jnp.bfloat16), whh_bf,
                           preferred_element_type=jnp.float32))
        i = _sigmoid(gates[:, 0 * HIDDEN:1 * HIDDEN])
        f = _sigmoid(gates[:, 1 * HIDDEN:2 * HIDDEN])
        g = jnp.tanh(gates[:, 2 * HIDDEN:3 * HIDDEN])
        o = _sigmoid(gates[:, 3 * HIDDEN:4 * HIDDEN])
        c = f * c + i * g
        h = o * jnp.tanh(c)
        return (h, c), None

    (h, _), _ = jax.lax.scan(step, (h0, c0), embeds)
    return h @ params["w_dec_t"] + params["b_dec"]


def init_params(key, vocab_size):
    ks = jax.random.split(key, 7)
    s_lstm = 1.0 / jnp.sqrt(HIDDEN)
    s_dec = 1.0 / jnp.sqrt(HIDDEN)
    params = {
        # nn.Embedding(len(vocab), 300) — weight_matrix stand-in.
        "embedding": jax.random.normal(ks[0], (vocab_size, EMBED), jnp.float32),
        # nn.LSTM(300, 128): weight_ih (4H, E), weight_hh (4H, H), biases (4H,)
        # stored pre-transposed for x @ W^T.
        "w_ih_t": jax.random.uniform(ks[1], (EMBED, 4 * HIDDEN), jnp.float32,
                                     -s_lstm, s_lstm),
        "w_hh_t": jax.random.uniform(ks[2], (HIDDEN, 4 * HIDDEN), jnp.float32,
                                     -s_lstm, s_lstm),
        "bias": (jax.random.uniform(ks[3], (1, 4 * HIDDEN), jnp.float32,
                                    -s_lstm, s_lstm)
                 + jax.random.uniform(ks[4], (1, 4 * HIDDEN), jnp.float32,
                                      -s_lstm, s_lstm)),  # b_ih + b_hh
        # nn.Linear(128, 2)
        "w_dec_t": jax.random.uniform(ks[5], (HIDDEN, NUM_CLASSES), jnp.float32,
                                      -s_dec, s_dec),
        "b_dec": jax.random.uniform(ks[6], (1, NUM_CLASSES), jnp.float32,
                                    -s_dec, s_dec),
    }
    return params


if __name__ == "__main__":
    key = jax.random.PRNGKey(0)
    k_param, k_sent = jax.random.split(key)

    vocab_size = 50
    seq_len = 8
    batch = 2

    params = init_params(k_param, vocab_size)
    sentence = jax.random.randint(k_sent, (seq_len, batch), 0, vocab_size,
                                  dtype=jnp.int32)

    y = jax.block_until_ready(jax.jit(lstm_forward)(sentence, params))
    y_ref = jax.block_until_ready(reference_forward(sentence, params))

    assert y.shape == (batch, NUM_CLASSES), y.shape
    assert jnp.allclose(y, y_ref, atol=5e-3, rtol=5e-3), (y, y_ref)
    print("KERNEL_OK")
</pallas_src>

<mosaic_0001>
module attributes {stable_mosaic.version = 11 : i64} {
  func.func @kernel(%arg0: i32, %arg1: i32, %arg2: memref<8x16x384xbf16, #tpu.memory_space<vmem>>, %arg3: memref<384x512xbf16, #tpu.memory_space<vmem>>, %arg4: memref<1x512xf32, #tpu.memory_space<vmem>>, %arg5: memref<128x512xbf16, #tpu.memory_space<vmem>>, %arg6: memref<16x128xf32, #tpu.memory_space<vmem>>, %arg7: memref<8x16x512xf32, #tpu.memory_space<vmem>>, %arg8: memref<16x128xf32, #tpu.memory_space<vmem>>, %arg9: memref<16x128xf32, #tpu.memory_space<vmem>>) attributes {dimension_semantics = [#tpu.dimension_semantics<parallel>, #tpu.dimension_semantics<arbitrary>], iteration_bounds = array<i64: 1, 1>, scalar_prefetch = 0 : i64, scratch_operands = 3 : i64, tpu.core_type = #tpu.core_type<tc>, window_params = [{transform_indices = @transform_0, window_bounds = array<i64: 8, 16, 384>}, {pipeline_mode = #tpu.pipeline_mode<synchronous>, transform_indices = @transform_1, window_bounds = array<i64: 384, 512>}, {pipeline_mode = #tpu.pipeline_mode<synchronous>, transform_indices = @transform_2, window_bounds = array<i64: 1, 512>}, {pipeline_mode = #tpu.pipeline_mode<synchronous>, transform_indices = @transform_3, window_bounds = array<i64: 128, 512>}, {transform_indices = @transform_4, window_bounds = array<i64: 16, 128>}]} {
    %c0_i32 = arith.constant 0 : i32
    %0 = arith.cmpi eq, %arg1, %c0_i32 : i32
    %1 = arith.extui %0 : i1 to i32
    %c0_i32_0 = arith.constant 0 : i32
    %2 = arith.cmpi ne, %1, %c0_i32_0 : i32
    scf.if %2 {
      %cst_187 = arith.constant 0.000000e+00 : f32
      %458 = vector.broadcast %cst_187 : f32 to vector<16x128xf32>
      %c0_188 = arith.constant 0 : index
      %c0_189 = arith.constant 0 : index
      %459 = vector.load %arg8[%c0_188, %c0_189] : memref<16x128xf32, #tpu.memory_space<vmem>>, vector<16x128xf32>
      tpu.vector_store %arg8[%c0_188, %c0_189], %458 {strides = array<i32>} : memref<16x128xf32, #tpu.memory_space<vmem>>, vector<16x128xf32>,
      %cst_190 = arith.constant 0.000000e+00 : f32
      %460 = vector.broadcast %cst_190 : f32 to vector<16x128xf32>
      %c0_191 = arith.constant 0 : index
      %c0_192 = arith.constant 0 : index
      %461 = vector.load %arg9[%c0_191, %c0_192] : memref<16x128xf32, #tpu.memory_space<vmem>>, vector<16x128xf32>
      tpu.vector_store %arg9[%c0_191, %c0_192], %460 {strides = array<i32>} : memref<16x128xf32, #tpu.memory_space<vmem>>, vector<16x128xf32>,
    } else {
    }
    %c0 = arith.constant 0 : index
    %c0_1 = arith.constant 0 : index
    %3 = vector.load %arg3[%c0, %c0_1] : memref<384x512xbf16, #tpu.memory_space<vmem>>, vector<384x512xbf16>
    %c0_2 = arith.constant 0 : index
    %c0_3 = arith.constant 0 : index
    %4 = vector.load %arg4[%c0_2, %c0_3] : memref<1x512xf32, #tpu.memory_space<vmem>>, vector<1x512xf32>
    %c0_4 = arith.constant 0 : index
    %c0_5 = arith.constant 0 : index
    %5 = vector.load %arg5[%c0_4, %c0_5] : memref<128x512xbf16, #tpu.memory_space<vmem>>, vector<128x512xbf16>
    %6 = vector.extract_strided_slice %5 {offsets = [0, 0], sizes = [128, 256], strides = [1, 1]} : vector<128x512xbf16> to vector<128x256xbf16>
    %7 = vector.extract_strided_slice %5 {offsets = [0, 256], sizes = [128, 256], strides = [1, 1]} : vector<128x512xbf16> to vector<128x256xbf16>
    %c0_i32_6 = arith.constant 0 : i32
    %8 = arith.index_cast %c0_i32_6 : i32 to index
    %c0_7 = arith.constant 0 : index
    %c0_8 = arith.constant 0 : index
    %9 = vector.load %arg2[%8, %c0_7, %c0_8] : memref<8x16x384xbf16, #tpu.memory_space<vmem>>, vector<1x16x384xbf16>
    %10 = vector.shape_cast %9 : vector<1x16x384xbf16> to vector<16x384xbf16>
    %cst = arith.constant dense<0.000000e+00> : vector<16x512xf32>
    %11 = tpu.matmul %10, %3, %cst {dimension_numbers = #tpu.dot_dimension_numbers<[1], [0], [0], [1], [0, 0, 1, 1], [], []>} : vector<16x384xbf16>, vector<384x512xbf16>, vector<16x512xf32> -> vector<16x512xf32>
    %12 = vector.broadcast %4 : vector<1x512xf32> to vector<16x512xf32>
    %13 = arith.addf %11, %12 : vector<16x512xf32>
    %14 = arith.index_cast %c0_i32_6 : i32 to index
    %c0_9 = arith.constant 0 : index
    %c0_10 = arith.constant 0 : index
    %15 = vector.load %arg7[%14, %c0_9, %c0_10] : memref<8x16x512xf32, #tpu.memory_space<vmem>>, vector<1x16x512xf32>
    %16 = vector.shape_cast %15 : vector<1x16x512xf32> to vector<16x512xf32>
    %17 = vector.shape_cast %13 : vector<16x512xf32> to vector<1x16x512xf32>
    tpu.vector_store %arg7[%14, %c0_9, %c0_10], %17 {strides = array<i32>} : memref<8x16x512xf32, #tpu.memory_space<vmem>>, vector<1x16x512xf32>,
    %c1_i32 = arith.constant 1 : i32
    %18 = arith.index_cast %c1_i32 : i32 to index
    %c0_11 = arith.constant 0 : index
    %c0_12 = arith.constant 0 : index
    %19 = vector.load %arg2[%18, %c0_11, %c0_12] : memref<8x16x384xbf16, #tpu.memory_space<vmem>>, vector<1x16x384xbf16>
    %20 = vector.shape_cast %19 : vector<1x16x384xbf16> to vector<16x384xbf16>
    %cst_13 = arith.constant dense<0.000000e+00> : vector<16x512xf32>
    %21 = tpu.matmul %20, %3, %cst_13 {dimension_numbers = #tpu.dot_dimension_numbers<[1], [0], [0], [1], [0, 0, 1, 1], [], []>} : vector<16x384xbf16>, vector<384x512xbf16>, vector<16x512xf32> -> vector<16x512xf32>
    %22 = vector.broadcast %4 : vector<1x512xf32> to vector<16x512xf32>
    %23 = arith.addf %21, %22 : vector<16x512xf32>
    %24 = arith.index_cast %c1_i32 : i32 to index
    %c0_14 = arith.constant 0 : index
    %c0_15 = arith.constant 0 : index
    %25 = vector.load %arg7[%24, %c0_14, %c0_15] : memref<8x16x512xf32, #tpu.memory_space<vmem>>, vector<1x16x512xf32>
    %26 = vector.shape_cast %25 : vector<1x16x512xf32> to vector<16x512xf32>
    %27 = vector.shape_cast %23 : vector<16x512xf32> to vector<1x16x512xf32>
    tpu.vector_store %arg7[%24, %c0_14, %c0_15], %27 {strides = array<i32>} : memref<8x16x512xf32, #tpu.memory_space<vmem>>, vector<1x16x512xf32>,
    %c2_i32 = arith.constant 2 : i32
    %28 = arith.index_cast %c2_i32 : i32 to index
    %c0_16 = arith.constant 0 : index
    %c0_17 = arith.constant 0 : index
    %29 = vector.load %arg2[%28, %c0_16, %c0_17] : memref<8x16x384xbf16, #tpu.memory_space<vmem>>, vector<1x16x384xbf16>
    %30 = vector.shape_cast %29 : vector<1x16x384xbf16> to vector<16x384xbf16>
    %cst_18 = arith.constant dense<0.000000e+00> : vector<16x512xf32>
    %31 = tpu.matmul %30, %3, %cst_18 {dimension_numbers = #tpu.dot_dimension_numbers<[1], [0], [0], [1], [0, 0, 1, 1], [], []>} : vector<16x384xbf16>, vector<384x512xbf16>, vector<16x512xf32> -> vector<16x512xf32>
    %32 = vector.broadcast %4 : vector<1x512xf32> to vector<16x512xf32>
    %33 = arith.addf %31, %32 : vector<16x512xf32>
    %34 = arith.index_cast %c2_i32 : i32 to index
    %c0_19 = arith.constant 0 : index
    %c0_20 = arith.constant 0 : index
    %35 = vector.load %arg7[%34, %c0_19, %c0_20] : memref<8x16x512xf32, #tpu.memory_space<vmem>>, vector<1x16x512xf32>
    %36 = vector.shape_cast %35 : vector<1x16x512xf32> to vector<16x512xf32>
    %37 = vector.shape_cast %33 : vector<16x512xf32> to vector<1x16x512xf32>
    tpu.vector_store %arg7[%34, %c0_19, %c0_20], %37 {strides = array<i32>} : memref<8x16x512xf32, #tpu.memory_space<vmem>>, vector<1x16x512xf32>,
    %c3_i32 = arith.constant 3 : i32
    %38 = arith.index_cast %c3_i32 : i32 to index
    %c0_21 = arith.constant 0 : index
    %c0_22 = arith.constant 0 : index
    %39 = vector.load %arg2[%38, %c0_21, %c0_22] : memref<8x16x384xbf16, #tpu.memory_space<vmem>>, vector<1x16x384xbf16>
    %40 = vector.shape_cast %39 : vector<1x16x384xbf16> to vector<16x384xbf16>
    %cst_23 = arith.constant dense<0.000000e+00> : vector<16x512xf32>
    %41 = tpu.matmul %40, %3, %cst_23 {dimension_numbers = #tpu.dot_dimension_numbers<[1], [0], [0], [1], [0, 0, 1, 1], [], []>} : vector<16x384xbf16>, vector<384x512xbf16>, vector<16x512xf32> -> vector<16x512xf32>
    %42 = vector.broadcast %4 : vector<1x512xf32> to vector<16x512xf32>
    %43 = arith.addf %41, %42 : vector<16x512xf32>
    %44 = arith.index_cast %c3_i32 : i32 to index
    %c0_24 = arith.constant 0 : index
    %c0_25 = arith.constant 0 : index
    %45 = vector.load %arg7[%44, %c0_24, %c0_25] : memref<8x16x512xf32, #tpu.memory_space<vmem>>, vector<1x16x512xf32>
    %46 = vector.shape_cast %45 : vector<1x16x512xf32> to vector<16x512xf32>
    %47 = vector.shape_cast %43 : vector<16x512xf32> to vector<1x16x512xf32>
    tpu.vector_store %arg7[%44, %c0_24, %c0_25], %47 {strides = array<i32>} : memref<8x16x512xf32, #tpu.memory_space<vmem>>, vector<1x16x512xf32>,
    %c4_i32 = arith.constant 4 : i32
    %48 = arith.index_cast %c4_i32 : i32 to index
    %c0_26 = arith.constant 0 : index
    %c0_27 = arith.constant 0 : index
    %49 = vector.load %arg2[%48, %c0_26, %c0_27] : memref<8x16x384xbf16, #tpu.memory_space<vmem>>, vector<1x16x384xbf16>
    %50 = vector.shape_cast %49 : vector<1x16x384xbf16> to vector<16x384xbf16>
    %cst_28 = arith.constant dense<0.000000e+00> : vector<16x512xf32>
    %51 = tpu.matmul %50, %3, %cst_28 {dimension_numbers = #tpu.dot_dimension_numbers<[1], [0], [0], [1], [0, 0, 1, 1], [], []>} : vector<16x384xbf16>, vector<384x512xbf16>, vector<16x512xf32> -> vector<16x512xf32>
    %52 = vector.broadcast %4 : vector<1x512xf32> to vector<16x512xf32>
    %53 = arith.addf %51, %52 : vector<16x512xf32>
    %54 = arith.index_cast %c4_i32 : i32 to index
    %c0_29 = arith.constant 0 : index
    %c0_30 = arith.constant 0 : index
    %55 = vector.load %arg7[%54, %c0_29, %c0_30] : memref<8x16x512xf32, #tpu.memory_space<vmem>>, vector<1x16x512xf32>
    %56 = vector.shape_cast %55 : vector<1x16x512xf32> to vector<16x512xf32>
    %57 = vector.shape_cast %53 : vector<16x512xf32> to vector<1x16x512xf32>
    tpu.vector_store %arg7[%54, %c0_29, %c0_30], %57 {strides = array<i32>} : memref<8x16x512xf32, #tpu.memory_space<vmem>>, vector<1x16x512xf32>,
    %c5_i32 = arith.constant 5 : i32
    %58 = arith.index_cast %c5_i32 : i32 to index
    %c0_31 = arith.constant 0 : index
    %c0_32 = arith.constant 0 : index
    %59 = vector.load %arg2[%58, %c0_31, %c0_32] : memref<8x16x384xbf16, #tpu.memory_space<vmem>>, vector<1x16x384xbf16>
    %60 = vector.shape_cast %59 : vector<1x16x384xbf16> to vector<16x384xbf16>
    %cst_33 = arith.constant dense<0.000000e+00> : vector<16x512xf32>
    %61 = tpu.matmul %60, %3, %cst_33 {dimension_numbers = #tpu.dot_dimension_numbers<[1], [0], [0], [1], [0, 0, 1, 1], [], []>} : vector<16x384xbf16>, vector<384x512xbf16>, vector<16x512xf32> -> vector<16x512xf32>
    %62 = vector.broadcast %4 : vector<1x512xf32> to vector<16x512xf32>
    %63 = arith.addf %61, %62 : vector<16x512xf32>
    %64 = arith.index_cast %c5_i32 : i32 to index
    %c0_34 = arith.constant 0 : index
    %c0_35 = arith.constant 0 : index
    %65 = vector.load %arg7[%64, %c0_34, %c0_35] : memref<8x16x512xf32, #tpu.memory_space<vmem>>, vector<1x16x512xf32>
    %66 = vector.shape_cast %65 : vector<1x16x512xf32> to vector<16x512xf32>
    %67 = vector.shape_cast %63 : vector<16x512xf32> to vector<1x16x512xf32>
    tpu.vector_store %arg7[%64, %c0_34, %c0_35], %67 {strides = array<i32>} : memref<8x16x512xf32, #tpu.memory_space<vmem>>, vector<1x16x512xf32>,
    %c6_i32 = arith.constant 6 : i32
    %68 = arith.index_cast %c6_i32 : i32 to index
    %c0_36 = arith.constant 0 : index
    %c0_37 = arith.constant 0 : index
    %69 = vector.load %arg2[%68, %c0_36, %c0_37] : memref<8x16x384xbf16, #tpu.memory_space<vmem>>, vector<1x16x384xbf16>
    %70 = vector.shape_cast %69 : vector<1x16x384xbf16> to vector<16x384xbf16>
    %cst_38 = arith.constant dense<0.000000e+00> : vector<16x512xf32>
    %71 = tpu.matmul %70, %3, %cst_38 {dimension_numbers = #tpu.dot_dimension_numbers<[1], [0], [0], [1], [0, 0, 1, 1], [], []>} : vector<16x384xbf16>, vector<384x512xbf16>, vector<16x512xf32> -> vector<16x512xf32>
    %72 = vector.broadcast %4 : vector<1x512xf32> to vector<16x512xf32>
    %73 = arith.addf %71, %72 : vector<16x512xf32>
    %74 = arith.index_cast %c6_i32 : i32 to index
    %c0_39 = arith.constant 0 : index
    %c0_40 = arith.constant 0 : index
    %75 = vector.load %arg7[%74, %c0_39, %c0_40] : memref<8x16x512xf32, #tpu.memory_space<vmem>>, vector<1x16x512xf32>
    %76 = vector.shape_cast %75 : vector<1x16x512xf32> to vector<16x512xf32>
    %77 = vector.shape_cast %73 : vector<16x512xf32> to vector<1x16x512xf32>
    tpu.vector_store %arg7[%74, %c0_39, %c0_40], %77 {strides = array<i32>} : memref<8x16x512xf32, #tpu.memory_space<vmem>>, vector<1x16x512xf32>,
    %c7_i32 = arith.constant 7 : i32
    %78 = arith.index_cast %c7_i32 : i32 to index
    %c0_41 = arith.constant 0 : index
    %c0_42 = arith.constant 0 : index
    %79 = vector.load %arg2[%78, %c0_41, %c0_42] : memref<8x16x384xbf16, #tpu.memory_space<vmem>>, vector<1x16x384xbf16>
    %80 = vector.shape_cast %79 : vector<1x16x384xbf16> to vector<16x384xbf16>
    %cst_43 = arith.constant dense<0.000000e+00> : vector<16x512xf32>
    %81 = tpu.matmul %80, %3, %cst_43 {dimension_numbers = #tpu.dot_dimension_numbers<[1], [0], [0], [1], [0, 0, 1, 1], [], []>} : vector<16x384xbf16>, vector<384x512xbf16>, vector<16x512xf32> -> vector<16x512xf32>
    %82 = vector.broadcast %4 : vector<1x512xf32> to vector<16x512xf32>
    %83 = arith.addf %81, %82 : vector<16x512xf32>
    %84 = arith.index_cast %c7_i32 : i32 to index
    %c0_44 = arith.constant 0 : index
    %c0_45 = arith.constant 0 : index
    %85 = vector.load %arg7[%84, %c0_44, %c0_45] : memref<8x16x512xf32, #tpu.memory_space<vmem>>, vector<1x16x512xf32>
    %86 = vector.shape_cast %85 : vector<1x16x512xf32> to vector<16x512xf32>
    %87 = vector.shape_cast %83 : vector<16x512xf32> to vector<1x16x512xf32>
    tpu.vector_store %arg7[%84, %c0_44, %c0_45], %87 {strides = array<i32>} : memref<8x16x512xf32, #tpu.memory_space<vmem>>, vector<1x16x512xf32>,
    %c8_i32 = arith.constant 8 : i32
    %c8_i32_46 = arith.constant 8 : i32
    %88 = arith.muli %arg1, %c8_i32_46 : i32
    %c8_i32_47 = arith.constant 8 : i32
    %89 = arith.subi %c8_i32_47, %88 : i32
    %c8_i32_48 = arith.constant 8 : i32
    %90 = arith.minsi %c8_i32_48, %89 : i32
    %c0_49 = arith.constant 0 : index
    %c0_50 = arith.constant 0 : index
    %91 = vector.load %arg8[%c0_49, %c0_50] : memref<16x128xf32, #tpu.memory_space<vmem>>, vector<16x128xf32>
    %c0_51 = arith.constant 0 : index
    %c0_52 = arith.constant 0 : index
    %92 = vector.load %arg9[%c0_51, %c0_52] : memref<16x128xf32, #tpu.memory_space<vmem>>, vector<16x128xf32>
    %c0_i32_53 = arith.constant 0 : i32
    %93 = arith.truncf %91 : vector<16x128xf32> to vector<16x128xbf16>
    %94 = arith.index_cast %c0_i32_53 : i32 to index
    %c0_54 = arith.constant 0 : index
    %c0_55 = arith.constant 0 : index
    %95 = vector.load %arg7[%94, %c0_54, %c0_55] : memref<8x16x512xf32, #tpu.memory_space<vmem>>, vector<1x16x256xf32>
    %96 = vector.shape_cast %95 : vector<1x16x256xf32> to vector<16x256xf32>
    %cst_56 = arith.constant dense<0.000000e+00> : vector<16x256xf32>
    %97 = tpu.matmul %93, %6, %cst_56 {dimension_numbers = #tpu.dot_dimension_numbers<[1], [0], [0], [1], [0, 0, 1, 1], [], []>} : vector<16x128xbf16>, vector<128x256xbf16>, vector<16x256xf32> -> vector<16x256xf32>
    %98 = arith.addf %96, %97 : vector<16x256xf32>
    %99 = vector.extract_strided_slice %98 {offsets = [0, 0], sizes = [16, 128], strides = [1, 1]} : vector<16x256xf32> to vector<16x128xf32>
    %cst_57 = arith.constant 5.000000e-01 : f32
    %100 = vector.broadcast %cst_57 : f32 to vector<16x128xf32>
    %101 = arith.mulf %100, %99 : vector<16x128xf32>
    %102 = math.tanh %101 : vector<16x128xf32>
    %cst_58 = arith.constant 5.000000e-01 : f32
    %103 = vector.broadcast %cst_58 : f32 to vector<16x128xf32>
    %104 = arith.mulf %103, %102 : vector<16x128xf32>
    %cst_59 = arith.constant 5.000000e-01 : f32
    %105 = vector.broadcast %cst_59 : f32 to vector<16x128xf32>
    %106 = arith.addf %104, %105 : vector<16x128xf32>
    %107 = vector.extract_strided_slice %98 {offsets = [0, 128], sizes = [16, 128], strides = [1, 1]} : vector<16x256xf32> to vector<16x128xf32>
    %cst_60 = arith.constant 5.000000e-01 : f32
    %108 = vector.broadcast %cst_60 : f32 to vector<16x128xf32>
    %109 = arith.mulf %108, %107 : vector<16x128xf32>
    %110 = math.tanh %109 : vector<16x128xf32>
    %cst_61 = arith.constant 5.000000e-01 : f32
    %111 = vector.broadcast %cst_61 : f32 to vector<16x128xf32>
    %112 = arith.mulf %111, %110 : vector<16x128xf32>
    %cst_62 = arith.constant 5.000000e-01 : f32
    %113 = vector.broadcast %cst_62 : f32 to vector<16x128xf32>
    %114 = arith.addf %112, %113 : vector<16x128xf32>
    %115 = arith.index_cast %c0_i32_53 : i32 to index
    %c0_63 = arith.constant 0 : index
    %c256 = arith.constant 256 : index
    %116 = vector.load %arg7[%115, %c0_63, %c256] : memref<8x16x512xf32, #tpu.memory_space<vmem>>, vector<1x16x256xf32>
    %117 = vector.shape_cast %116 : vector<1x16x256xf32> to vector<16x256xf32>
    %cst_64 = arith.constant dense<0.000000e+00> : vector<16x256xf32>
    %118 = tpu.matmul %93, %7, %cst_64 {dimension_numbers = #tpu.dot_dimension_numbers<[1], [0], [0], [1], [0, 0, 1, 1], [], []>} : vector<16x128xbf16>, vector<128x256xbf16>, vector<16x256xf32> -> vector<16x256xf32>
    %119 = arith.addf %117, %118 : vector<16x256xf32>
    %120 = vector.extract_strided_slice %119 {offsets = [0, 0], sizes = [16, 128], strides = [1, 1]} : vector<16x256xf32> to vector<16x128xf32>
    %121 = math.tanh %120 : vector<16x128xf32>
    %122 = vector.extract_strided_slice %119 {offsets = [0, 128], sizes = [16, 128], strides = [1, 1]} : vector<16x256xf32> to vector<16x128xf32>
    %cst_65 = arith.constant 5.000000e-01 : f32
    %123 = vector.broadcast %cst_65 : f32 to vector<16x128xf32>
    %124 = arith.mulf %123, %122 : vector<16x128xf32>
    %125 = math.tanh %124 : vector<16x128xf32>
    %cst_66 = arith.constant 5.000000e-01 : f32
    %126 = vector.broadcast %cst_66 : f32 to vector<16x128xf32>
    %127 = arith.mulf %126, %125 : vector<16x128xf32>
    %cst_67 = arith.constant 5.000000e-01 : f32
    %128 = vector.broadcast %cst_67 : f32 to vector<16x128xf32>
    %129 = arith.addf %127, %128 : vector<16x128xf32>
    %130 = arith.mulf %114, %92 : vector<16x128xf32>
    %131 = arith.mulf %106, %121 : vector<16x128xf32>
    %132 = arith.addf %130, %131 : vector<16x128xf32>
    %133 = math.tanh %132 : vector<16x128xf32>
    %134 = arith.mulf %129, %133 : vector<16x128xf32>
    %135 = arith.cmpi slt, %c0_i32_53, %90 : i32
    %136 = arith.select %135, %134, %91 : vector<16x128xf32>
    %137 = arith.select %135, %132, %92 : vector<16x128xf32>
    %c1_i32_68 = arith.constant 1 : i32
    %138 = arith.truncf %136 : vector<16x128xf32> to vector<16x128xbf16>
    %139 = arith.index_cast %c1_i32_68 : i32 to index
    %c0_69 = arith.constant 0 : index
    %c0_70 = arith.constant 0 : index
    %140 = vector.load %arg7[%139, %c0_69, %c0_70] : memref<8x16x512xf32, #tpu.memory_space<vmem>>, vector<1x16x256xf32>
    %141 = vector.shape_cast %140 : vector<1x16x256xf32> to vector<16x256xf32>
    %cst_71 = arith.constant dense<0.000000e+00> : vector<16x256xf32>
    %142 = tpu.matmul %138, %6, %cst_71 {dimension_numbers = #tpu.dot_dimension_numbers<[1], [0], [0], [1], [0, 0, 1, 1], [], []>} : vector<16x128xbf16>, vector<128x256xbf16>, vector<16x256xf32> -> vector<16x256xf32>
    %143 = arith.addf %141, %142 : vector<16x256xf32>
    %144 = vector.extract_strided_slice %143 {offsets = [0, 0], sizes = [16, 128], strides = [1, 1]} : vector<16x256xf32> to vector<16x128xf32>
    %cst_72 = arith.constant 5.000000e-01 : f32
    %145 = vector.broadcast %cst_72 : f32 to vector<16x128xf32>
    %146 = arith.mulf %145, %144 : vector<16x128xf32>
    %147 = math.tanh %146 : vector<16x128xf32>
    %cst_73 = arith.constant 5.000000e-01 : f32
    %148 = vector.broadcast %cst_73 : f32 to vector<16x128xf32>
    %149 = arith.mulf %148, %147 : vector<16x128xf32>
    %cst_74 = arith.constant 5.000000e-01 : f32
    %150 = vector.broadcast %cst_74 : f32 to vector<16x128xf32>
    %151 = arith.addf %149, %150 : vector<16x128xf32>
    %152 = vector.extract_strided_slice %143 {offsets = [0, 128], sizes = [16, 128], strides = [1, 1]} : vector<16x256xf32> to vector<16x128xf32>
    %cst_75 = arith.constant 5.000000e-01 : f32
    %153 = vector.broadcast %cst_75 : f32 to vector<16x128xf32>
    %154 = arith.mulf %153, %152 : vector<16x128xf32>
    %155 = math.tanh %154 : vector<16x128xf32>
    %cst_76 = arith.constant 5.000000e-01 : f32
    %156 = vector.broadcast %cst_76 : f32 to vector<16x128xf32>
    %157 = arith.mulf %156, %155 : vector<16x128xf32>
    %cst_77 = arith.constant 5.000000e-01 : f32
    %158 = vector.broadcast %cst_77 : f32 to vector<16x128xf32>
    %159 = arith.addf %157, %158 : vector<16x128xf32>
    %160 = arith.index_cast %c1_i32_68 : i32 to index
    %c0_78 = arith.constant 0 : index
    %c256_79 = arith.constant 256 : index
    %161 = vector.load %arg7[%160, %c0_78, %c256_79] : memref<8x16x512xf32, #tpu.memory_space<vmem>>, vector<1x16x256xf32>
    %162 = vector.shape_cast %161 : vector<1x16x256xf32> to vector<16x256xf32>
    %cst_80 = arith.constant dense<0.000000e+00> : vector<16x256xf32>
    %163 = tpu.matmul %138, %7, %cst_80 {dimension_numbers = #tpu.dot_dimension_numbers<[1], [0], [0], [1], [0, 0, 1, 1], [], []>} : vector<16x128xbf16>, vector<128x256xbf16>, vector<16x256xf32> -> vector<16x256xf32>
    %164 = arith.addf %162, %163 : vector<16x256xf32>
    %165 = vector.extract_strided_slice %164 {offsets = [0, 0], sizes = [16, 128], strides = [1, 1]} : vector<16x256xf32> to vector<16x128xf32>
    %166 = math.tanh %165 : vector<16x128xf32>
    %167 = vector.extract_strided_slice %164 {offsets = [0, 128], sizes = [16, 128], strides = [1, 1]} : vector<16x256xf32> to vector<16x128xf32>
    %cst_81 = arith.constant 5.000000e-01 : f32
    %168 = vector.broadcast %cst_81 : f32 to vector<16x128xf32>
    %169 = arith.mulf %168, %167 : vector<16x128xf32>
    %170 = math.tanh %169 : vector<16x128xf32>
    %cst_82 = arith.constant 5.000000e-01 : f32
    %171 = vector.broadcast %cst_82 : f32 to vector<16x128xf32>
    %172 = arith.mulf %171, %170 : vector<16x128xf32>
    %cst_83 = arith.constant 5.000000e-01 : f32
    %173 = vector.broadcast %cst_83 : f32 to vector<16x128xf32>
    %174 = arith.addf %172, %173 : vector<16x128xf32>
    %175 = arith.mulf %159, %137 : vector<16x128xf32>
    %176 = arith.mulf %151, %166 : vector<16x128xf32>
    %177 = arith.addf %175, %176 : vector<16x128xf32>
    %178 = math.tanh %177 : vector<16x128xf32>
    %179 = arith.mulf %174, %178 : vector<16x128xf32>
    %180 = arith.cmpi slt, %c1_i32_68, %90 : i32
    %181 = arith.select %180, %179, %136 : vector<16x128xf32>
    %182 = arith.select %180, %177, %137 : vector<16x128xf32>
    %c2_i32_84 = arith.constant 2 : i32
    %183 = arith.truncf %181 : vector<16x128xf32> to vector<16x128xbf16>
    %184 = arith.index_cast %c2_i32_84 : i32 to index
    %c0_85 = arith.constant 0 : index
    %c0_86 = arith.constant 0 : index
    %185 = vector.load %arg7[%184, %c0_85, %c0_86] : memref<8x16x512xf32, #tpu.memory_space<vmem>>, vector<1x16x256xf32>
    %186 = vector.shape_cast %185 : vector<1x16x256xf32> to vector<16x256xf32>
    %cst_87 = arith.constant dense<0.000000e+00> : vector<16x256xf32>
    %187 = tpu.matmul %183, %6, %cst_87 {dimension_numbers = #tpu.dot_dimension_numbers<[1], [0], [0], [1], [0, 0, 1, 1], [], []>} : vector<16x128xbf16>, vector<128x256xbf16>, vector<16x256xf32> -> vector<16x256xf32>
    %188 = arith.addf %186, %187 : vector<16x256xf32>
    %189 = vector.extract_strided_slice %188 {offsets = [0, 0], sizes = [16, 128], strides = [1, 1]} : vector<16x256xf32> to vector<16x128xf32>
    %cst_88 = arith.constant 5.000000e-01 : f32
    %190 = vector.broadcast %cst_88 : f32 to vector<16x128xf32>
    %191 = arith.mulf %190, %189 : vector<16x128xf32>
    %192 = math.tanh %191 : vector<16x128xf32>
    %cst_89 = arith.constant 5.000000e-01 : f32
    %193 = vector.broadcast %cst_89 : f32 to vector<16x128xf32>
    %194 = arith.mulf %193, %192 : vector<16x128xf32>
    %cst_90 = arith.constant 5.000000e-01 : f32
    %195 = vector.broadcast %cst_90 : f32 to vector<16x128xf32>
    %196 = arith.addf %194, %195 : vector<16x128xf32>
    %197 = vector.extract_strided_slice %188 {offsets = [0, 128], sizes = [16, 128], strides = [1, 1]} : vector<16x256xf32> to vector<16x128xf32>
    %cst_91 = arith.constant 5.000000e-01 : f32
    %198 = vector.broadcast %cst_91 : f32 to vector<16x128xf32>
    %199 = arith.mulf %198, %197 : vector<16x128xf32>
    %200 = math.tanh %199 : vector<16x128xf32>
    %cst_92 = arith.constant 5.000000e-01 : f32
    %201 = vector.broadcast %cst_92 : f32 to vector<16x128xf32>
    %202 = arith.mulf %201, %200 : vector<16x128xf32>
    %cst_93 = arith.constant 5.000000e-01 : f32
    %203 = vector.broadcast %cst_93 : f32 to vector<16x128xf32>
    %204 = arith.addf %202, %203 : vector<16x128xf32>
    %205 = arith.index_cast %c2_i32_84 : i32 to index
    %c0_94 = arith.constant 0 : index
    %c256_95 = arith.constant 256 : index
    %206 = vector.load %arg7[%205, %c0_94, %c256_95] : memref<8x16x512xf32, #tpu.memory_space<vmem>>, vector<1x16x256xf32>
    %207 = vector.shape_cast %206 : vector<1x16x256xf32> to vector<16x256xf32>
    %cst_96 = arith.constant dense<0.000000e+00> : vector<16x256xf32>
    %208 = tpu.matmul %183, %7, %cst_96 {dimension_numbers = #tpu.dot_dimension_numbers<[1], [0], [0], [1], [0, 0, 1, 1], [], []>} : vector<16x128xbf16>, vector<128x256xbf16>, vector<16x256xf32> -> vector<16x256xf32>
    %209 = arith.addf %207, %208 : vector<16x256xf32>
    %210 = vector.extract_strided_slice %209 {offsets = [0, 0], sizes = [16, 128], strides = [1, 1]} : vector<16x256xf32> to vector<16x128xf32>
    %211 = math.tanh %210 : vector<16x128xf32>
    %212 = vector.extract_strided_slice %209 {offsets = [0, 128], sizes = [16, 128], strides = [1, 1]} : vector<16x256xf32> to vector<16x128xf32>
    %cst_97 = arith.constant 5.000000e-01 : f32
    %213 = vector.broadcast %cst_97 : f32 to vector<16x128xf32>
    %214 = arith.mulf %213, %212 : vector<16x128xf32>
    %215 = math.tanh %214 : vector<16x128xf32>
    %cst_98 = arith.constant 5.000000e-01 : f32
    %216 = vector.broadcast %cst_98 : f32 to vector<16x128xf32>
    %217 = arith.mulf %216, %215 : vector<16x128xf32>
    %cst_99 = arith.constant 5.000000e-01 : f32
    %218 = vector.broadcast %cst_99 : f32 to vector<16x128xf32>
    %219 = arith.addf %217, %218 : vector<16x128xf32>
    %220 = arith.mulf %204, %182 : vector<16x128xf32>
    %221 = arith.mulf %196, %211 : vector<16x128xf32>
    %222 = arith.addf %220, %221 : vector<16x128xf32>
    %223 = math.tanh %222 : vector<16x128xf32>
    %224 = arith.mulf %219, %223 : vector<16x128xf32>
    %225 = arith.cmpi slt, %c2_i32_84, %90 : i32
    %226 = arith.select %225, %224, %181 : vector<16x128xf32>
    %227 = arith.select %225, %222, %182 : vector<16x128xf32>
    %c3_i32_100 = arith.constant 3 : i32
    %228 = arith.truncf %226 : vector<16x128xf32> to vector<16x128xbf16>
    %229 = arith.index_cast %c3_i32_100 : i32 to index
    %c0_101 = arith.constant 0 : index
    %c0_102 = arith.constant 0 : index
    %230 = vector.load %arg7[%229, %c0_101, %c0_102] : memref<8x16x512xf32, #tpu.memory_space<vmem>>, vector<1x16x256xf32>
    %231 = vector.shape_cast %230 : vector<1x16x256xf32> to vector<16x256xf32>
    %cst_103 = arith.constant dense<0.000000e+00> : vector<16x256xf32>
    %232 = tpu.matmul %228, %6, %cst_103 {dimension_numbers = #tpu.dot_dimension_numbers<[1], [0], [0], [1], [0, 0, 1, 1], [], []>} : vector<16x128xbf16>, vector<128x256xbf16>, vector<16x256xf32> -> vector<16x256xf32>
    %233 = arith.addf %231, %232 : vector<16x256xf32>
    %234 = vector.extract_strided_slice %233 {offsets = [0, 0], sizes = [16, 128], strides = [1, 1]} : vector<16x256xf32> to vector<16x128xf32>
    %cst_104 = arith.constant 5.000000e-01 : f32
    %235 = vector.broadcast %cst_104 : f32 to vector<16x128xf32>
    %236 = arith.mulf %235, %234 : vector<16x128xf32>
    %237 = math.tanh %236 : vector<16x128xf32>
    %cst_105 = arith.constant 5.000000e-01 : f32
    %238 = vector.broadcast %cst_105 : f32 to vector<16x128xf32>
    %239 = arith.mulf %238, %237 : vector<16x128xf32>
    %cst_106 = arith.constant 5.000000e-01 : f32
    %240 = vector.broadcast %cst_106 : f32 to vector<16x128xf32>
    %241 = arith.addf %239, %240 : vector<16x128xf32>
    %242 = vector.extract_strided_slice %233 {offsets = [0, 128], sizes = [16, 128], strides = [1, 1]} : vector<16x256xf32> to vector<16x128xf32>
    %cst_107 = arith.constant 5.000000e-01 : f32
    %243 = vector.broadcast %cst_107 : f32 to vector<16x128xf32>
    %244 = arith.mulf %243, %242 : vector<16x128xf32>
    %245 = math.tanh %244 : vector<16x128xf32>
    %cst_108 = arith.constant 5.000000e-01 : f32
    %246 = vector.broadcast %cst_108 : f32 to vector<16x128xf32>
    %247 = arith.mulf %246, %245 : vector<16x128xf32>
    %cst_109 = arith.constant 5.000000e-01 : f32
    %248 = vector.broadcast %cst_109 : f32 to vector<16x128xf32>
    %249 = arith.addf %247, %248 : vector<16x128xf32>
    %250 = arith.index_cast %c3_i32_100 : i32 to index
    %c0_110 = arith.constant 0 : index
    %c256_111 = arith.constant 256 : index
    %251 = vector.load %arg7[%250, %c0_110, %c256_111] : memref<8x16x512xf32, #tpu.memory_space<vmem>>, vector<1x16x256xf32>
    %252 = vector.shape_cast %251 : vector<1x16x256xf32> to vector<16x256xf32>
    %cst_112 = arith.constant dense<0.000000e+00> : vector<16x256xf32>
    %253 = tpu.matmul %228, %7, %cst_112 {dimension_numbers = #tpu.dot_dimension_numbers<[1], [0], [0], [1], [0, 0, 1, 1], [], []>} : vector<16x128xbf16>, vector<128x256xbf16>, vector<16x256xf32> -> vector<16x256xf32>
    %254 = arith.addf %252, %253 : vector<16x256xf32>
    %255 = vector.extract_strided_slice %254 {offsets = [0, 0], sizes = [16, 128], strides = [1, 1]} : vector<16x256xf32> to vector<16x128xf32>
    %256 = math.tanh %255 : vector<16x128xf32>
    %257 = vector.extract_strided_slice %254 {offsets = [0, 128], sizes = [16, 128], strides = [1, 1]} : vector<16x256xf32> to vector<16x128xf32>
    %cst_113 = arith.constant 5.000000e-01 : f32
    %258 = vector.broadcast %cst_113 : f32 to vector<16x128xf32>
    %259 = arith.mulf %258, %257 : vector<16x128xf32>
    %260 = math.tanh %259 : vector<16x128xf32>
    %cst_114 = arith.constant 5.000000e-01 : f32
    %261 = vector.broadcast %cst_114 : f32 to vector<16x128xf32>
    %262 = arith.mulf %261, %260 : vector<16x128xf32>
    %cst_115 = arith.constant 5.000000e-01 : f32
    %263 = vector.broadcast %cst_115 : f32 to vector<16x128xf32>
    %264 = arith.addf %262, %263 : vector<16x128xf32>
    %265 = arith.mulf %249, %227 : vector<16x128xf32>
    %266 = arith.mulf %241, %256 : vector<16x128xf32>
    %267 = arith.addf %265, %266 : vector<16x128xf32>
    %268 = math.tanh %267 : vector<16x128xf32>
    %269 = arith.mulf %264, %268 : vector<16x128xf32>
    %270 = arith.cmpi slt, %c3_i32_100, %90 : i32
    %271 = arith.select %270, %269, %226 : vector<16x128xf32>
    %272 = arith.select %270, %267, %227 : vector<16x128xf32>
    %c4_i32_116 = arith.constant 4 : i32
    %273 = arith.truncf %271 : vector<16x128xf32> to vector<16x128xbf16>
    %274 = arith.index_cast %c4_i32_116 : i32 to index
    %c0_117 = arith.constant 0 : index
    %c0_118 = arith.constant 0 : index
    %275 = vector.load %arg7[%274, %c0_117, %c0_118] : memref<8x16x512xf32, #tpu.memory_space<vmem>>, vector<1x16x256xf32>
    %276 = vector.shape_cast %275 : vector<1x16x256xf32> to vector<16x256xf32>
    %cst_119 = arith.constant dense<0.000000e+00> : vector<16x256xf32>
    %277 = tpu.matmul %273, %6, %cst_119 {dimension_numbers = #tpu.dot_dimension_numbers<[1], [0], [0], [1], [0, 0, 1, 1], [], []>} : vector<16x128xbf16>, vector<128x256xbf16>, vector<16x256xf32> -> vector<16x256xf32>
    %278 = arith.addf %276, %277 : vector<16x256xf32>
    %279 = vector.extract_strided_slice %278 {offsets = [0, 0], sizes = [16, 128], strides = [1, 1]} : vector<16x256xf32> to vector<16x128xf32>
    %cst_120 = arith.constant 5.000000e-01 : f32
    %280 = vector.broadcast %cst_120 : f32 to vector<16x128xf32>
    %281 = arith.mulf %280, %279 : vector<16x128xf32>
    %282 = math.tanh %281 : vector<16x128xf32>
    %cst_121 = arith.constant 5.000000e-01 : f32
    %283 = vector.broadcast %cst_121 : f32 to vector<16x128xf32>
    %284 = arith.mulf %283, %282 : vector<16x128xf32>
    %cst_122 = arith.constant 5.000000e-01 : f32
    %285 = vector.broadcast %cst_122 : f32 to vector<16x128xf32>
    %286 = arith.addf %284, %285 : vector<16x128xf32>
    %287 = vector.extract_strided_slice %278 {offsets = [0, 128], sizes = [16, 128], strides = [1, 1]} : vector<16x256xf32> to vector<16x128xf32>
    %cst_123 = arith.constant 5.000000e-01 : f32
    %288 = vector.broadcast %cst_123 : f32 to vector<16x128xf32>
    %289 = arith.mulf %288, %287 : vector<16x128xf32>
    %290 = math.tanh %289 : vector<16x128xf32>
    %cst_124 = arith.constant 5.000000e-01 : f32
    %291 = vector.broadcast %cst_124 : f32 to vector<16x128xf32>
    %292 = arith.mulf %291, %290 : vector<16x128xf32>
    %cst_125 = arith.constant 5.000000e-01 : f32
    %293 = vector.broadcast %cst_125 : f32 to vector<16x128xf32>
    %294 = arith.addf %292, %293 : vector<16x128xf32>
    %295 = arith.index_cast %c4_i32_116 : i32 to index
    %c0_126 = arith.constant 0 : index
    %c256_127 = arith.constant 256 : index
    %296 = vector.load %arg7[%295, %c0_126, %c256_127] : memref<8x16x512xf32, #tpu.memory_space<vmem>>, vector<1x16x256xf32>
    %297 = vector.shape_cast %296 : vector<1x16x256xf32> to vector<16x256xf32>
    %cst_128 = arith.constant dense<0.000000e+00> : vector<16x256xf32>
    %298 = tpu.matmul %273, %7, %cst_128 {dimension_numbers = #tpu.dot_dimension_numbers<[1], [0], [0], [1], [0, 0, 1, 1], [], []>} : vector<16x128xbf16>, vector<128x256xbf16>, vector<16x256xf32> -> vector<16x256xf32>
    %299 = arith.addf %297, %298 : vector<16x256xf32>
    %300 = vector.extract_strided_slice %299 {offsets = [0, 0], sizes = [16, 128], strides = [1, 1]} : vector<16x256xf32> to vector<16x128xf32>
    %301 = math.tanh %300 : vector<16x128xf32>
    %302 = vector.extract_strided_slice %299 {offsets = [0, 128], sizes = [16, 128], strides = [1, 1]} : vector<16x256xf32> to vector<16x128xf32>
    %cst_129 = arith.constant 5.000000e-01 : f32
    %303 = vector.broadcast %cst_129 : f32 to vector<16x128xf32>
    %304 = arith.mulf %303, %302 : vector<16x128xf32>
    %305 = math.tanh %304 : vector<16x128xf32>
    %cst_130 = arith.constant 5.000000e-01 : f32
    %306 = vector.broadcast %cst_130 : f32 to vector<16x128xf32>
    %307 = arith.mulf %306, %305 : vector<16x128xf32>
    %cst_131 = arith.constant 5.000000e-01 : f32
    %308 = vector.broadcast %cst_131 : f32 to vector<16x128xf32>
    %309 = arith.addf %307, %308 : vector<16x128xf32>
    %310 = arith.mulf %294, %272 : vector<16x128xf32>
    %311 = arith.mulf %286, %301 : vector<16x128xf32>
    %312 = arith.addf %310, %311 : vector<16x128xf32>
    %313 = math.tanh %312 : vector<16x128xf32>
    %314 = arith.mulf %309, %313 : vector<16x128xf32>
    %315 = arith.cmpi slt, %c4_i32_116, %90 : i32
    %316 = arith.select %315, %314, %271 : vector<16x128xf32>
    %317 = arith.select %315, %312, %272 : vector<16x128xf32>
    %c5_i32_132 = arith.constant 5 : i32
    %318 = arith.truncf %316 : vector<16x128xf32> to vector<16x128xbf16>
    %319 = arith.index_cast %c5_i32_132 : i32 to index
    %c0_133 = arith.constant 0 : index
    %c0_134 = arith.constant 0 : index
    %320 = vector.load %arg7[%319, %c0_133, %c0_134] : memref<8x16x512xf32, #tpu.memory_space<vmem>>, vector<1x16x256xf32>
    %321 = vector.shape_cast %320 : vector<1x16x256xf32> to vector<16x256xf32>
    %cst_135 = arith.constant dense<0.000000e+00> : vector<16x256xf32>
    %322 = tpu.matmul %318, %6, %cst_135 {dimension_numbers = #tpu.dot_dimension_numbers<[1], [0], [0], [1], [0, 0, 1, 1], [], []>} : vector<16x128xbf16>, vector<128x256xbf16>, vector<16x256xf32> -> vector<16x256xf32>
    %323 = arith.addf %321, %322 : vector<16x256xf32>
    %324 = vector.extract_strided_slice %323 {offsets = [0, 0], sizes = [16, 128], strides = [1, 1]} : vector<16x256xf32> to vector<16x128xf32>
    %cst_136 = arith.constant 5.000000e-01 : f32
    %325 = vector.broadcast %cst_136 : f32 to vector<16x128xf32>
    %326 = arith.mulf %325, %324 : vector<16x128xf32>
    %327 = math.tanh %326 : vector<16x128xf32>
    %cst_137 = arith.constant 5.000000e-01 : f32
    %328 = vector.broadcast %cst_137 : f32 to vector<16x128xf32>
    %329 = arith.mulf %328, %327 : vector<16x128xf32>
    %cst_138 = arith.constant 5.000000e-01 : f32
    %330 = vector.broadcast %cst_138 : f32 to vector<16x128xf32>
    %331 = arith.addf %329, %330 : vector<16x128xf32>
    %332 = vector.extract_strided_slice %323 {offsets = [0, 128], sizes = [16, 128], strides = [1, 1]} : vector<16x256xf32> to vector<16x128xf32>
    %cst_139 = arith.constant 5.000000e-01 : f32
    %333 = vector.broadcast %cst_139 : f32 to vector<16x128xf32>
    %334 = arith.mulf %333, %332 : vector<16x128xf32>
    %335 = math.tanh %334 : vector<16x128xf32>
    %cst_140 = arith.constant 5.000000e-01 : f32
    %336 = vector.broadcast %cst_140 : f32 to vector<16x128xf32>
    %337 = arith.mulf %336, %335 : vector<16x128xf32>
    %cst_141 = arith.constant 5.000000e-01 : f32
    %338 = vector.broadcast %cst_141 : f32 to vector<16x128xf32>
    %339 = arith.addf %337, %338 : vector<16x128xf32>
    %340 = arith.index_cast %c5_i32_132 : i32 to index
    %c0_142 = arith.constant 0 : index
    %c256_143 = arith.constant 256 : index
    %341 = vector.load %arg7[%340, %c0_142, %c256_143] : memref<8x16x512xf32, #tpu.memory_space<vmem>>, vector<1x16x256xf32>
    %342 = vector.shape_cast %341 : vector<1x16x256xf32> to vector<16x256xf32>
    %cst_144 = arith.constant dense<0.000000e+00> : vector<16x256xf32>
    %343 = tpu.matmul %318, %7, %cst_144 {dimension_numbers = #tpu.dot_dimension_numbers<[1], [0], [0], [1], [0, 0, 1, 1], [], []>} : vector<16x128xbf16>, vector<128x256xbf16>, vector<16x256xf32> -> vector<16x256xf32>
    %344 = arith.addf %342, %343 : vector<16x256xf32>
    %345 = vector.extract_strided_slice %344 {offsets = [0, 0], sizes = [16, 128], strides = [1, 1]} : vector<16x256xf32> to vector<16x128xf32>
    %346 = math.tanh %345 : vector<16x128xf32>
    %347 = vector.extract_strided_slice %344 {offsets = [0, 128], sizes = [16, 128], strides = [1, 1]} : vector<16x256xf32> to vector<16x128xf32>
    %cst_145 = arith.constant 5.000000e-01 : f32
    %348 = vector.broadcast %cst_145 : f32 to vector<16x128xf32>
    %349 = arith.mulf %348, %347 : vector<16x128xf32>
    %350 = math.tanh %349 : vector<16x128xf32>
    %cst_146 = arith.constant 5.000000e-01 : f32
    %351 = vector.broadcast %cst_146 : f32 to vector<16x128xf32>
    %352 = arith.mulf %351, %350 : vector<16x128xf32>
    %cst_147 = arith.constant 5.000000e-01 : f32
    %353 = vector.broadcast %cst_147 : f32 to vector<16x128xf32>
    %354 = arith.addf %352, %353 : vector<16x128xf32>
    %355 = arith.mulf %339, %317 : vector<16x128xf32>
    %356 = arith.mulf %331, %346 : vector<16x128xf32>
    %357 = arith.addf %355, %356 : vector<16x128xf32>
    %358 = math.tanh %357 : vector<16x128xf32>
    %359 = arith.mulf %354, %358 : vector<16x128xf32>
    %360 = arith.cmpi slt, %c5_i32_132, %90 : i32
    %361 = arith.select %360, %359, %316 : vector<16x128xf32>
    %362 = arith.select %360, %357, %317 : vector<16x128xf32>
    %c6_i32_148 = arith.constant 6 : i32
    %363 = arith.truncf %361 : vector<16x128xf32> to vector<16x128xbf16>
    %364 = arith.index_cast %c6_i32_148 : i32 to index
    %c0_149 = arith.constant 0 : index
    %c0_150 = arith.constant 0 : index
    %365 = vector.load %arg7[%364, %c0_149, %c0_150] : memref<8x16x512xf32, #tpu.memory_space<vmem>>, vector<1x16x256xf32>
    %366 = vector.shape_cast %365 : vector<1x16x256xf32> to vector<16x256xf32>
    %cst_151 = arith.constant dense<0.000000e+00> : vector<16x256xf32>
    %367 = tpu.matmul %363, %6, %cst_151 {dimension_numbers = #tpu.dot_dimension_numbers<[1], [0], [0], [1], [0, 0, 1, 1], [], []>} : vector<16x128xbf16>, vector<128x256xbf16>, vector<16x256xf32> -> vector<16x256xf32>
    %368 = arith.addf %366, %367 : vector<16x256xf32>
    %369 = vector.extract_strided_slice %368 {offsets = [0, 0], sizes = [16, 128], strides = [1, 1]} : vector<16x256xf32> to vector<16x128xf32>
    %cst_152 = arith.constant 5.000000e-01 : f32
    %370 = vector.broadcast %cst_152 : f32 to vector<16x128xf32>
    %371 = arith.mulf %370, %369 : vector<16x128xf32>
    %372 = math.tanh %371 : vector<16x128xf32>
    %cst_153 = arith.constant 5.000000e-01 : f32
    %373 = vector.broadcast %cst_153 : f32 to vector<16x128xf32>
    %374 = arith.mulf %373, %372 : vector<16x128xf32>
    %cst_154 = arith.constant 5.000000e-01 : f32
    %375 = vector.broadcast %cst_154 : f32 to vector<16x128xf32>
    %376 = arith.addf %374, %375 : vector<16x128xf32>
    %377 = vector.extract_strided_slice %368 {offsets = [0, 128], sizes = [16, 128], strides = [1, 1]} : vector<16x256xf32> to vector<16x128xf32>
    %cst_155 = arith.constant 5.000000e-01 : f32
    %378 = vector.broadcast %cst_155 : f32 to vector<16x128xf32>
    %379 = arith.mulf %378, %377 : vector<16x128xf32>
    %380 = math.tanh %379 : vector<16x128xf32>
    %cst_156 = arith.constant 5.000000e-01 : f32
    %381 = vector.broadcast %cst_156 : f32 to vector<16x128xf32>
    %382 = arith.mulf %381, %380 : vector<16x128xf32>
    %cst_157 = arith.constant 5.000000e-01 : f32
    %383 = vector.broadcast %cst_157 : f32 to vector<16x128xf32>
    %384 = arith.addf %382, %383 : vector<16x128xf32>
    %385 = arith.index_cast %c6_i32_148 : i32 to index
    %c0_158 = arith.constant 0 : index
    %c256_159 = arith.constant 256 : index
    %386 = vector.load %arg7[%385, %c0_158, %c256_159] : memref<8x16x512xf32, #tpu.memory_space<vmem>>, vector<1x16x256xf32>
    %387 = vector.shape_cast %386 : vector<1x16x256xf32> to vector<16x256xf32>
    %cst_160 = arith.constant dense<0.000000e+00> : vector<16x256xf32>
    %388 = tpu.matmul %363, %7, %cst_160 {dimension_numbers = #tpu.dot_dimension_numbers<[1], [0], [0], [1], [0, 0, 1, 1], [], []>} : vector<16x128xbf16>, vector<128x256xbf16>, vector<16x256xf32> -> vector<16x256xf32>
    %389 = arith.addf %387, %388 : vector<16x256xf32>
    %390 = vector.extract_strided_slice %389 {offsets = [0, 0], sizes = [16, 128], strides = [1, 1]} : vector<16x256xf32> to vector<16x128xf32>
    %391 = math.tanh %390 : vector<16x128xf32>
    %392 = vector.extract_strided_slice %389 {offsets = [0, 128], sizes = [16, 128], strides = [1, 1]} : vector<16x256xf32> to vector<16x128xf32>
    %cst_161 = arith.constant 5.000000e-01 : f32
    %393 = vector.broadcast %cst_161 : f32 to vector<16x128xf32>
    %394 = arith.mulf %393, %392 : vector<16x128xf32>
    %395 = math.tanh %394 : vector<16x128xf32>
    %cst_162 = arith.constant 5.000000e-01 : f32
    %396 = vector.broadcast %cst_162 : f32 to vector<16x128xf32>
    %397 = arith.mulf %396, %395 : vector<16x128xf32>
    %cst_163 = arith.constant 5.000000e-01 : f32
    %398 = vector.broadcast %cst_163 : f32 to vector<16x128xf32>
    %399 = arith.addf %397, %398 : vector<16x128xf32>
    %400 = arith.mulf %384, %362 : vector<16x128xf32>
    %401 = arith.mulf %376, %391 : vector<16x128xf32>
    %402 = arith.addf %400, %401 : vector<16x128xf32>
    %403 = math.tanh %402 : vector<16x128xf32>
    %404 = arith.mulf %399, %403 : vector<16x128xf32>
    %405 = arith.cmpi slt, %c6_i32_148, %90 : i32
    %406 = arith.select %405, %404, %361 : vector<16x128xf32>
    %407 = arith.select %405, %402, %362 : vector<16x128xf32>
    %c7_i32_164 = arith.constant 7 : i32
    %408 = arith.truncf %406 : vector<16x128xf32> to vector<16x128xbf16>
    %409 = arith.index_cast %c7_i32_164 : i32 to index
    %c0_165 = arith.constant 0 : index
    %c0_166 = arith.constant 0 : index
    %410 = vector.load %arg7[%409, %c0_165, %c0_166] : memref<8x16x512xf32, #tpu.memory_space<vmem>>, vector<1x16x256xf32>
    %411 = vector.shape_cast %410 : vector<1x16x256xf32> to vector<16x256xf32>
    %cst_167 = arith.constant dense<0.000000e+00> : vector<16x256xf32>
    %412 = tpu.matmul %408, %6, %cst_167 {dimension_numbers = #tpu.dot_dimension_numbers<[1], [0], [0], [1], [0, 0, 1, 1], [], []>} : vector<16x128xbf16>, vector<128x256xbf16>, vector<16x256xf32> -> vector<16x256xf32>
    %413 = arith.addf %411, %412 : vector<16x256xf32>
    %414 = vector.extract_strided_slice %413 {offsets = [0, 0], sizes = [16, 128], strides = [1, 1]} : vector<16x256xf32> to vector<16x128xf32>
    %cst_168 = arith.constant 5.000000e-01 : f32
    %415 = vector.broadcast %cst_168 : f32 to vector<16x128xf32>
    %416 = arith.mulf %415, %414 : vector<16x128xf32>
    %417 = math.tanh %416 : vector<16x128xf32>
    %cst_169 = arith.constant 5.000000e-01 : f32
    %418 = vector.broadcast %cst_169 : f32 to vector<16x128xf32>
    %419 = arith.mulf %418, %417 : vector<16x128xf32>
    %cst_170 = arith.constant 5.000000e-01 : f32
    %420 = vector.broadcast %cst_170 : f32 to vector<16x128xf32>
    %421 = arith.addf %419, %420 : vector<16x128xf32>
    %422 = vector.extract_strided_slice %413 {offsets = [0, 128], sizes = [16, 128], strides = [1, 1]} : vector<16x256xf32> to vector<16x128xf32>
    %cst_171 = arith.constant 5.000000e-01 : f32
    %423 = vector.broadcast %cst_171 : f32 to vector<16x128xf32>
    %424 = arith.mulf %423, %422 : vector<16x128xf32>
    %425 = math.tanh %424 : vector<16x128xf32>
    %cst_172 = arith.constant 5.000000e-01 : f32
    %426 = vector.broadcast %cst_172 : f32 to vector<16x128xf32>
    %427 = arith.mulf %426, %425 : vector<16x128xf32>
    %cst_173 = arith.constant 5.000000e-01 : f32
    %428 = vector.broadcast %cst_173 : f32 to vector<16x128xf32>
    %429 = arith.addf %427, %428 : vector<16x128xf32>
    %430 = arith.index_cast %c7_i32_164 : i32 to index
    %c0_174 = arith.constant 0 : index
    %c256_175 = arith.constant 256 : index
    %431 = vector.load %arg7[%430, %c0_174, %c256_175] : memref<8x16x512xf32, #tpu.memory_space<vmem>>, vector<1x16x256xf32>
    %432 = vector.shape_cast %431 : vector<1x16x256xf32> to vector<16x256xf32>
    %cst_176 = arith.constant dense<0.000000e+00> : vector<16x256xf32>
    %433 = tpu.matmul %408, %7, %cst_176 {dimension_numbers = #tpu.dot_dimension_numbers<[1], [0], [0], [1], [0, 0, 1, 1], [], []>} : vector<16x128xbf16>, vector<128x256xbf16>, vector<16x256xf32> -> vector<16x256xf32>
    %434 = arith.addf %432, %433 : vector<16x256xf32>
    %435 = vector.extract_strided_slice %434 {offsets = [0, 0], sizes = [16, 128], strides = [1, 1]} : vector<16x256xf32> to vector<16x128xf32>
    %436 = math.tanh %435 : vector<16x128xf32>
    %437 = vector.extract_strided_slice %434 {offsets = [0, 128], sizes = [16, 128], strides = [1, 1]} : vector<16x256xf32> to vector<16x128xf32>
    %cst_177 = arith.constant 5.000000e-01 : f32
    %438 = vector.broadcast %cst_177 : f32 to vector<16x128xf32>
    %439 = arith.mulf %438, %437 : vector<16x128xf32>
    %440 = math.tanh %439 : vector<16x128xf32>
    %cst_178 = arith.constant 5.000000e-01 : f32
    %441 = vector.broadcast %cst_178 : f32 to vector<16x128xf32>
    %442 = arith.mulf %441, %440 : vector<16x128xf32>
    %cst_179 = arith.constant 5.000000e-01 : f32
    %443 = vector.broadcast %cst_179 : f32 to vector<16x128xf32>
    %444 = arith.addf %442, %443 : vector<16x128xf32>
    %445 = arith.mulf %429, %407 : vector<16x128xf32>
    %446 = arith.mulf %421, %436 : vector<16x128xf32>
    %447 = arith.addf %445, %446 : vector<16x128xf32>
    %448 = math.tanh %447 : vector<16x128xf32>
    %449 = arith.mulf %444, %448 : vector<16x128xf32>
    %450 = arith.cmpi slt, %c7_i32_164, %90 : i32
    %451 = arith.select %450, %449, %406 : vector<16x128xf32>
    %452 = arith.select %450, %447, %407 : vector<16x128xf32>
    %c8_i32_180 = arith.constant 8 : i32
    %c0_181 = arith.constant 0 : index
    %c0_182 = arith.constant 0 : index
    %453 = vector.load %arg8[%c0_181, %c0_182] : memref<16x128xf32, #tpu.memory_space<vmem>>, vector<16x128xf32>
    tpu.vector_store %arg8[%c0_181, %c0_182], %451 {strides = array<i32>} : memref<16x128xf32, #tpu.memory_space<vmem>>, vector<16x128xf32>,
    %c0_183 = arith.constant 0 : index
    %c0_184 = arith.constant 0 : index
    %454 = vector.load %arg9[%c0_183, %c0_184] : memref<16x128xf32, #tpu.memory_space<vmem>>, vector<16x128xf32>
    tpu.vector_store %arg9[%c0_183, %c0_184], %452 {strides = array<i32>} : memref<16x128xf32, #tpu.memory_space<vmem>>, vector<16x128xf32>,
    %c0_i32_185 = arith.constant 0 : i32
    %455 = arith.cmpi eq, %arg1, %c0_i32_185 : i32
    %456 = arith.extui %455 : i1 to i32
    %c0_i32_186 = arith.constant 0 : i32
    %457 = arith.cmpi ne, %456, %c0_i32_186 : i32
    scf.if %457 {
      %c0_187 = arith.constant 0 : index
      %c0_188 = arith.constant 0 : index
      %458 = vector.load %arg6[%c0_187, %c0_188] : memref<16x128xf32, #tpu.memory_space<vmem>>, vector<16x128xf32>
      tpu.vector_store %arg6[%c0_187, %c0_188], %451 {strides = array<i32>} : memref<16x128xf32, #tpu.memory_space<vmem>>, vector<16x128xf32>,
    } else {
    }
    return
  }
  func.func @transform_0(%arg0: i32, %arg1: i32) -> (i32, i32, i32) {
    %c0_i32 = arith.constant 0 : i32
    %c0_i32_0 = arith.constant 0 : i32
    return %arg1, %arg0, %c0_i32 : i32, i32, i32
  }
  func.func @transform_1(%arg0: i32, %arg1: i32) -> (i32, i32) {
    %c0_i32 = arith.constant 0 : i32
    %c0_i32_0 = arith.constant 0 : i32
    %c0_i32_1 = arith.constant 0 : i32
    return %c0_i32, %c0_i32_0 : i32, i32
  }
  func.func @transform_2(%arg0: i32, %arg1: i32) -> (i32, i32) {
    %c0_i32 = arith.constant 0 : i32
    %c0_i32_0 = arith.constant 0 : i32
    %c0_i32_1 = arith.constant 0 : i32
    return %c0_i32, %c0_i32_0 : i32, i32
  }
  func.func @transform_3(%arg0: i32, %arg1: i32) -> (i32, i32) {
    %c0_i32 = arith.constant 0 : i32
    %c0_i32_0 = arith.constant 0 : i32
    %c0_i32_1 = arith.constant 0 : i32
    return %c0_i32, %c0_i32_0 : i32, i32
  }
  func.func @transform_4(%arg0: i32, %arg1: i32) -> (i32, i32) {
    %c0_i32 = arith.constant 0 : i32
    %c0_i32_0 = arith.constant 0 : i32
    return %arg0, %c0_i32 : i32, i32
  }
}

</mosaic_0001>

<llo_original>
// kernel: lstm_forward.1
$region0: #{lstm_forward.1}
  #allocation0 [shape = 'u32[]', space=smem, size = 0x4, offset = 0x4, fixed_abs, tag = 'smem constant byte address 0x4 - core index']
  #allocation1 [shape = 'u32[144,128]{1,0:T(1,128)}', space=vmem, size = 0x12000, scoped, tag = 'internal scratch']
  #allocation2 [shape = 'f32[8,16,512]{2,1,0:T(8,128)}', space=vmem, size = 0x40000, scoped, tag = 'scratch operand']
  #allocation3 [shape = 'f32[16,128]{1,0:T(8,128)}', space=vmem, size = 0x2000, scoped, tag = 'scratch operand']
  #allocation4 [shape = 'f32[16,128]{1,0:T(8,128)}', space=vmem, size = 0x2000, scoped, tag = 'scratch operand']
  %s0 = inlined_call_operand.vmem [shape: bf16[8,16,384], index: 0, kind: input, shape index: {}]
  %s1 = inlined_call_operand.vmem [shape: bf16[384,512], index: 1, kind: input, shape index: {}]
  %s2 = inlined_call_operand.vmem [shape: f32[1,512], index: 2, kind: input, shape index: {}]
  %s3 = inlined_call_operand.vmem [shape: bf16[128,512], index: 3, kind: input, shape index: {}]
  %s4 = inlined_call_operand.vmem [shape: f32[16,128], index: 4, kind: output, shape index: {}]
  %s5 = sld [smem:[#allocation0]]
  $region34: #{lstm_forward.1} parent=0
    _
  %s7 = ssub.s32 1, %s5
  %s8 = scalar_select 0, %s7, %s5
  // Predicated region
  $region2: #{lstm_forward.1} parent=0 // pred_check
    _
  $region3: #{lstm_forward.1} parent=0 // pred_check_branch
    %10 = sbr.rel (0) target = $region5
  $region4: #{lstm_forward.1} parent=0 // pred_region
    _
  $region5: #{lstm_forward.1} parent=0 // pred_fallthru
    _
  // Predicated region
  $region6: #{lstm_forward.1} parent=0 // pred_check
    _
  $region7: #{lstm_forward.1} parent=0 // pred_check_branch
    %12 = sbr.rel (0) target = $region9
  $region8: #{lstm_forward.1} parent=0 // pred_region
    _
  $region9: #{lstm_forward.1} parent=0 // pred_fallthru
    _
  // Predicated region
  $region10: #{lstm_forward.1} parent=0 // pred_check
    _
  $region11: #{lstm_forward.1} parent=0 // pred_check_branch
    %14 = sbr.rel (0) target = $region13
  $region12: #{lstm_forward.1} parent=0 // pred_region
    _
  $region13: #{lstm_forward.1} parent=0 // pred_fallthru
    _
  // Predicated region
  $region14: #{lstm_forward.1} parent=0 // pred_check
    _
  $region15: #{lstm_forward.1} parent=0 // pred_check_branch
    %16 = sbr.rel (0) target = $region17
  $region16: #{lstm_forward.1} parent=0 // pred_region
    _
  $region17: #{lstm_forward.1} parent=0 // pred_fallthru
    _
  %p18 = scmp.eq.s32.totalorder 0, 0
  // Predicated region
  $region18: #{lstm_forward.1} parent=0 // pred_check
    %p19 = pneg %p18
  $region19: #{lstm_forward.1} parent=0 // pred_check_branch
    %21 = sbr.rel (%p19) target = $region21
  $region20: #{lstm_forward.1} parent=0 // pred_region
    %22 = vst [vmem:[#allocation3] sm:$0xff] 0.0
    %23 = vst [vmem:[#allocation3 + $0x8] sm:$0xff] 0.0
    %24 = vst [vmem:[#allocation4] sm:$0xff] 0.0
    %25 = vst [vmem:[#allocation4 + $0x8] sm:$0xff] 0.0
  $region21: #{lstm_forward.1} parent=0 // pred_fallthru
    _
  %v26 = vld [vmem:[%s1] sm:$0xff]
  %v27 = vld [vmem:[%s1 + $0x8] sm:$0xff]
  %v28 = vld [vmem:[%s1 + $0x10] sm:$0xff]
  %v29 = vld [vmem:[%s1 + $0x18] sm:$0xff]
  %v30 = vld [vmem:[%s1 + $0x20] sm:$0xff]
  %v31 = vld [vmem:[%s1 + $0x28] sm:$0xff]
  %v32 = vld [vmem:[%s1 + $0x30] sm:$0xff]
  %v33 = vld [vmem:[%s1 + $0x38] sm:$0xff]
  %v34 = vld [vmem:[%s1 + $0x40] sm:$0xff]
  %v35 = vld [vmem:[%s1 + $0x48] sm:$0xff]
  %v36 = vld [vmem:[%s1 + $0x50] sm:$0xff]
  %v37 = vld [vmem:[%s1 + $0x58] sm:$0xff]
  %v38 = vld [vmem:[%s1 + $0x60] sm:$0xff]
  %v39 = vld [vmem:[%s1 + $0x68] sm:$0xff]
  %v40 = vld [vmem:[%s1 + $0x70] sm:$0xff]
  %v41 = vld [vmem:[%s1 + $0x78] sm:$0xff]
  %v42 = vld [vmem:[%s1 + $0x80] sm:$0xff]
  %v43 = vld [vmem:[%s1 + $0x88] sm:$0xff]
  %v44 = vld [vmem:[%s1 + $0x90] sm:$0xff]
  %v45 = vld [vmem:[%s1 + $0x98] sm:$0xff]
  %v46 = vld [vmem:[%s1 + $0xa0] sm:$0xff]
  %v47 = vld [vmem:[%s1 + $0xa8] sm:$0xff]
  %v48 = vld [vmem:[%s1 + $0xb0] sm:$0xff]
  %v49 = vld [vmem:[%s1 + $0xb8] sm:$0xff]
  %v50 = vld [vmem:[%s1 + $0xc0] sm:$0xff]
  %v51 = vld [vmem:[%s1 + $0xc8] sm:$0xff]
  %v52 = vld [vmem:[%s1 + $0xd0] sm:$0xff]
  %v53 = vld [vmem:[%s1 + $0xd8] sm:$0xff]
  %v54 = vld [vmem:[%s1 + $0xe0] sm:$0xff]
  %v55 = vld [vmem:[%s1 + $0xe8] sm:$0xff]
  %v56 = vld [vmem:[%s1 + $0xf0] sm:$0xff]
  %v57 = vld [vmem:[%s1 + $0xf8] sm:$0xff]
  %v58 = vld [vmem:[%s1 + $0x100] sm:$0xff]
  %v59 = vld [vmem:[%s1 + $0x108] sm:$0xff]
  %v60 = vld [vmem:[%s1 + $0x110] sm:$0xff]
  %v61 = vld [vmem:[%s1 + $0x118] sm:$0xff]
  %v62 = vld [vmem:[%s1 + $0x120] sm:$0xff]
  %v63 = vld [vmem:[%s1 + $0x128] sm:$0xff]
  %v64 = vld [vmem:[%s1 + $0x130] sm:$0xff]
  %v65 = vld [vmem:[%s1 + $0x138] sm:$0xff]
  %v66 = vld [vmem:[%s1 + $0x140] sm:$0xff]
  %v67 = vld [vmem:[%s1 + $0x148] sm:$0xff]
  %v68 = vld [vmem:[%s1 + $0x150] sm:$0xff]
  %v69 = vld [vmem:[%s1 + $0x158] sm:$0xff]
  %v70 = vld [vmem:[%s1 + $0x160] sm:$0xff]
  %v71 = vld [vmem:[%s1 + $0x168] sm:$0xff]
  %v72 = vld [vmem:[%s1 + $0x170] sm:$0xff]
  %v73 = vld [vmem:[%s1 + $0x178] sm:$0xff]
  %v74 = vld [vmem:[%s1 + $0x180] sm:$0xff]
  %v75 = vld [vmem:[%s1 + $0x188] sm:$0xff]
  %v76 = vld [vmem:[%s1 + $0x190] sm:$0xff]
  %v77 = vld [vmem:[%s1 + $0x198] sm:$0xff]
  %v78 = vld [vmem:[%s1 + $0x1a0] sm:$0xff]
  %v79 = vld [vmem:[%s1 + $0x1a8] sm:$0xff]
  %v80 = vld [vmem:[%s1 + $0x1b0] sm:$0xff]
  %v81 = vld [vmem:[%s1 + $0x1b8] sm:$0xff]
  %v82 = vld [vmem:[%s1 + $0x1c0] sm:$0xff]
  %v83 = vld [vmem:[%s1 + $0x1c8] sm:$0xff]
  %v84 = vld [vmem:[%s1 + $0x1d0] sm:$0xff]
  %v85 = vld [vmem:[%s1 + $0x1d8] sm:$0xff]
  %v86 = vld [vmem:[%s1 + $0x1e0] sm:$0xff]
  %v87 = vld [vmem:[%s1 + $0x1e8] sm:$0xff]
  %v88 = vld [vmem:[%s1 + $0x1f0] sm:$0xff]
  %v89 = vld [vmem:[%s1 + $0x1f8] sm:$0xff]
  %v90 = vld [vmem:[%s1 + $0x200] sm:$0xff]
  %v91 = vld [vmem:[%s1 + $0x208] sm:$0xff]
  %v92 = vld [vmem:[%s1 + $0x210] sm:$0xff]
  %v93 = vld [vmem:[%s1 + $0x218] sm:$0xff]
  %v94 = vld [vmem:[%s1 + $0x220] sm:$0xff]
  %v95 = vld [vmem:[%s1 + $0x228] sm:$0xff]
  %v96 = vld [vmem:[%s1 + $0x230] sm:$0xff]
  %v97 = vld [vmem:[%s1 + $0x238] sm:$0xff]
  %v98 = vld [vmem:[%s1 + $0x240] sm:$0xff]
  %v99 = vld [vmem:[%s1 + $0x248] sm:$0xff]
  %v100 = vld [vmem:[%s1 + $0x250] sm:$0xff]
  %v101 = vld [vmem:[%s1 + $0x258] sm:$0xff]
  %v102 = vld [vmem:[%s1 + $0x260] sm:$0xff]
  %v103 = vld [vmem:[%s1 + $0x268] sm:$0xff]
  %v104 = vld [vmem:[%s1 + $0x270] sm:$0xff]
  %v105 = vld [vmem:[%s1 + $0x278] sm:$0xff]
  %v106 = vld [vmem:[%s1 + $0x280] sm:$0xff]
  %v107 = vld [vmem:[%s1 + $0x288] sm:$0xff]
  %v108 = vld [vmem:[%s1 + $0x290] sm:$0xff]
  %v109 = vld [vmem:[%s1 + $0x298] sm:$0xff]
  %v110 = vld [vmem:[%s1 + $0x2a0] sm:$0xff]
  %v111 = vld [vmem:[%s1 + $0x2a8] sm:$0xff]
  %v112 = vld [vmem:[%s1 + $0x2b0] sm:$0xff]
  %v113 = vld [vmem:[%s1 + $0x2b8] sm:$0xff]
  %v114 = vld [vmem:[%s1 + $0x2c0] sm:$0xff]
  %v115 = vld [vmem:[%s1 + $0x2c8] sm:$0xff]
  %v116 = vld [vmem:[%s1 + $0x2d0] sm:$0xff]
  %v117 = vld [vmem:[%s1 + $0x2d8] sm:$0xff]
  %v118 = vld [vmem:[%s1 + $0x2e0] sm:$0xff]
  %v119 = vld [vmem:[%s1 + $0x2e8] sm:$0xff]
  %v120 = vld [vmem:[%s1 + $0x2f0] sm:$0xff]
  %v121 = vld [vmem:[%s1 + $0x2f8] sm:$0xff]
  %v122 = vld [vmem:[%s2] sm:$0xf]
  %v123 = vld [vmem:[%s3] sm:$0xff]
  %v124 = vld [vmem:[%s3 + $0x8] sm:$0xff]
  %v125 = vld [vmem:[%s3 + $0x10] sm:$0xff]
  %v126 = vld [vmem:[%s3 + $0x18] sm:$0xff]
  %v127 = vld [vmem:[%s3 + $0x20] sm:$0xff]
  %v128 = vld [vmem:[%s3 + $0x28] sm:$0xff]
  %v129 = vld [vmem:[%s3 + $0x30] sm:$0xff]
  %v130 = vld [vmem:[%s3 + $0x38] sm:$0xff]
  %v131 = vld [vmem:[%s3 + $0x40] sm:$0xff]
  %v132 = vld [vmem:[%s3 + $0x48] sm:$0xff]
  %v133 = vld [vmem:[%s3 + $0x50] sm:$0xff]
  %v134 = vld [vmem:[%s3 + $0x58] sm:$0xff]
  %v135 = vld [vmem:[%s3 + $0x60] sm:$0xff]
  %v136 = vld [vmem:[%s3 + $0x68] sm:$0xff]
  %v137 = vld [vmem:[%s3 + $0x70] sm:$0xff]
  %v138 = vld [vmem:[%s3 + $0x78] sm:$0xff]
  %v139 = vld [vmem:[%s3 + $0x80] sm:$0xff]
  %v140 = vld [vmem:[%s3 + $0x88] sm:$0xff]
  %v141 = vld [vmem:[%s3 + $0x90] sm:$0xff]
  %v142 = vld [vmem:[%s3 + $0x98] sm:$0xff]
  %v143 = vld [vmem:[%s3 + $0xa0] sm:$0xff]
  %v144 = vld [vmem:[%s3 + $0xa8] sm:$0xff]
  %v145 = vld [vmem:[%s3 + $0xb0] sm:$0xff]
  %v146 = vld [vmem:[%s3 + $0xb8] sm:$0xff]
  %v147 = vld [vmem:[%s3 + $0xc0] sm:$0xff]
  %v148 = vld [vmem:[%s3 + $0xc8] sm:$0xff]
  %v149 = vld [vmem:[%s3 + $0xd0] sm:$0xff]
  %v150 = vld [vmem:[%s3 + $0xd8] sm:$0xff]
  %v151 = vld [vmem:[%s3 + $0xe0] sm:$0xff]
  %v152 = vld [vmem:[%s3 + $0xe8] sm:$0xff]
  %v153 = vld [vmem:[%s3 + $0xf0] sm:$0xff]
  %v154 = vld [vmem:[%s3 + $0xf8] sm:$0xff]
  %v155 = vld [vmem:[%s0] sm:$0xff]
  %v156 = vld [vmem:[%s0 + $0x8] sm:$0xf]
  %v157 = vld [vmem:[%s0 + $0xc] sm:$0xff]
  %v158 = vld [vmem:[%s0 + $0x14] sm:$0xf]
  %v160 = vlaneseq
  %v161 = vshrl.u32 %v160, 7
  %v162 = vsub.s32 0, %v161
  %v163 = vrot.slane %v122, %v162
  %v164 = vlaneseq
  %v165 = vshrl.u32 %v164, 7
  %v166 = vsub.s32 1, %v165
  %v167 = vrot.slane %v122, %v166
  %v168 = vlaneseq
  %v169 = vshrl.u32 %v168, 7
  %v170 = vsub.s32 2, %v169
  %v171 = vrot.slane %v122, %v170
  %v172 = vlaneseq
  %v173 = vshrl.u32 %v172, 7
  %v174 = vsub.s32 3, %v173
  %v175 = vrot.slane %v122, %v174
  %v184 = vunpack.c.l.b16 %v155
  %v185 = vunpack.c.h.b16 %v155
  %v186 = vunpack.c.l.b16 %v156
  %v187 = vunpack.c.l.b16 %v157
  %v188 = vunpack.c.h.b16 %v157
  %v189 = vunpack.c.l.b16 %v158
  %v190 = vpack.c.b16 %v187, %v184
  %v191 = vpack.c.b16 %v188, %v185
  %v192 = vpack.c.b16 %v189, %v186
  %v292 = vunpack.c.l.b16 %v26
  %v293 = vunpack.c.h.b16 %v26
  %v294 = vunpack.c.l.b16 %v27
  %v295 = vunpack.c.h.b16 %v27
  %v296 = vunpack.c.l.b16 %v28
  %v297 = vunpack.c.h.b16 %v28
  %v298 = vunpack.c.l.b16 %v29
  %v299 = vunpack.c.h.b16 %v29
  %v300 = vunpack.c.l.b16 %v30
  %v301 = vunpack.c.h.b16 %v30
  %v302 = vunpack.c.l.b16 %v31
  %v303 = vunpack.c.h.b16 %v31
  %v304 = vunpack.c.l.b16 %v32
  %v305 = vunpack.c.h.b16 %v32
  %v306 = vunpack.c.l.b16 %v33
  %v307 = vunpack.c.h.b16 %v33
  %v308 = vunpack.c.l.b16 %v34
  %v309 = vunpack.c.h.b16 %v34
  %v310 = vunpack.c.l.b16 %v35
  %v311 = vunpack.c.h.b16 %v35
  %v312 = vunpack.c.l.b16 %v36
  %v313 = vunpack.c.h.b16 %v36
  %v314 = vunpack.c.l.b16 %v37
  %v315 = vunpack.c.h.b16 %v37
  %v316 = vunpack.c.l.b16 %v38
  %v317 = vunpack.c.h.b16 %v38
  %v318 = vunpack.c.l.b16 %v39
  %v319 = vunpack.c.h.b16 %v39
  %v320 = vunpack.c.l.b16 %v40
  %v321 = vunpack.c.h.b16 %v40
  %v322 = vunpack.c.l.b16 %v41
  %v323 = vunpack.c.h.b16 %v41
  %v324 = vunpack.c.l.b16 %v42
  %v325 = vunpack.c.h.b16 %v42
  %v326 = vunpack.c.l.b16 %v43
  %v327 = vunpack.c.h.b16 %v43
  %v328 = vunpack.c.l.b16 %v44
  %v329 = vunpack.c.h.b16 %v44
  %v330 = vunpack.c.l.b16 %v45
  %v331 = vunpack.c.h.b16 %v45
  %v332 = vunpack.c.l.b16 %v46
  %v333 = vunpack.c.h.b16 %v46
  %v334 = vunpack.c.l.b16 %v47
  %v335 = vunpack.c.h.b16 %v47
  %v336 = vunpack.c.l.b16 %v48
  %v337 = vunpack.c.h.b16 %v48
  %v338 = vunpack.c.l.b16 %v49
  %v339 = vunpack.c.h.b16 %v49
  %v340 = vunpack.c.l.b16 %v50
  %v341 = vunpack.c.h.b16 %v50
  %v342 = vunpack.c.l.b16 %v51
  %v343 = vunpack.c.h.b16 %v51
  %v344 = vunpack.c.l.b16 %v52
  %v345 = vunpack.c.h.b16 %v52
  %v346 = vunpack.c.l.b16 %v53
  %v347 = vunpack.c.h.b16 %v53
  %v348 = vunpack.c.l.b16 %v54
  %v349 = vunpack.c.h.b16 %v54
  %v350 = vunpack.c.l.b16 %v55
  %v351 = vunpack.c.h.b16 %v55
  %v352 = vunpack.c.l.b16 %v56
  %v353 = vunpack.c.h.b16 %v56
  %v354 = vunpack.c.l.b16 %v57
  %v355 = vunpack.c.h.b16 %v57
  %v356 = vunpack.c.l.b16 %v58
  %v357 = vunpack.c.h.b16 %v58
  %v358 = vunpack.c.l.b16 %v59
  %v359 = vunpack.c.h.b16 %v59
  %v360 = vunpack.c.l.b16 %v60
  %v361 = vunpack.c.h.b16 %v60
  %v362 = vunpack.c.l.b16 %v61
  %v363 = vunpack.c.h.b16 %v61
  %v364 = vunpack.c.l.b16 %v62
  %v365 = vunpack.c.h.b16 %v62
  %v366 = vunpack.c.l.b16 %v63
  %v367 = vunpack.c.h.b16 %v63
  %v368 = vunpack.c.l.b16 %v64
  %v369 = vunpack.c.h.b16 %v64
  %v370 = vunpack.c.l.b16 %v65
  %v371 = vunpack.c.h.b16 %v65
  %v372 = vunpack.c.l.b16 %v66
  %v373 = vunpack.c.h.b16 %v66
  %v374 = vunpack.c.l.b16 %v67
  %v375 = vunpack.c.h.b16 %v67
  %v376 = vunpack.c.l.b16 %v68
  %v377 = vunpack.c.h.b16 %v68
  %v378 = vunpack.c.l.b16 %v69
  %v379 = vunpack.c.h.b16 %v69
  %v380 = vunpack.c.l.b16 %v70
  %v381 = vunpack.c.h.b16 %v70
  %v382 = vunpack.c.l.b16 %v71
  %v383 = vunpack.c.h.b16 %v71
  %v384 = vunpack.c.l.b16 %v72
  %v385 = vunpack.c.h.b16 %v72
  %v386 = vunpack.c.l.b16 %v73
  %v387 = vunpack.c.h.b16 %v73
  %v388 = vunpack.c.l.b16 %v74
  %v389 = vunpack.c.h.b16 %v74
  %v390 = vunpack.c.l.b16 %v75
  %v391 = vunpack.c.h.b16 %v75
  %v392 = vunpack.c.l.b16 %v76
  %v393 = vunpack.c.h.b16 %v76
  %v394 = vunpack.c.l.b16 %v77
  %v395 = vunpack.c.h.b16 %v77
  %v396 = vunpack.c.l.b16 %v78
  %v397 = vunpack.c.h.b16 %v78
  %v398 = vunpack.c.l.b16 %v79
  %v399 = vunpack.c.h.b16 %v79
  %v400 = vunpack.c.l.b16 %v80
  %v401 = vunpack.c.h.b16 %v80
  %v402 = vunpack.c.l.b16 %v81
  %v403 = vunpack.c.h.b16 %v81
  %v404 = vunpack.c.l.b16 %v82
  %v405 = vunpack.c.h.b16 %v82
  %v406 = vunpack.c.l.b16 %v83
  %v407 = vunpack.c.h.b16 %v83
  %v408 = vunpack.c.l.b16 %v84
  %v409 = vunpack.c.h.b16 %v84
  %v410 = vunpack.c.l.b16 %v85
  %v411 = vunpack.c.h.b16 %v85
  %v412 = vunpack.c.l.b16 %v86
  %v413 = vunpack.c.h.b16 %v86
  %v414 = vunpack.c.l.b16 %v87
  %v415 = vunpack.c.h.b16 %v87
  %v416 = vunpack.c.l.b16 %v88
  %v417 = vunpack.c.h.b16 %v88
  %v418 = vunpack.c.l.b16 %v89
  %v419 = vunpack.c.h.b16 %v89
  %v420 = vunpack.c.l.b16 %v90
  %v421 = vunpack.c.h.b16 %v90
  %v422 = vunpack.c.l.b16 %v91
  %v423 = vunpack.c.h.b16 %v91
  %v424 = vunpack.c.l.b16 %v92
  %v425 = vunpack.c.h.b16 %v92
  %v426 = vunpack.c.l.b16 %v93
  %v427 = vunpack.c.h.b16 %v93
  %v428 = vunpack.c.l.b16 %v94
  %v429 = vunpack.c.h.b16 %v94
  %v430 = vunpack.c.l.b16 %v95
  %v431 = vunpack.c.h.b16 %v95
  %v432 = vunpack.c.l.b16 %v96
  %v433 = vunpack.c.h.b16 %v96
  %v434 = vunpack.c.l.b16 %v97
  %v435 = vunpack.c.h.b16 %v97
  %v436 = vunpack.c.l.b16 %v98
  %v437 = vunpack.c.h.b16 %v98
  %v438 = vunpack.c.l.b16 %v99
  %v439 = vunpack.c.h.b16 %v99
  %v440 = vunpack.c.l.b16 %v100
  %v441 = vunpack.c.h.b16 %v100
  %v442 = vunpack.c.l.b16 %v101
  %v443 = vunpack.c.h.b16 %v101
  %v444 = vunpack.c.l.b16 %v102
  %v445 = vunpack.c.h.b16 %v102
  %v446 = vunpack.c.l.b16 %v103
  %v447 = vunpack.c.h.b16 %v103
  %v448 = vunpack.c.l.b16 %v104
  %v449 = vunpack.c.h.b16 %v104
  %v450 = vunpack.c.l.b16 %v105
  %v451 = vunpack.c.h.b16 %v105
  %v452 = vunpack.c.l.b16 %v106
  %v453 = vunpack.c.h.b16 %v106
  %v454 = vunpack.c.l.b16 %v107
  %v455 = vunpack.c.h.b16 %v107
  %v456 = vunpack.c.l.b16 %v108
  %v457 = vunpack.c.h.b16 %v108
  %v458 = vunpack.c.l.b16 %v109
  %v459 = vunpack.c.h.b16 %v109
  %v460 = vunpack.c.l.b16 %v110
  %v461 = vunpack.c.h.b16 %v110
  %v462 = vunpack.c.l.b16 %v111
  %v463 = vunpack.c.h.b16 %v111
  %v464 = vunpack.c.l.b16 %v112
  %v465 = vunpack.c.h.b16 %v112
  %v466 = vunpack.c.l.b16 %v113
  %v467 = vunpack.c.h.b16 %v113
  %v468 = vunpack.c.l.b16 %v114
  %v469 = vunpack.c.h.b16 %v114
  %v470 = vunpack.c.l.b16 %v115
  %v471 = vunpack.c.h.b16 %v115
  %v472 = vunpack.c.l.b16 %v116
  %v473 = vunpack.c.h.b16 %v116
  %v474 = vunpack.c.l.b16 %v117
  %v475 = vunpack.c.h.b16 %v117
  %v476 = vunpack.c.l.b16 %v118
  %v477 = vunpack.c.h.b16 %v118
  %v478 = vunpack.c.l.b16 %v119
  %v479 = vunpack.c.h.b16 %v119
  %v480 = vunpack.c.l.b16 %v120
  %v481 = vunpack.c.h.b16 %v120
  %v482 = vunpack.c.l.b16 %v121
  %v483 = vunpack.c.h.b16 %v121
  %v484 = vpack.c.b16 %v296, %v292
  %v485 = vpack.c.b16 %v297, %v293
  %v486 = vpack.c.b16 %v298, %v294
  %v487 = vpack.c.b16 %v299, %v295
  %v488 = vpack.c.b16 %v304, %v300
  %v489 = vpack.c.b16 %v305, %v301
  %v490 = vpack.c.b16 %v306, %v302
  %v491 = vpack.c.b16 %v307, %v303
  %v492 = vpack.c.b16 %v312, %v308
  %v493 = vpack.c.b16 %v313, %v309
  %v494 = vpack.c.b16 %v314, %v310
  %v495 = vpack.c.b16 %v315, %v311
  %v496 = vpack.c.b16 %v320, %v316
  %v497 = vpack.c.b16 %v321, %v317
  %v498 = vpack.c.b16 %v322, %v318
  %v499 = vpack.c.b16 %v323, %v319
  %v500 = vpack.c.b16 %v328, %v324
  %v501 = vpack.c.b16 %v329, %v325
  %v502 = vpack.c.b16 %v330, %v326
  %v503 = vpack.c.b16 %v331, %v327
  %v504 = vpack.c.b16 %v336, %v332
  %v505 = vpack.c.b16 %v337, %v333
  %v506 = vpack.c.b16 %v338, %v334
  %v507 = vpack.c.b16 %v339, %v335
  %v508 = vpack.c.b16 %v344, %v340
  %v509 = vpack.c.b16 %v345, %v341
  %v510 = vpack.c.b16 %v346, %v342
  %v511 = vpack.c.b16 %v347, %v343
  %v512 = vpack.c.b16 %v352, %v348
  %v513 = vpack.c.b16 %v353, %v349
  %v514 = vpack.c.b16 %v354, %v350
  %v515 = vpack.c.b16 %v355, %v351
  %v516 = vpack.c.b16 %v360, %v356
  %v517 = vpack.c.b16 %v361, %v357
  %v518 = vpack.c.b16 %v362, %v358
  %v519 = vpack.c.b16 %v363, %v359
  %v520 = vpack.c.b16 %v368, %v364
  %v521 = vpack.c.b16 %v369, %v365
  %v522 = vpack.c.b16 %v370, %v366
  %v523 = vpack.c.b16 %v371, %v367
  %v524 = vpack.c.b16 %v376, %v372
  %v525 = vpack.c.b16 %v377, %v373
  %v526 = vpack.c.b16 %v378, %v374
  %v527 = vpack.c.b16 %v379, %v375
  %v528 = vpack.c.b16 %v384, %v380
  %v529 = vpack.c.b16 %v385, %v381
  %v530 = vpack.c.b16 %v386, %v382
  %v531 = vpack.c.b16 %v387, %v383
  %v532 = vpack.c.b16 %v392, %v388
  %v533 = vpack.c.b16 %v393, %v389
  %v534 = vpack.c.b16 %v394, %v390
  %v535 = vpack.c.b16 %v395, %v391
  %v536 = vpack.c.b16 %v400, %v396
  %v537 = vpack.c.b16 %v401, %v397
  %v538 = vpack.c.b16 %v402, %v398
  %v539 = vpack.c.b16 %v403, %v399
  %v540 = vpack.c.b16 %v408, %v404
  %v541 = vpack.c.b16 %v409, %v405
  %v542 = vpack.c.b16 %v410, %v406
  %v543 = vpack.c.b16 %v411, %v407
  %v544 = vpack.c.b16 %v416, %v412
  %v545 = vpack.c.b16 %v417, %v413
  %v546 = vpack.c.b16 %v418, %v414
  %v547 = vpack.c.b16 %v419, %v415
  %v548 = vpack.c.b16 %v424, %v420
  %v549 = vpack.c.b16 %v425, %v421
  %v550 = vpack.c.b16 %v426, %v422
  %v551 = vpack.c.b16 %v427, %v423
  %v552 = vpack.c.b16 %v432, %v428
  %v553 = vpack.c.b16 %v433, %v429
  %v554 = vpack.c.b16 %v434, %v430
  %v555 = vpack.c.b16 %v435, %v431
  %v556 = vpack.c.b16 %v440, %v436
  %v557 = vpack.c.b16 %v441, %v437
  %v558 = vpack.c.b16 %v442, %v438
  %v559 = vpack.c.b16 %v443, %v439
  %v560 = vpack.c.b16 %v448, %v444
  %v561 = vpack.c.b16 %v449, %v445
  %v562 = vpack.c.b16 %v450, %v446
  %v563 = vpack.c.b16 %v451, %v447
  %v564 = vpack.c.b16 %v456, %v452
  %v565 = vpack.c.b16 %v457, %v453
  %v566 = vpack.c.b16 %v458, %v454
  %v567 = vpack.c.b16 %v459, %v455
  %v568 = vpack.c.b16 %v464, %v460
  %v569 = vpack.c.b16 %v465, %v461
  %v570 = vpack.c.b16 %v466, %v462
  %v571 = vpack.c.b16 %v467, %v463
  %v572 = vpack.c.b16 %v472, %v468
  %v573 = vpack.c.b16 %v473, %v469
  %v574 = vpack.c.b16 %v474, %v470
  %v575 = vpack.c.b16 %v475, %v471
  %v576 = vpack.c.b16 %v480, %v476
  %v577 = vpack.c.b16 %v481, %v477
  %v578 = vpack.c.b16 %v482, %v478
  %v579 = vpack.c.b16 %v483, %v479
  %676 = vmatprep.subr.bf16.mxu0 %v485
  %677 = vmatpush1.bf16.msra.mxu0 %v484
  %678 = vmatprep.subr.bf16.mxu0 %v489
  %679 = vmatpush1.bf16.msra.mxu0 %v488
  %680 = vmatprep.subr.bf16.mxu0 %v493
  %681 = vmatpush1.bf16.msra.mxu0 %v492
  %682 = vmatprep.subr.bf16.mxu0 %v497
  %683 = vmatpush1.bf16.msra.mxu0 %v496
  %684 = vmatprep.subr.bf16.mxu0 %v501
  %685 = vmatpush1.bf16.msra.mxu0 %v500
  %686 = vmatprep.subr.bf16.mxu0 %v505
  %687 = vmatpush1.bf16.msra.mxu0 %v504
  %688 = vmatprep.subr.bf16.mxu0 %v509
  %689 = vmatpush1.bf16.msra.mxu0 %v508
  %690 = vmatprep.subr.bf16.mxu0 %v513
  %691 = vmatpush1.bf16.msra.mxu0 %v512
  %692 = vmatprep.subr.bf16.mxu0 %v517
  %693 = vmatpush1.bf16.msra.mxu0 %v516
  %694 = vmatprep.subr.bf16.mxu0 %v521
  %695 = vmatpush1.bf16.msra.mxu0 %v520
  %696 = vmatprep.subr.bf16.mxu0 %v525
  %697 = vmatpush1.bf16.msra.mxu0 %v524
  %698 = vmatprep.subr.bf16.mxu0 %v529
  %699 = vmatpush1.bf16.msra.mxu0 %v528
  %700 = vmatprep.subr.bf16.mxu0 %v533
  %701 = vmatpush1.bf16.msra.mxu0 %v532
  %702 = vmatprep.subr.bf16.mxu0 %v537
  %703 = vmatpush1.bf16.msra.mxu0 %v536
  %704 = vmatprep.subr.bf16.mxu0 %v541
  %705 = vmatpush1.bf16.msra.mxu0 %v540
  %706 = vmatprep.subr.bf16.mxu0 %v545
  %707 = vmatpush1.bf16.msra.mxu0 %v544
  %708 = vmatprep.mubr.bf16.mxu0 %v191
  %709 = vmatmul.mubr.bf16.gmra.mrb[0].mxu0 %v190
  %v710 = vpop.f32.mrb[0].mxu0
  %v711 = vadd.f32 %v163, %v710
  %v712 = vpop.f32.mrb[0].mxu0
  %v713 = vadd.f32 %v167, %v712
  %v714 = vpop.f32.mrb[0].mxu0
  %v715 = vadd.f32 %v163, %v714
  %v716 = vpop.f32.mrb[0].mxu0
  %v717 = vadd.f32 %v167, %v716
  %718 = vdwg.mxu0
  %719 = vmatprep.subr.bf16.mxu0 %v549
  %720 = vmatpush1.bf16.msra.mxu0 %v548
  %721 = vmatprep.subr.bf16.mxu0 %v553
  %722 = vmatpush1.bf16.msra.mxu0 %v552
  %723 = vmatprep.subr.bf16.mxu0 %v557
  %724 = vmatpush1.bf16.msra.mxu0 %v556
  %725 = vmatprep.subr.bf16.mxu0 %v561
  %726 = vmatpush1.bf16.msra.mxu0 %v560
  %727 = vmatprep.subr.bf16.mxu0 %v565
  %728 = vmatpush1.bf16.msra.mxu0 %v564
  %729 = vmatprep.subr.bf16.mxu0 %v569
  %730 = vmatpush1.bf16.msra.mxu0 %v568
  %731 = vmatprep.subr.bf16.mxu0 %v573
  %732 = vmatpush1.bf16.msra.mxu0 %v572
  %733 = vmatprep.subr.bf16.mxu0 %v577
  %734 = vmatpush1.bf16.msra.mxu0 %v576
  %735 = vmatprep.subr.bf16.mxu0 0
  %736 = vmatpush1.bf16.msra.mxu0 0
  %737 = vmatprep.subr.bf16.mxu0 0
  %738 = vmatpush1.bf16.msra.mxu0 0
  %739 = vmatprep.subr.bf16.mxu0 0
  %740 = vmatpush1.bf16.msra.mxu0 0
  %741 = vmatprep.subr.bf16.mxu0 0
  %742 = vmatpush1.bf16.msra.mxu0 0
  %743 = vmatprep.subr.bf16.mxu0 0
  %744 = vmatpush1.bf16.msra.mxu0 0
  %745 = vmatprep.subr.bf16.mxu0 0
  %746 = vmatpush1.bf16.msra.mxu0 0
  %747 = vmatprep.subr.bf16.mxu0 0
  %748 = vmatpush1.bf16.msra.mxu0 0
  %749 = vmatprep.subr.bf16.mxu0 0
  %750 = vmatpush1.bf16.msra.mxu0 0
  %751 = vmatprep.mubr.bf16.mxu0 0
  %752 = vmatmul.mubr.bf16.gmra.mrb[0].mxu0 %v192
  %v753 = vpop.f32.mrb[0].mxu0
  %v754 = vadd.f32 %v711, %v753
  %v755 = vpop.f32.mrb[0].mxu0
  %v756 = vadd.f32 %v713, %v755
  %v757 = vpop.f32.mrb[0].mxu0
  %v758 = vadd.f32 %v715, %v757
  %v759 = vpop.f32.mrb[0].mxu0
  %v760 = vadd.f32 %v717, %v759
  %761 = vdwg.mxu0
  %762 = vmatprep.subr.bf16.mxu0 %v487
  %763 = vmatpush1.bf16.msra.mxu0 %v486
  %764 = vmatprep.subr.bf16.mxu0 %v491
  %765 = vmatpush1.bf16.msra.mxu0 %v490
  %766 = vmatprep.subr.bf16.mxu0 %v495
  %767 = vmatpush1.bf16.msra.mxu0 %v494
  %768 = vmatprep.subr.bf16.mxu0 %v499
  %769 = vmatpush1.bf16.msra.mxu0 %v498
  %770 = vmatprep.subr.bf16.mxu0 %v503
  %771 = vmatpush1.bf16.msra.mxu0 %v502
  %772 = vmatprep.subr.bf16.mxu0 %v507
  %773 = vmatpush1.bf16.msra.mxu0 %v506
  %774 = vmatprep.subr.bf16.mxu0 %v511
  %775 = vmatpush1.bf16.msra.mxu0 %v510
  %776 = vmatprep.subr.bf16.mxu0 %v515
  %777 = vmatpush1.bf16.msra.mxu0 %v514
  %778 = vmatprep.subr.bf16.mxu0 %v519
  %779 = vmatpush1.bf16.msra.mxu0 %v518
  %780 = vmatprep.subr.bf16.mxu0 %v523
  %781 = vmatpush1.bf16.msra.mxu0 %v522
  %782 = vmatprep.subr.bf16.mxu0 %v527
  %783 = vmatpush1.bf16.msra.mxu0 %v526
  %784 = vmatprep.subr.bf16.mxu0 %v531
  %785 = vmatpush1.bf16.msra.mxu0 %v530
  %786 = vmatprep.subr.bf16.mxu0 %v535
  %787 = vmatpush1.bf16.msra.mxu0 %v534
  %788 = vmatprep.subr.bf16.mxu0 %v539
  %789 = vmatpush1.bf16.msra.mxu0 %v538
  %790 = vmatprep.subr.bf16.mxu0 %v543
  %791 = vmatpush1.bf16.msra.mxu0 %v542
  %792 = vmatprep.subr.bf16.mxu0 %v547
  %793 = vmatpush1.bf16.msra.mxu0 %v546
  %794 = vmatprep.mubr.bf16.mxu0 %v191
  %795 = vmatmul.mubr.bf16.gmra.mrb[0].mxu0 %v190
  %v796 = vpop.f32.mrb[0].mxu0
  %v797 = vadd.f32 %v171, %v796
  %v798 = vpop.f32.mrb[0].mxu0
  %v799 = vadd.f32 %v175, %v798
  %v800 = vpop.f32.mrb[0].mxu0
  %v801 = vadd.f32 %v171, %v800
  %v802 = vpop.f32.mrb[0].mxu0
  %v803 = vadd.f32 %v175, %v802
  %804 = vdwg.mxu0
  %805 = vmatprep.subr.bf16.mxu0 %v551
  %806 = vmatpush1.bf16.msra.mxu0 %v550
  %807 = vmatprep.subr.bf16.mxu0 %v555
  %808 = vmatpush1.bf16.msra.mxu0 %v554
  %809 = vmatprep.subr.bf16.mxu0 %v559
  %810 = vmatpush1.bf16.msra.mxu0 %v558
  %811 = vmatprep.subr.bf16.mxu0 %v563
  %812 = vmatpush1.bf16.msra.mxu0 %v562
  %813 = vmatprep.subr.bf16.mxu0 %v567
  %814 = vmatpush1.bf16.msra.mxu0 %v566
  %815 = vmatprep.subr.bf16.mxu0 %v571
  %816 = vmatpush1.bf16.msra.mxu0 %v570
  %817 = vmatprep.subr.bf16.mxu0 %v575
  %818 = vmatpush1.bf16.msra.mxu0 %v574
  %819 = vmatprep.subr.bf16.mxu0 %v579
  %820 = vmatpush1.bf16.msra.mxu0 %v578
  %821 = vmatprep.subr.bf16.mxu0 0
  %822 = vmatpush1.bf16.msra.mxu0 0
  %823 = vmatprep.subr.bf16.mxu0 0
  %824 = vmatpush1.bf16.msra.mxu0 0
  %825 = vmatprep.subr.bf16.mxu0 0
  %826 = vmatpush1.bf16.msra.mxu0 0
  %827 = vmatprep.subr.bf16.mxu0 0
  %828 = vmatpush1.bf16.msra.mxu0 0
  %829 = vmatprep.subr.bf16.mxu0 0
  %830 = vmatpush1.bf16.msra.mxu0 0
  %831 = vmatprep.subr.bf16.mxu0 0
  %832 = vmatpush1.bf16.msra.mxu0 0
  %833 = vmatprep.subr.bf16.mxu0 0
  %834 = vmatpush1.bf16.msra.mxu0 0
  %835 = vmatprep.subr.bf16.mxu0 0
  %836 = vmatpush1.bf16.msra.mxu0 0
  %837 = vmatprep.mubr.bf16.mxu0 0
  %838 = vmatmul.mubr.bf16.gmra.mrb[0].mxu0 %v192
  %v839 = vpop.f32.mrb[0].mxu0
  %v840 = vadd.f32 %v797, %v839
  %v841 = vpop.f32.mrb[0].mxu0
  %v842 = vadd.f32 %v799, %v841
  %v843 = vpop.f32.mrb[0].mxu0
  %v844 = vadd.f32 %v801, %v843
  %v845 = vpop.f32.mrb[0].mxu0
  %v846 = vadd.f32 %v803, %v845
  %847 = vdwg.mxu0
  %848 = vst [vmem:[#allocation2] sm:$0xff] %v754
  %849 = vst [vmem:[#allocation2 + $0x8] sm:$0xff] %v756
  %850 = vst [vmem:[#allocation2 + $0x10] sm:$0xff] %v840
  %851 = vst [vmem:[#allocation2 + $0x18] sm:$0xff] %v842
  %852 = vst [vmem:[#allocation2 + $0x20] sm:$0xff] %v758
  %853 = vst [vmem:[#allocation2 + $0x28] sm:$0xff] %v760
  %854 = vst [vmem:[#allocation2 + $0x30] sm:$0xff] %v844
  %855 = vst [vmem:[#allocation2 + $0x38] sm:$0xff] %v846
  %s856 = scalar_lea.vmem %s0, 24
  %v857 = vld [vmem:[%s856] sm:$0xff]
  %v858 = vld [vmem:[%s856 + $0x8] sm:$0xf]
  %v859 = vld [vmem:[%s856 + $0xc] sm:$0xff]
  %v860 = vld [vmem:[%s856 + $0x14] sm:$0xf]
  %v865 = vunpack.c.l.b16 %v857
  %v866 = vunpack.c.h.b16 %v857
  %v867 = vunpack.c.l.b16 %v858
  %v868 = vunpack.c.l.b16 %v859
  %v869 = vunpack.c.h.b16 %v859
  %v870 = vunpack.c.l.b16 %v860
  %v871 = vpack.c.b16 %v868, %v865
  %v872 = vpack.c.b16 %v869, %v866
  %v873 = vpack.c.b16 %v870, %v867
  %877 = vmatprep.subr.bf16.mxu0 %v485
  %878 = vmatpush1.bf16.msra.mxu0 %v484
  %879 = vmatprep.subr.bf16.mxu0 %v489
  %880 = vmatpush1.bf16.msra.mxu0 %v488
  %881 = vmatprep.subr.bf16.mxu0 %v493
  %882 = vmatpush1.bf16.msra.mxu0 %v492
  %883 = vmatprep.subr.bf16.mxu0 %v497
  %884 = vmatpush1.bf16.msra.mxu0 %v496
  %885 = vmatprep.subr.bf16.mxu0 %v501
  %886 = vmatpush1.bf16.msra.mxu0 %v500
  %887 = vmatprep.subr.bf16.mxu0 %v505
  %888 = vmatpush1.bf16.msra.mxu0 %v504
  %889 = vmatprep.subr.bf16.mxu0 %v509
  %890 = vmatpush1.bf16.msra.mxu0 %v508
  %891 = vmatprep.subr.bf16.mxu0 %v513
  %892 = vmatpush1.bf16.msra.mxu0 %v512
  %893 = vmatprep.subr.bf16.mxu0 %v517
  %894 = vmatpush1.bf16.msra.mxu0 %v516
  %895 = vmatprep.subr.bf16.mxu0 %v521
  %896 = vmatpush1.bf16.msra.mxu0 %v520
  %897 = vmatprep.subr.bf16.mxu0 %v525
  %898 = vmatpush1.bf16.msra.mxu0 %v524
  %899 = vmatprep.subr.bf16.mxu0 %v529
  %900 = vmatpush1.bf16.msra.mxu0 %v528
  %901 = vmatprep.subr.bf16.mxu0 %v533
  %902 = vmatpush1.bf16.msra.mxu0 %v532
  %903 = vmatprep.subr.bf16.mxu0 %v537
  %904 = vmatpush1.bf16.msra.mxu0 %v536
  %905 = vmatprep.subr.bf16.mxu0 %v541
  %906 = vmatpush1.bf16.msra.mxu0 %v540
  %907 = vmatprep.subr.bf16.mxu0 %v545
  %908 = vmatpush1.bf16.msra.mxu0 %v544
  %909 = vmatprep.mubr.bf16.mxu0 %v872
  %910 = vmatmul.mubr.bf16.gmra.mrb[0].mxu0 %v871
  %v911 = vpop.f32.mrb[0].mxu0
  %v912 = vadd.f32 %v163, %v911
  %v913 = vpop.f32.mrb[0].mxu0
  %v914 = vadd.f32 %v167, %v913
  %v915 = vpop.f32.mrb[0].mxu0
  %v916 = vadd.f32 %v163, %v915
  %v917 = vpop.f32.mrb[0].mxu0
  %v918 = vadd.f32 %v167, %v917
  %919 = vdwg.mxu0
  %920 = vmatprep.subr.bf16.mxu0 %v549
  %921 = vmatpush1.bf16.msra.mxu0 %v548
  %922 = vmatprep.subr.bf16.mxu0 %v553
  %923 = vmatpush1.bf16.msra.mxu0 %v552
  %924 = vmatprep.subr.bf16.mxu0 %v557
  %925 = vmatpush1.bf16.msra.mxu0 %v556
  %926 = vmatprep.subr.bf16.mxu0 %v561
  %927 = vmatpush1.bf16.msra.mxu0 %v560
  %928 = vmatprep.subr.bf16.mxu0 %v565
  %929 = vmatpush1.bf16.msra.mxu0 %v564
  %930 = vmatprep.subr.bf16.mxu0 %v569
  %931 = vmatpush1.bf16.msra.mxu0 %v568
  %932 = vmatprep.subr.bf16.mxu0 %v573
  %933 = vmatpush1.bf16.msra.mxu0 %v572
  %934 = vmatprep.subr.bf16.mxu0 %v577
  %935 = vmatpush1.bf16.msra.mxu0 %v576
  %936 = vmatprep.subr.bf16.mxu0 0
  %937 = vmatpush1.bf16.msra.mxu0 0
  %938 = vmatprep.subr.bf16.mxu0 0
  %939 = vmatpush1.bf16.msra.mxu0 0
  %940 = vmatprep.subr.bf16.mxu0 0
  %941 = vmatpush1.bf16.msra.mxu0 0
  %942 = vmatprep.subr.bf16.mxu0 0
  %943 = vmatpush1.bf16.msra.mxu0 0
  %944 = vmatprep.subr.bf16.mxu0 0
  %945 = vmatpush1.bf16.msra.mxu0 0
  %946 = vmatprep.subr.bf16.mxu0 0
  %947 = vmatpush1.bf16.msra.mxu0 0
  %948 = vmatprep.subr.bf16.mxu0 0
  %949 = vmatpush1.bf16.msra.mxu0 0
  %950 = vmatprep.subr.bf16.mxu0 0
  %951 = vmatpush1.bf16.msra.mxu0 0
  %952 = vmatprep.mubr.bf16.mxu0 0
  %953 = vmatmul.mubr.bf16.gmra.mrb[0].mxu0 %v873
  %v954 = vpop.f32.mrb[0].mxu0
  %v955 = vadd.f32 %v912, %v954
  %v956 = vpop.f32.mrb[0].mxu0
  %v957 = vadd.f32 %v914, %v956
  %v958 = vpop.f32.mrb[0].mxu0
  %v959 = vadd.f32 %v916, %v958
  %v960 = vpop.f32.mrb[0].mxu0
  %v961 = vadd.f32 %v918, %v960
  %962 = vdwg.mxu0
  %963 = vmatprep.subr.bf16.mxu0 %v487
  %964 = vmatpush1.bf16.msra.mxu0 %v486
  %965 = vmatprep.subr.bf16.mxu0 %v491
  %966 = vmatpush1.bf16.msra.mxu0 %v490
  %967 = vmatprep.subr.bf16.mxu0 %v495
  %968 = vmatpush1.bf16.msra.mxu0 %v494
  %969 = vmatprep.subr.bf16.mxu0 %v499
  %970 = vmatpush1.bf16.msra.mxu0 %v498
  %971 = vmatprep.subr.bf16.mxu0 %v503
  %972 = vmatpush1.bf16.msra.mxu0 %v502
  %973 = vmatprep.subr.bf16.mxu0 %v507
  %974 = vmatpush1.bf16.msra.mxu0 %v506
  %975 = vmatprep.subr.bf16.mxu0 %v511
  %976 = vmatpush1.bf16.msra.mxu0 %v510
  %977 = vmatprep.subr.bf16.mxu0 %v515
  %978 = vmatpush1.bf16.msra.mxu0 %v514
  %979 = vmatprep.subr.bf16.mxu0 %v519
  %980 = vmatpush1.bf16.msra.mxu0 %v518
  %981 = vmatprep.subr.bf16.mxu0 %v523
  %982 = vmatpush1.bf16.msra.mxu0 %v522
  %983 = vmatprep.subr.bf16.mxu0 %v527
  %984 = vmatpush1.bf16.msra.mxu0 %v526
  %985 = vmatprep.subr.bf16.mxu0 %v531
  %986 = vmatpush1.bf16.msra.mxu0 %v530
  %987 = vmatprep.subr.bf16.mxu0 %v535
  %988 = vmatpush1.bf16.msra.mxu0 %v534
  %989 = vmatprep.subr.bf16.mxu0 %v539
  %990 = vmatpush1.bf16.msra.mxu0 %v538
  %991 = vmatprep.subr.bf16.mxu0 %v543
  %992 = vmatpush1.bf16.msra.mxu0 %v542
  %993 = vmatprep.subr.bf16.mxu0 %v547
  %994 = vmatpush1.bf16.msra.mxu0 %v546
  %995 = vmatprep.mubr.bf16.mxu0 %v872
  %996 = vmatmul.mubr.bf16.gmra.mrb[0].mxu0 %v871
  %v997 = vpop.f32.mrb[0].mxu0
  %v998 = vadd.f32 %v171, %v997
  %v999 = vpop.f32.mrb[0].mxu0
  %v1000 = vadd.f32 %v175, %v999
  %v1001 = vpop.f32.mrb[0].mxu0
  %v1002 = vadd.f32 %v171, %v1001
  %v1003 = vpop.f32.mrb[0].mxu0
  %v1004 = vadd.f32 %v175, %v1003
  %1005 = vdwg.mxu0
  %1006 = vmatprep.subr.bf16.mxu0 %v551
  %1007 = vmatpush1.bf16.msra.mxu0 %v550
  %1008 = vmatprep.subr.bf16.mxu0 %v555
  %1009 = vmatpush1.bf16.msra.mxu0 %v554
  %1010 = vmatprep.subr.bf16.mxu0 %v559
  %1011 = vmatpush1.bf16.msra.mxu0 %v558
  %1012 = vmatprep.subr.bf16.mxu0 %v563
  %1013 = vmatpush1.bf16.msra.mxu0 %v562
  %1014 = vmatprep.subr.bf16.mxu0 %v567
  %1015 = vmatpush1.bf16.msra.mxu0 %v566
  %1016 = vmatprep.subr.bf16.mxu0 %v571
  %1017 = vmatpush1.bf16.msra.mxu0 %v570
  %1018 = vmatprep.subr.bf16.mxu0 %v575
  %1019 = vmatpush1.bf16.msra.mxu0 %v574
  %1020 = vmatprep.subr.bf16.mxu0 %v579
  %1021 = vmatpush1.bf16.msra.mxu0 %v578
  %1022 = vmatprep.subr.bf16.mxu0 0
  %1023 = vmatpush1.bf16.msra.mxu0 0
  %1024 = vmatprep.subr.bf16.mxu0 0
  %1025 = vmatpush1.bf16.msra.mxu0 0
  %1026 = vmatprep.subr.bf16.mxu0 0
  %1027 = vmatpush1.bf16.msra.mxu0 0
  %1028 = vmatprep.subr.bf16.mxu0 0
  %1029 = vmatpush1.bf16.msra.mxu0 0
  %1030 = vmatprep.subr.bf16.mxu0 0
  %1031 = vmatpush1.bf16.msra.mxu0 0
  %1032 = vmatprep.subr.bf16.mxu0 0
  %1033 = vmatpush1.bf16.msra.mxu0 0
  %1034 = vmatprep.subr.bf16.mxu0 0
  %1035 = vmatpush1.bf16.msra.mxu0 0
  %1036 = vmatprep.subr.bf16.mxu0 0
  %1037 = vmatpush1.bf16.msra.mxu0 0
  %1038 = vmatprep.mubr.bf16.mxu0 0
  %1039 = vmatmul.mubr.bf16.gmra.mrb[0].mxu0 %v873
  %v1040 = vpop.f32.mrb[0].mxu0
  %v1041 = vadd.f32 %v998, %v1040
  %v1042 = vpop.f32.mrb[0].mxu0
  %v1043 = vadd.f32 %v1000, %v1042
  %v1044 = vpop.f32.mrb[0].mxu0
  %v1045 = vadd.f32 %v1002, %v1044
  %v1046 = vpop.f32.mrb[0].mxu0
  %v1047 = vadd.f32 %v1004, %v1046
  %1048 = vdwg.mxu0
  %s1049 = scalar_lea.vmem [#allocation2], 64
  %1050 = vst [vmem:[%s1049] sm:$0xff] %v955
  %1051 = vst [vmem:[%s1049 + $0x8] sm:$0xff] %v957
  %1052 = vst [vmem:[%s1049 + $0x10] sm:$0xff] %v1041
  %1053 = vst [vmem:[%s1049 + $0x18] sm:$0xff] %v1043
  %1054 = vst [vmem:[%s1049 + $0x20] sm:$0xff] %v959
  %1055 = vst [vmem:[%s1049 + $0x28] sm:$0xff] %v961
  %1056 = vst [vmem:[%s1049 + $0x30] sm:$0xff] %v1045
  %1057 = vst [vmem:[%s1049 + $0x38] sm:$0xff] %v1047
  %s1058 = scalar_lea.vmem %s0, 48
  %v1059 = vld [vmem:[%s1058] sm:$0xff]
  %v1060 = vld [vmem:[%s1058 + $0x8] sm:$0xf]
  %v1061 = vld [vmem:[%s1058 + $0xc] sm:$0xff]
  %v1062 = vld [vmem:[%s1058 + $0x14] sm:$0xf]
  %v1067 = vunpack.c.l.b16 %v1059
  %v1068 = vunpack.c.h.b16 %v1059
  %v1069 = vunpack.c.l.b16 %v1060
  %v1070 = vunpack.c.l.b16 %v1061
  %v1071 = vunpack.c.h.b16 %v1061
  %v1072 = vunpack.c.l.b16 %v1062
  %v1073 = vpack.c.b16 %v1070, %v1067
  %v1074 = vpack.c.b16 %v1071, %v1068
  %v1075 = vpack.c.b16 %v1072, %v1069
  %1079 = vmatprep.subr.bf16.mxu0 %v485
  %1080 = vmatpush1.bf16.msra.mxu0 %v484
  %1081 = vmatprep.subr.bf16.mxu0 %v489
  %1082 = vmatpush1.bf16.msra.mxu0 %v488
  %1083 = vmatprep.subr.bf16.mxu0 %v493
  %1084 = vmatpush1.bf16.msra.mxu0 %v492
  %1085 = vmatprep.subr.bf16.mxu0 %v497
  %1086 = vmatpush1.bf16.msra.mxu0 %v496
  %1087 = vmatprep.subr.bf16.mxu0 %v501
  %1088 = vmatpush1.bf16.msra.mxu0 %v500
  %1089 = vmatprep.subr.bf16.mxu0 %v505
  %1090 = vmatpush1.bf16.msra.mxu0 %v504
  %1091 = vmatprep.subr.bf16.mxu0 %v509
  %1092 = vmatpush1.bf16.msra.mxu0 %v508
  %1093 = vmatprep.subr.bf16.mxu0 %v513
  %1094 = vmatpush1.bf16.msra.mxu0 %v512
  %1095 = vmatprep.subr.bf16.mxu0 %v517
  %1096 = vmatpush1.bf16.msra.mxu0 %v516
  %1097 = vmatprep.subr.bf16.mxu0 %v521
  %1098 = vmatpush1.bf16.msra.mxu0 %v520
  %1099 = vmatprep.subr.bf16.mxu0 %v525
  %1100 = vmatpush1.bf16.msra.mxu0 %v524
  %1101 = vmatprep.subr.bf16.mxu0 %v529
  %1102 = vmatpush1.bf16.msra.mxu0 %v528
  %1103 = vmatprep.subr.bf16.mxu0 %v533
  %1104 = vmatpush1.bf16.msra.mxu0 %v532
  %1105 = vmatprep.subr.bf16.mxu0 %v537
  %1106 = vmatpush1.bf16.msra.mxu0 %v536
  %1107 = vmatprep.subr.bf16.mxu0 %v541
  %1108 = vmatpush1.bf16.msra.mxu0 %v540
  %1109 = vmatprep.subr.bf16.mxu0 %v545
  %1110 = vmatpush1.bf16.msra.mxu0 %v544
  %1111 = vmatprep.mubr.bf16.mxu0 %v1074
  %1112 = vmatmul.mubr.bf16.gmra.mrb[0].mxu0 %v1073
  %v1113 = vpop.f32.mrb[0].mxu0
  %v1114 = vadd.f32 %v163, %v1113
  %v1115 = vpop.f32.mrb[0].mxu0
  %v1116 = vadd.f32 %v167, %v1115
  %v1117 = vpop.f32.mrb[0].mxu0
  %v1118 = vadd.f32 %v163, %v1117
  %v1119 = vpop.f32.mrb[0].mxu0
  %v1120 = vadd.f32 %v167, %v1119
  %1121 = vdwg.mxu0
  %1122 = vmatprep.subr.bf16.mxu0 %v549
  %1123 = vmatpush1.bf16.msra.mxu0 %v548
  %1124 = vmatprep.subr.bf16.mxu0 %v553
  %1125 = vmatpush1.bf16.msra.mxu0 %v552
  %1126 = vmatprep.subr.bf16.mxu0 %v557
  %1127 = vmatpush1.bf16.msra.mxu0 %v556
  %1128 = vmatprep.subr.bf16.mxu0 %v561
  %1129 = vmatpush1.bf16.msra.mxu0 %v560
  %1130 = vmatprep.subr.bf16.mxu0 %v565
  %1131 = vmatpush1.bf16.msra.mxu0 %v564
  %1132 = vmatprep.subr.bf16.mxu0 %v569
  %1133 = vmatpush1.bf16.msra.mxu0 %v568
  %1134 = vmatprep.subr.bf16.mxu0 %v573
  %1135 = vmatpush1.bf16.msra.mxu0 %v572
  %1136 = vmatprep.subr.bf16.mxu0 %v577
  %1137 = vmatpush1.bf16.msra.mxu0 %v576
  %1138 = vmatprep.subr.bf16.mxu0 0
  %1139 = vmatpush1.bf16.msra.mxu0 0
  %1140 = vmatprep.subr.bf16.mxu0 0
  %1141 = vmatpush1.bf16.msra.mxu0 0
  %1142 = vmatprep.subr.bf16.mxu0 0
  %1143 = vmatpush1.bf16.msra.mxu0 0
  %1144 = vmatprep.subr.bf16.mxu0 0
  %1145 = vmatpush1.bf16.msra.mxu0 0
  %1146 = vmatprep.subr.bf16.mxu0 0
  %1147 = vmatpush1.bf16.msra.mxu0 0
  %1148 = vmatprep.subr.bf16.mxu0 0
  %1149 = vmatpush1.bf16.msra.mxu0 0
  %1150 = vmatprep.subr.bf16.mxu0 0
  %1151 = vmatpush1.bf16.msra.mxu0 0
  %1152 = vmatprep.subr.bf16.mxu0 0
  %1153 = vmatpush1.bf16.msra.mxu0 0
  %1154 = vmatprep.mubr.bf16.mxu0 0
  %1155 = vmatmul.mubr.bf16.gmra.mrb[0].mxu0 %v1075
  %v1156 = vpop.f32.mrb[0].mxu0
  %v1157 = vadd.f32 %v1114, %v1156
  %v1158 = vpop.f32.mrb[0].mxu0
  %v1159 = vadd.f32 %v1116, %v1158
  %v1160 = vpop.f32.mrb[0].mxu0
  %v1161 = vadd.f32 %v1118, %v1160
  %v1162 = vpop.f32.mrb[0].mxu0
  %v1163 = vadd.f32 %v1120, %v1162
  %1164 = vdwg.mxu0
  %1165 = vmatprep.subr.bf16.mxu0 %v487
  %1166 = vmatpush1.bf16.msra.mxu0 %v486
  %1167 = vmatprep.subr.bf16.mxu0 %v491
  %1168 = vmatpush1.bf16.msra.mxu0 %v490
  %1169 = vmatprep.subr.bf16.mxu0 %v495
  %1170 = vmatpush1.bf16.msra.mxu0 %v494
  %1171 = vmatprep.subr.bf16.mxu0 %v499
  %1172 = vmatpush1.bf16.msra.mxu0 %v498
  %1173 = vmatprep.subr.bf16.mxu0 %v503
  %1174 = vmatpush1.bf16.msra.mxu0 %v502
  %1175 = vmatprep.subr.bf16.mxu0 %v507
  %1176 = vmatpush1.bf16.msra.mxu0 %v506
  %1177 = vmatprep.subr.bf16.mxu0 %v511
  %1178 = vmatpush1.bf16.msra.mxu0 %v510
  %1179 = vmatprep.subr.bf16.mxu0 %v515
  %1180 = vmatpush1.bf16.msra.mxu0 %v514
  %1181 = vmatprep.subr.bf16.mxu0 %v519
  %1182 = vmatpush1.bf16.msra.mxu0 %v518
  %1183 = vmatprep.subr.bf16.mxu0 %v523
  %1184 = vmatpush1.bf16.msra.mxu0 %v522
  %1185 = vmatprep.subr.bf16.mxu0 %v527
  %1186 = vmatpush1.bf16.msra.mxu0 %v526
  %1187 = vmatprep.subr.bf16.mxu0 %v531
  %1188 = vmatpush1.bf16.msra.mxu0 %v530
  %1189 = vmatprep.subr.bf16.mxu0 %v535
  %1190 = vmatpush1.bf16.msra.mxu0 %v534
  %1191 = vmatprep.subr.bf16.mxu0 %v539
  %1192 = vmatpush1.bf16.msra.mxu0 %v538
  %1193 = vmatprep.subr.bf16.mxu0 %v543
  %1194 = vmatpush1.bf16.msra.mxu0 %v542
  %1195 = vmatprep.subr.bf16.mxu0 %v547
  %1196 = vmatpush1.bf16.msra.mxu0 %v546
  %1197 = vmatprep.mubr.bf16.mxu0 %v1074
  %1198 = vmatmul.mubr.bf16.gmra.mrb[0].mxu0 %v1073
  %v1199 = vpop.f32.mrb[0].mxu0
  %v1200 = vadd.f32 %v171, %v1199
  %v1201 = vpop.f32.mrb[0].mxu0
  %v1202 = vadd.f32 %v175, %v1201
  %v1203 = vpop.f32.mrb[0].mxu0
  %v1204 = vadd.f32 %v171, %v1203
  %v1205 = vpop.f32.mrb[0].mxu0
  %v1206 = vadd.f32 %v175, %v1205
  %1207 = vdwg.mxu0
  %1208 = vmatprep.subr.bf16.mxu0 %v551
  %1209 = vmatpush1.bf16.msra.mxu0 %v550
  %1210 = vmatprep.subr.bf16.mxu0 %v555
  %1211 = vmatpush1.bf16.msra.mxu0 %v554
  %1212 = vmatprep.subr.bf16.mxu0 %v559
  %1213 = vmatpush1.bf16.msra.mxu0 %v558
  %1214 = vmatprep.subr.bf16.mxu0 %v563
  %1215 = vmatpush1.bf16.msra.mxu0 %v562
  %1216 = vmatprep.subr.bf16.mxu0 %v567
  %1217 = vmatpush1.bf16.msra.mxu0 %v566
  %1218 = vmatprep.subr.bf16.mxu0 %v571
  %1219 = vmatpush1.bf16.msra.mxu0 %v570
  %1220 = vmatprep.subr.bf16.mxu0 %v575
  %1221 = vmatpush1.bf16.msra.mxu0 %v574
  %1222 = vmatprep.subr.bf16.mxu0 %v579
  %1223 = vmatpush1.bf16.msra.mxu0 %v578
  %1224 = vmatprep.subr.bf16.mxu0 0
  %1225 = vmatpush1.bf16.msra.mxu0 0
  %1226 = vmatprep.subr.bf16.mxu0 0
  %1227 = vmatpush1.bf16.msra.mxu0 0
  %1228 = vmatprep.subr.bf16.mxu0 0
  %1229 = vmatpush1.bf16.msra.mxu0 0
  %1230 = vmatprep.subr.bf16.mxu0 0
  %1231 = vmatpush1.bf16.msra.mxu0 0
  %1232 = vmatprep.subr.bf16.mxu0 0
  %1233 = vmatpush1.bf16.msra.mxu0 0
  %1234 = vmatprep.subr.bf16.mxu0 0
  %1235 = vmatpush1.bf16.msra.mxu0 0
  %1236 = vmatprep.subr.bf16.mxu0 0
  %1237 = vmatpush1.bf16.msra.mxu0 0
  %1238 = vmatprep.subr.bf16.mxu0 0
  %1239 = vmatpush1.bf16.msra.mxu0 0
  %1240 = vmatprep.mubr.bf16.mxu0 0
  %1241 = vmatmul.mubr.bf16.gmra.mrb[0].mxu0 %v1075
  %v1242 = vpop.f32.mrb[0].mxu0
  %v1243 = vadd.f32 %v1200, %v1242
  %v1244 = vpop.f32.mrb[0].mxu0
  %v1245 = vadd.f32 %v1202, %v1244
  %v1246 = vpop.f32.mrb[0].mxu0
  %v1247 = vadd.f32 %v1204, %v1246
  %v1248 = vpop.f32.mrb[0].mxu0
  %v1249 = vadd.f32 %v1206, %v1248
  %1250 = vdwg.mxu0
  %s1251 = scalar_lea.vmem [#allocation2], 128
  %1252 = vst [vmem:[%s1251] sm:$0xff] %v1157
  %1253 = vst [vmem:[%s1251 + $0x8] sm:$0xff] %v1159
  %1254 = vst [vmem:[%s1251 + $0x10] sm:$0xff] %v1243
  %1255 = vst [vmem:[%s1251 + $0x18] sm:$0xff] %v1245
  %1256 = vst [vmem:[%s1251 + $0x20] sm:$0xff] %v1161
  %1257 = vst [vmem:[%s1251 + $0x28] sm:$0xff] %v1163
  %1258 = vst [vmem:[%s1251 + $0x30] sm:$0xff] %v1247
  %1259 = vst [vmem:[%s1251 + $0x38] sm:$0xff] %v1249
  %s1260 = scalar_lea.vmem %s0, 72
  %v1261 = vld [vmem:[%s1260] sm:$0xff]
  %v1262 = vld [vmem:[%s1260 + $0x8] sm:$0xf]
  %v1263 = vld [vmem:[%s1260 + $0xc] sm:$0xff]
  %v1264 = vld [vmem:[%s1260 + $0x14] sm:$0xf]
  %v1269 = vunpack.c.l.b16 %v1261
  %v1270 = vunpack.c.h.b16 %v1261
  %v1271 = vunpack.c.l.b16 %v1262
  %v1272 = vunpack.c.l.b16 %v1263
  %v1273 = vunpack.c.h.b16 %v1263
  %v1274 = vunpack.c.l.b16 %v1264
  %v1275 = vpack.c.b16 %v1272, %v1269
  %v1276 = vpack.c.b16 %v1273, %v1270
  %v1277 = vpack.c.b16 %v1274, %v1271
  %1281 = vmatprep.subr.bf16.mxu0 %v485
  %1282 = vmatpush1.bf16.msra.mxu0 %v484
  %1283 = vmatprep.subr.bf16.mxu0 %v489
  %1284 = vmatpush1.bf16.msra.mxu0 %v488
  %1285 = vmatprep.subr.bf16.mxu0 %v493
  %1286 = vmatpush1.bf16.msra.mxu0 %v492
  %1287 = vmatprep.subr.bf16.mxu0 %v497
  %1288 = vmatpush1.bf16.msra.mxu0 %v496
  %1289 = vmatprep.subr.bf16.mxu0 %v501
  %1290 = vmatpush1.bf16.msra.mxu0 %v500
  %1291 = vmatprep.subr.bf16.mxu0 %v505
  %1292 = vmatpush1.bf16.msra.mxu0 %v504
  %1293 = vmatprep.subr.bf16.mxu0 %v509
  %1294 = vmatpush1.bf16.msra.mxu0 %v508
  %1295 = vmatprep.subr.bf16.mxu0 %v513
  %1296 = vmatpush1.bf16.msra.mxu0 %v512
  %1297 = vmatprep.subr.bf16.mxu0 %v517
  %1298 = vmatpush1.bf16.msra.mxu0 %v516
  %1299 = vmatprep.subr.bf16.mxu0 %v521
  %1300 = vmatpush1.bf16.msra.mxu0 %v520
  %1301 = vmatprep.subr.bf16.mxu0 %v525
  %1302 = vmatpush1.bf16.msra.mxu0 %v524
  %1303 = vmatprep.subr.bf16.mxu0 %v529
  %1304 = vmatpush1.bf16.msra.mxu0 %v528
  %1305 = vmatprep.subr.bf16.mxu0 %v533
  %1306 = vmatpush1.bf16.msra.mxu0 %v532
  %1307 = vmatprep.subr.bf16.mxu0 %v537
  %1308 = vmatpush1.bf16.msra.mxu0 %v536
  %1309 = vmatprep.subr.bf16.mxu0 %v541
  %1310 = vmatpush1.bf16.msra.mxu0 %v540
  %1311 = vmatprep.subr.bf16.mxu0 %v545
  %1312 = vmatpush1.bf16.msra.mxu0 %v544
  %1313 = vmatprep.mubr.bf16.mxu0 %v1276
  %1314 = vmatmul.mubr.bf16.gmra.mrb[0].mxu0 %v1275
  %v1315 = vpop.f32.mrb[0].mxu0
  %v1316 = vadd.f32 %v163, %v1315
  %v1317 = vpop.f32.mrb[0].mxu0
  %v1318 = vadd.f32 %v167, %v1317
  %v1319 = vpop.f32.mrb[0].mxu0
  %v1320 = vadd.f32 %v163, %v1319
  %v1321 = vpop.f32.mrb[0].mxu0
  %v1322 = vadd.f32 %v167, %v1321
  %1323 = vdwg.mxu0
  %1324 = vmatprep.subr.bf16.mxu0 %v549
  %1325 = vmatpush1.bf16.msra.mxu0 %v548
  %1326 = vmatprep.subr.bf16.mxu0 %v553
  %1327 = vmatpush1.bf16.msra.mxu0 %v552
  %1328 = vmatprep.subr.bf16.mxu0 %v557
  %1329 = vmatpush1.bf16.msra.mxu0 %v556
  %1330 = vmatprep.subr.bf16.mxu0 %v561
  %1331 = vmatpush1.bf16.msra.mxu0 %v560
  %1332 = vmatprep.subr.bf16.mxu0 %v565
  %1333 = vmatpush1.bf16.msra.mxu0 %v564
  %1334 = vmatprep.subr.bf16.mxu0 %v569
  %1335 = vmatpush1.bf16.msra.mxu0 %v568
  %1336 = vmatprep.subr.bf16.mxu0 %v573
  %1337 = vmatpush1.bf16.msra.mxu0 %v572
  %1338 = vmatprep.subr.bf16.mxu0 %v577
  %1339 = vmatpush1.bf16.msra.mxu0 %v576
  %1340 = vmatprep.subr.bf16.mxu0 0
  %1341 = vmatpush1.bf16.msra.mxu0 0
  %1342 = vmatprep.subr.bf16.mxu0 0
  %1343 = vmatpush1.bf16.msra.mxu0 0
  %1344 = vmatprep.subr.bf16.mxu0 0
  %1345 = vmatpush1.bf16.msra.mxu0 0
  %1346 = vmatprep.subr.bf16.mxu0 0
  %1347 = vmatpush1.bf16.msra.mxu0 0
  %1348 = vmatprep.subr.bf16.mxu0 0
  %1349 = vmatpush1.bf16.msra.mxu0 0
  %1350 = vmatprep.subr.bf16.mxu0 0
  %1351 = vmatpush1.bf16.msra.mxu0 0
  %1352 = vmatprep.subr.bf16.mxu0 0
  %1353 = vmatpush1.bf16.msra.mxu0 0
  %1354 = vmatprep.subr.bf16.mxu0 0
  %1355 = vmatpush1.bf16.msra.mxu0 0
  %1356 = vmatprep.mubr.bf16.mxu0 0
  %1357 = vmatmul.mubr.bf16.gmra.mrb[0].mxu0 %v1277
  %v1358 = vpop.f32.mrb[0].mxu0
  %v1359 = vadd.f32 %v1316, %v1358
  %v1360 = vpop.f32.mrb[0].mxu0
  %v1361 = vadd.f32 %v1318, %v1360
  %v1362 = vpop.f32.mrb[0].mxu0
  %v1363 = vadd.f32 %v1320, %v1362
  %v1364 = vpop.f32.mrb[0].mxu0
  %v1365 = vadd.f32 %v1322, %v1364
  %1366 = vdwg.mxu0
  %1367 = vmatprep.subr.bf16.mxu0 %v487
  %1368 = vmatpush1.bf16.msra.mxu0 %v486
  %1369 = vmatprep.subr.bf16.mxu0 %v491
  %1370 = vmatpush1.bf16.msra.mxu0 %v490
  %1371 = vmatprep.subr.bf16.mxu0 %v495
  %1372 = vmatpush1.bf16.msra.mxu0 %v494
  %1373 = vmatprep.subr.bf16.mxu0 %v499
  %1374 = vmatpush1.bf16.msra.mxu0 %v498
  %1375 = vmatprep.subr.bf16.mxu0 %v503
  %1376 = vmatpush1.bf16.msra.mxu0 %v502
  %1377 = vmatprep.subr.bf16.mxu0 %v507
  %1378 = vmatpush1.bf16.msra.mxu0 %v506
  %1379 = vmatprep.subr.bf16.mxu0 %v511
  %1380 = vmatpush1.bf16.msra.mxu0 %v510
  %1381 = vmatprep.subr.bf16.mxu0 %v515
  %1382 = vmatpush1.bf16.msra.mxu0 %v514
  %1383 = vmatprep.subr.bf16.mxu0 %v519
  %1384 = vmatpush1.bf16.msra.mxu0 %v518
  %1385 = vmatprep.subr.bf16.mxu0 %v523
  %1386 = vmatpush1.bf16.msra.mxu0 %v522
  %1387 = vmatprep.subr.bf16.mxu0 %v527
  %1388 = vmatpush1.bf16.msra.mxu0 %v526
  %1389 = vmatprep.subr.bf16.mxu0 %v531
  %1390 = vmatpush1.bf16.msra.mxu0 %v530
  %1391 = vmatprep.subr.bf16.mxu0 %v535
  %1392 = vmatpush1.bf16.msra.mxu0 %v534
  %1393 = vmatprep.subr.bf16.mxu0 %v539
  %1394 = vmatpush1.bf16.msra.mxu0 %v538
  %1395 = vmatprep.subr.bf16.mxu0 %v543
  %1396 = vmatpush1.bf16.msra.mxu0 %v542
  %1397 = vmatprep.subr.bf16.mxu0 %v547
  %1398 = vmatpush1.bf16.msra.mxu0 %v546
  %1399 = vmatprep.mubr.bf16.mxu0 %v1276
  %1400 = vmatmul.mubr.bf16.gmra.mrb[0].mxu0 %v1275
  %v1401 = vpop.f32.mrb[0].mxu0
  %v1402 = vadd.f32 %v171, %v1401
  %v1403 = vpop.f32.mrb[0].mxu0
  %v1404 = vadd.f32 %v175, %v1403
  %v1405 = vpop.f32.mrb[0].mxu0
  %v1406 = vadd.f32 %v171, %v1405
  %v1407 = vpop.f32.mrb[0].mxu0
  %v1408 = vadd.f32 %v175, %v1407
  %1409 = vdwg.mxu0
  %1410 = vmatprep.subr.bf16.mxu0 %v551
  %1411 = vmatpush1.bf16.msra.mxu0 %v550
  %1412 = vmatprep.subr.bf16.mxu0 %v555
  %1413 = vmatpush1.bf16.msra.mxu0 %v554
  %1414 = vmatprep.subr.bf16.mxu0 %v559
  %1415 = vmatpush1.bf16.msra.mxu0 %v558
  %1416 = vmatprep.subr.bf16.mxu0 %v563
  %1417 = vmatpush1.bf16.msra.mxu0 %v562
  %1418 = vmatprep.subr.bf16.mxu0 %v567
  %1419 = vmatpush1.bf16.msra.mxu0 %v566
  %1420 = vmatprep.subr.bf16.mxu0 %v571
  %1421 = vmatpush1.bf16.msra.mxu0 %v570
  %1422 = vmatprep.subr.bf16.mxu0 %v575
  %1423 = vmatpush1.bf16.msra.mxu0 %v574
  %1424 = vmatprep.subr.bf16.mxu0 %v579
  %1425 = vmatpush1.bf16.msra.mxu0 %v578
  %1426 = vmatprep.subr.bf16.mxu0 0
  %1427 = vmatpush1.bf16.msra.mxu0 0
  %1428 = vmatprep.subr.bf16.mxu0 0
  %1429 = vmatpush1.bf16.msra.mxu0 0
  %1430 = vmatprep.subr.bf16.mxu0 0
  %1431 = vmatpush1.bf16.msra.mxu0 0
  %1432 = vmatprep.subr.bf16.mxu0 0
  %1433 = vmatpush1.bf16.msra.mxu0 0
  %1434 = vmatprep.subr.bf16.mxu0 0
  %1435 = vmatpush1.bf16.msra.mxu0 0
  %1436 = vmatprep.subr.bf16.mxu0 0
  %1437 = vmatpush1.bf16.msra.mxu0 0
  %1438 = vmatprep.subr.bf16.mxu0 0
  %1439 = vmatpush1.bf16.msra.mxu0 0
  %1440 = vmatprep.subr.bf16.mxu0 0
  %1441 = vmatpush1.bf16.msra.mxu0 0
  %1442 = vmatprep.mubr.bf16.mxu0 0
  %1443 = vmatmul.mubr.bf16.gmra.mrb[0].mxu0 %v1277
  %v1444 = vpop.f32.mrb[0].mxu0
  %v1445 = vadd.f32 %v1402, %v1444
  %v1446 = vpop.f32.mrb[0].mxu0
  %v1447 = vadd.f32 %v1404, %v1446
  %v1448 = vpop.f32.mrb[0].mxu0
  %v1449 = vadd.f32 %v1406, %v1448
  %v1450 = vpop.f32.mrb[0].mxu0
  %v1451 = vadd.f32 %v1408, %v1450
  %1452 = vdwg.mxu0
  %s1453 = scalar_lea.vmem [#allocation2], 192
  %1454 = vst [vmem:[%s1453] sm:$0xff] %v1359
  %1455 = vst [vmem:[%s1453 + $0x8] sm:$0xff] %v1361
  %1456 = vst [vmem:[%s1453 + $0x10] sm:$0xff] %v1445
  %1457 = vst [vmem:[%s1453 + $0x18] sm:$0xff] %v1447
  %1458 = vst [vmem:[%s1453 + $0x20] sm:$0xff] %v1363
  %1459 = vst [vmem:[%s1453 + $0x28] sm:$0xff] %v1365
  %1460 = vst [vmem:[%s1453 + $0x30] sm:$0xff] %v1449
  %1461 = vst [vmem:[%s1453 + $0x38] sm:$0xff] %v1451
  %s1462 = scalar_lea.vmem %s0, 96
  %v1463 = vld [vmem:[%s1462] sm:$0xff]
  %v1464 = vld [vmem:[%s1462 + $0x8] sm:$0xf]
  %v1465 = vld [vmem:[%s1462 + $0xc] sm:$0xff]
  %v1466 = vld [vmem:[%s1462 + $0x14] sm:$0xf]
  %v1471 = vunpack.c.l.b16 %v1463
  %v1472 = vunpack.c.h.b16 %v1463
  %v1473 = vunpack.c.l.b16 %v1464
  %v1474 = vunpack.c.l.b16 %v1465
  %v1475 = vunpack.c.h.b16 %v1465
  %v1476 = vunpack.c.l.b16 %v1466
  %v1477 = vpack.c.b16 %v1474, %v1471
  %v1478 = vpack.c.b16 %v1475, %v1472
  %v1479 = vpack.c.b16 %v1476, %v1473
  %1483 = vmatprep.subr.bf16.mxu0 %v485
  %1484 = vmatpush1.bf16.msra.mxu0 %v484
  %1485 = vmatprep.subr.bf16.mxu0 %v489
  %1486 = vmatpush1.bf16.msra.mxu0 %v488
  %1487 = vmatprep.subr.bf16.mxu0 %v493
  %1488 = vmatpush1.bf16.msra.mxu0 %v492
  %1489 = vmatprep.subr.bf16.mxu0 %v497
  %1490 = vmatpush1.bf16.msra.mxu0 %v496
  %1491 = vmatprep.subr.bf16.mxu0 %v501
  %1492 = vmatpush1.bf16.msra.mxu0 %v500
  %1493 = vmatprep.subr.bf16.mxu0 %v505
  %1494 = vmatpush1.bf16.msra.mxu0 %v504
  %1495 = vmatprep.subr.bf16.mxu0 %v509
  %1496 = vmatpush1.bf16.msra.mxu0 %v508
  %1497 = vmatprep.subr.bf16.mxu0 %v513
  %1498 = vmatpush1.bf16.msra.mxu0 %v512
  %1499 = vmatprep.subr.bf16.mxu0 %v517
  %1500 = vmatpush1.bf16.msra.mxu0 %v516
  %1501 = vmatprep.subr.bf16.mxu0 %v521
  %1502 = vmatpush1.bf16.msra.mxu0 %v520
  %1503 = vmatprep.subr.bf16.mxu0 %v525
  %1504 = vmatpush1.bf16.msra.mxu0 %v524
  %1505 = vmatprep.subr.bf16.mxu0 %v529
  %1506 = vmatpush1.bf16.msra.mxu0 %v528
  %1507 = vmatprep.subr.bf16.mxu0 %v533
  %1508 = vmatpush1.bf16.msra.mxu0 %v532
  %1509 = vmatprep.subr.bf16.mxu0 %v537
  %1510 = vmatpush1.bf16.msra.mxu0 %v536
  %1511 = vmatprep.subr.bf16.mxu0 %v541
  %1512 = vmatpush1.bf16.msra.mxu0 %v540
  %1513 = vmatprep.subr.bf16.mxu0 %v545
  %1514 = vmatpush1.bf16.msra.mxu0 %v544
  %1515 = vmatprep.mubr.bf16.mxu0 %v1478
  %1516 = vmatmul.mubr.bf16.gmra.mrb[0].mxu0 %v1477
  %v1517 = vpop.f32.mrb[0].mxu0
  %v1518 = vadd.f32 %v163, %v1517
  %v1519 = vpop.f32.mrb[0].mxu0
  %v1520 = vadd.f32 %v167, %v1519
  %v1521 = vpop.f32.mrb[0].mxu0
  %v1522 = vadd.f32 %v163, %v1521
  %v1523 = vpop.f32.mrb[0].mxu0
  %v1524 = vadd.f32 %v167, %v1523
  %1525 = vdwg.mxu0
  %1526 = vmatprep.subr.bf16.mxu0 %v549
  %1527 = vmatpush1.bf16.msra.mxu0 %v548
  %1528 = vmatprep.subr.bf16.mxu0 %v553
  %1529 = vmatpush1.bf16.msra.mxu0 %v552
  %1530 = vmatprep.subr.bf16.mxu0 %v557
  %1531 = vmatpush1.bf16.msra.mxu0 %v556
  %1532 = vmatprep.subr.bf16.mxu0 %v561
  %1533 = vmatpush1.bf16.msra.mxu0 %v560
  %1534 = vmatprep.subr.bf16.mxu0 %v565
  %1535 = vmatpush1.bf16.msra.mxu0 %v564
  %1536 = vmatprep.subr.bf16.mxu0 %v569
  %1537 = vmatpush1.bf16.msra.mxu0 %v568
  %1538 = vmatprep.subr.bf16.mxu0 %v573
  %1539 = vmatpush1.bf16.msra.mxu0 %v572
  %1540 = vmatprep.subr.bf16.mxu0 %v577
  %1541 = vmatpush1.bf16.msra.mxu0 %v576
  %1542 = vmatprep.subr.bf16.mxu0 0
  %1543 = vmatpush1.bf16.msra.mxu0 0
  %1544 = vmatprep.subr.bf16.mxu0 0
  %1545 = vmatpush1.bf16.msra.mxu0 0
  %1546 = vmatprep.subr.bf16.mxu0 0
  %1547 = vmatpush1.bf16.msra.mxu0 0
  %1548 = vmatprep.subr.bf16.mxu0 0
  %1549 = vmatpush1.bf16.msra.mxu0 0
  %1550 = vmatprep.subr.bf16.mxu0 0
  %1551 = vmatpush1.bf16.msra.mxu0 0
  %1552 = vmatprep.subr.bf16.mxu0 0
  %1553 = vmatpush1.bf16.msra.mxu0 0
  %1554 = vmatprep.subr.bf16.mxu0 0
  %1555 = vmatpush1.bf16.msra.mxu0 0
  %1556 = vmatprep.subr.bf16.mxu0 0
  %1557 = vmatpush1.bf16.msra.mxu0 0
  %1558 = vmatprep.mubr.bf16.mxu0 0
  %1559 = vmatmul.mubr.bf16.gmra.mrb[0].mxu0 %v1479
  %v1560 = vpop.f32.mrb[0].mxu0
  %v1561 = vadd.f32 %v1518, %v1560
  %v1562 = vpop.f32.mrb[0].mxu0
  %v1563 = vadd.f32 %v1520, %v1562
  %v1564 = vpop.f32.mrb[0].mxu0
  %v1565 = vadd.f32 %v1522, %v1564
  %v1566 = vpop.f32.mrb[0].mxu0
  %v1567 = vadd.f32 %v1524, %v1566
  %1568 = vdwg.mxu0
  %1569 = vmatprep.subr.bf16.mxu0 %v487
  %1570 = vmatpush1.bf16.msra.mxu0 %v486
  %1571 = vmatprep.subr.bf16.mxu0 %v491
  %1572 = vmatpush1.bf16.msra.mxu0 %v490
  %1573 = vmatprep.subr.bf16.mxu0 %v495
  %1574 = vmatpush1.bf16.msra.mxu0 %v494
  %1575 = vmatprep.subr.bf16.mxu0 %v499
  %1576 = vmatpush1.bf16.msra.mxu0 %v498
  %1577 = vmatprep.subr.bf16.mxu0 %v503
  %1578 = vmatpush1.bf16.msra.mxu0 %v502
  %1579 = vmatprep.subr.bf16.mxu0 %v507
  %1580 = vmatpush1.bf16.msra.mxu0 %v506
  %1581 = vmatprep.subr.bf16.mxu0 %v511
  %1582 = vmatpush1.bf16.msra.mxu0 %v510
  %1583 = vmatprep.subr.bf16.mxu0 %v515
  %1584 = vmatpush1.bf16.msra.mxu0 %v514
  %1585 = vmatprep.subr.bf16.mxu0 %v519
  %1586 = vmatpush1.bf16.msra.mxu0 %v518
  %1587 = vmatprep.subr.bf16.mxu0 %v523
  %1588 = vmatpush1.bf16.msra.mxu0 %v522
  %1589 = vmatprep.subr.bf16.mxu0 %v527
  %1590 = vmatpush1.bf16.msra.mxu0 %v526
  %1591 = vmatprep.subr.bf16.mxu0 %v531
  %1592 = vmatpush1.bf16.msra.mxu0 %v530
  %1593 = vmatprep.subr.bf16.mxu0 %v535
  %1594 = vmatpush1.bf16.msra.mxu0 %v534
  %1595 = vmatprep.subr.bf16.mxu0 %v539
  %1596 = vmatpush1.bf16.msra.mxu0 %v538
  %1597 = vmatprep.subr.bf16.mxu0 %v543
  %1598 = vmatpush1.bf16.msra.mxu0 %v542
  %1599 = vmatprep.subr.bf16.mxu0 %v547
  %1600 = vmatpush1.bf16.msra.mxu0 %v546
  %1601 = vmatprep.mubr.bf16.mxu0 %v1478
  %1602 = vmatmul.mubr.bf16.gmra.mrb[0].mxu0 %v1477
  %v1603 = vpop.f32.mrb[0].mxu0
  %v1604 = vadd.f32 %v171, %v1603
  %v1605 = vpop.f32.mrb[0].mxu0
  %v1606 = vadd.f32 %v175, %v1605
  %v1607 = vpop.f32.mrb[0].mxu0
  %v1608 = vadd.f32 %v171, %v1607
  %v1609 = vpop.f32.mrb[0].mxu0
  %v1610 = vadd.f32 %v175, %v1609
  %1611 = vdwg.mxu0
  %1612 = vmatprep.subr.bf16.mxu0 %v551
  %1613 = vmatpush1.bf16.msra.mxu0 %v550
  %1614 = vmatprep.subr.bf16.mxu0 %v555
  %1615 = vmatpush1.bf16.msra.mxu0 %v554
  %1616 = vmatprep.subr.bf16.mxu0 %v559
  %1617 = vmatpush1.bf16.msra.mxu0 %v558
  %1618 = vmatprep.subr.bf16.mxu0 %v563
  %1619 = vmatpush1.bf16.msra.mxu0 %v562
  %1620 = vmatprep.subr.bf16.mxu0 %v567
  %1621 = vmatpush1.bf16.msra.mxu0 %v566
  %1622 = vmatprep.subr.bf16.mxu0 %v571
  %1623 = vmatpush1.bf16.msra.mxu0 %v570
  %1624 = vmatprep.subr.bf16.mxu0 %v575
  %1625 = vmatpush1.bf16.msra.mxu0 %v574
  %1626 = vmatprep.subr.bf16.mxu0 %v579
  %1627 = vmatpush1.bf16.msra.mxu0 %v578
  %1628 = vmatprep.subr.bf16.mxu0 0
  %1629 = vmatpush1.bf16.msra.mxu0 0
  %1630 = vmatprep.subr.bf16.mxu0 0
  %1631 = vmatpush1.bf16.msra.mxu0 0
  %1632 = vmatprep.subr.bf16.mxu0 0
  %1633 = vmatpush1.bf16.msra.mxu0 0
  %1634 = vmatprep.subr.bf16.mxu0 0
  %1635 = vmatpush1.bf16.msra.mxu0 0
  %1636 = vmatprep.subr.bf16.mxu0 0
  %1637 = vmatpush1.bf16.msra.mxu0 0
  %1638 = vmatprep.subr.bf16.mxu0 0
  %1639 = vmatpush1.bf16.msra.mxu0 0
  %1640 = vmatprep.subr.bf16.mxu0 0
  %1641 = vmatpush1.bf16.msra.mxu0 0
  %1642 = vmatprep.subr.bf16.mxu0 0
  %1643 = vmatpush1.bf16.msra.mxu0 0
  %1644 = vmatprep.mubr.bf16.mxu0 0
  %1645 = vmatmul.mubr.bf16.gmra.mrb[0].mxu0 %v1479
  %v1646 = vpop.f32.mrb[0].mxu0
  %v1647 = vadd.f32 %v1604, %v1646
  %v1648 = vpop.f32.mrb[0].mxu0
  %v1649 = vadd.f32 %v1606, %v1648
  %v1650 = vpop.f32.mrb[0].mxu0
  %v1651 = vadd.f32 %v1608, %v1650
  %v1652 = vpop.f32.mrb[0].mxu0
  %v1653 = vadd.f32 %v1610, %v1652
  %1654 = vdwg.mxu0
  %s1655 = scalar_lea.vmem [#allocation2], 256
  %1656 = vst [vmem:[%s1655] sm:$0xff] %v1561
  %1657 = vst [vmem:[%s1655 + $0x8] sm:$0xff] %v1563
  %1658 = vst [vmem:[%s1655 + $0x10] sm:$0xff] %v1647
  %1659 = vst [vmem:[%s1655 + $0x18] sm:$0xff] %v1649
  %1660 = vst [vmem:[%s1655 + $0x20] sm:$0xff] %v1565
  %1661 = vst [vmem:[%s1655 + $0x28] sm:$0xff] %v1567
  %1662 = vst [vmem:[%s1655 + $0x30] sm:$0xff] %v1651
  %1663 = vst [vmem:[%s1655 + $0x38] sm:$0xff] %v1653
  %s1664 = scalar_lea.vmem %s0, 120
  %v1665 = vld [vmem:[%s1664] sm:$0xff]
  %v1666 = vld [vmem:[%s1664 + $0x8] sm:$0xf]
  %v1667 = vld [vmem:[%s1664 + $0xc] sm:$0xff]
  %v1668 = vld [vmem:[%s1664 + $0x14] sm:$0xf]
  %v1673 = vunpack.c.l.b16 %v1665
  %v1674 = vunpack.c.h.b16 %v1665
  %v1675 = vunpack.c.l.b16 %v1666
  %v1676 = vunpack.c.l.b16 %v1667
  %v1677 = vunpack.c.h.b16 %v1667
  %v1678 = vunpack.c.l.b16 %v1668
  %v1679 = vpack.c.b16 %v1676, %v1673
  %v1680 = vpack.c.b16 %v1677, %v1674
  %v1681 = vpack.c.b16 %v1678, %v1675
  %1685 = vmatprep.subr.bf16.mxu0 %v485
  %1686 = vmatpush1.bf16.msra.mxu0 %v484
  %1687 = vmatprep.subr.bf16.mxu0 %v489
  %1688 = vmatpush1.bf16.msra.mxu0 %v488
  %1689 = vmatprep.subr.bf16.mxu0 %v493
  %1690 = vmatpush1.bf16.msra.mxu0 %v492
  %1691 = vmatprep.subr.bf16.mxu0 %v497
  %1692 = vmatpush1.bf16.msra.mxu0 %v496
  %1693 = vmatprep.subr.bf16.mxu0 %v501
  %1694 = vmatpush1.bf16.msra.mxu0 %v500
  %1695 = vmatprep.subr.bf16.mxu0 %v505
  %1696 = vmatpush1.bf16.msra.mxu0 %v504
  %1697 = vmatprep.subr.bf16.mxu0 %v509
  %1698 = vmatpush1.bf16.msra.mxu0 %v508
  %1699 = vmatprep.subr.bf16.mxu0 %v513
  %1700 = vmatpush1.bf16.msra.mxu0 %v512
  %1701 = vmatprep.subr.bf16.mxu0 %v517
  %1702 = vmatpush1.bf16.msra.mxu0 %v516
  %1703 = vmatprep.subr.bf16.mxu0 %v521
  %1704 = vmatpush1.bf16.msra.mxu0 %v520
  %1705 = vmatprep.subr.bf16.mxu0 %v525
  %1706 = vmatpush1.bf16.msra.mxu0 %v524
  %1707 = vmatprep.subr.bf16.mxu0 %v529
  %1708 = vmatpush1.bf16.msra.mxu0 %v528
  %1709 = vmatprep.subr.bf16.mxu0 %v533
  %1710 = vmatpush1.bf16.msra.mxu0 %v532
  %1711 = vmatprep.subr.bf16.mxu0 %v537
  %1712 = vmatpush1.bf16.msra.mxu0 %v536
  %1713 = vmatprep.subr.bf16.mxu0 %v541
  %1714 = vmatpush1.bf16.msra.mxu0 %v540
  %1715 = vmatprep.subr.bf16.mxu0 %v545
  %1716 = vmatpush1.bf16.msra.mxu0 %v544
  %1717 = vmatprep.mubr.bf16.mxu0 %v1680
  %1718 = vmatmul.mubr.bf16.gmra.mrb[0].mxu0 %v1679
  %v1719 = vpop.f32.mrb[0].mxu0
  %v1720 = vadd.f32 %v163, %v1719
  %v1721 = vpop.f32.mrb[0].mxu0
  %v1722 = vadd.f32 %v167, %v1721
  %v1723 = vpop.f32.mrb[0].mxu0
  %v1724 = vadd.f32 %v163, %v1723
  %v1725 = vpop.f32.mrb[0].mxu0
  %v1726 = vadd.f32 %v167, %v1725
  %1727 = vdwg.mxu0
  %1728 = vmatprep.subr.bf16.mxu0 %v549
  %1729 = vmatpush1.bf16.msra.mxu0 %v548
  %1730 = vmatprep.subr.bf16.mxu0 %v553
  %1731 = vmatpush1.bf16.msra.mxu0 %v552
  %1732 = vmatprep.subr.bf16.mxu0 %v557
  %1733 = vmatpush1.bf16.msra.mxu0 %v556
  %1734 = vmatprep.subr.bf16.mxu0 %v561
  %1735 = vmatpush1.bf16.msra.mxu0 %v560
  %1736 = vmatprep.subr.bf16.mxu0 %v565
  %1737 = vmatpush1.bf16.msra.mxu0 %v564
  %1738 = vmatprep.subr.bf16.mxu0 %v569
  %1739 = vmatpush1.bf16.msra.mxu0 %v568
  %1740 = vmatprep.subr.bf16.mxu0 %v573
  %1741 = vmatpush1.bf16.msra.mxu0 %v572
  %1742 = vmatprep.subr.bf16.mxu0 %v577
  %1743 = vmatpush1.bf16.msra.mxu0 %v576
  %1744 = vmatprep.subr.bf16.mxu0 0
  %1745 = vmatpush1.bf16.msra.mxu0 0
  %1746 = vmatprep.subr.bf16.mxu0 0
  %1747 = vmatpush1.bf16.msra.mxu0 0
  %1748 = vmatprep.subr.bf16.mxu0 0
  %1749 = vmatpush1.bf16.msra.mxu0 0
  %1750 = vmatprep.subr.bf16.mxu0 0
  %1751 = vmatpush1.bf16.msra.mxu0 0
  %1752 = vmatprep.subr.bf16.mxu0 0
  %1753 = vmatpush1.bf16.msra.mxu0 0
  %1754 = vmatprep.subr.bf16.mxu0 0
  %1755 = vmatpush1.bf16.msra.mxu0 0
  %1756 = vmatprep.subr.bf16.mxu0 0
  %1757 = vmatpush1.bf16.msra.mxu0 0
  %1758 = vmatprep.subr.bf16.mxu0 0
  %1759 = vmatpush1.bf16.msra.mxu0 0
  %1760 = vmatprep.mubr.bf16.mxu0 0
  %1761 = vmatmul.mubr.bf16.gmra.mrb[0].mxu0 %v1681
  %v1762 = vpop.f32.mrb[0].mxu0
  %v1763 = vadd.f32 %v1720, %v1762
  %v1764 = vpop.f32.mrb[0].mxu0
  %v1765 = vadd.f32 %v1722, %v1764
  %v1766 = vpop.f32.mrb[0].mxu0
  %v1767 = vadd.f32 %v1724, %v1766
  %v1768 = vpop.f32.mrb[0].mxu0
  %v1769 = vadd.f32 %v1726, %v1768
  %1770 = vdwg.mxu0
  %1771 = vmatprep.subr.bf16.mxu0 %v487
  %1772 = vmatpush1.bf16.msra.mxu0 %v486
  %1773 = vmatprep.subr.bf16.mxu0 %v491
  %1774 = vmatpush1.bf16.msra.mxu0 %v490
  %1775 = vmatprep.subr.bf16.mxu0 %v495
  %1776 = vmatpush1.bf16.msra.mxu0 %v494
  %1777 = vmatprep.subr.bf16.mxu0 %v499
  %1778 = vmatpush1.bf16.msra.mxu0 %v498
  %1779 = vmatprep.subr.bf16.mxu0 %v503
  %1780 = vmatpush1.bf16.msra.mxu0 %v502
  %1781 = vmatprep.subr.bf16.mxu0 %v507
  %1782 = vmatpush1.bf16.msra.mxu0 %v506
  %1783 = vmatprep.subr.bf16.mxu0 %v511
  %1784 = vmatpush1.bf16.msra.mxu0 %v510
  %1785 = vmatprep.subr.bf16.mxu0 %v515
  %1786 = vmatpush1.bf16.msra.mxu0 %v514
  %1787 = vmatprep.subr.bf16.mxu0 %v519
  %1788 = vmatpush1.bf16.msra.mxu0 %v518
  %1789 = vmatprep.subr.bf16.mxu0 %v523
  %1790 = vmatpush1.bf16.msra.mxu0 %v522
  %1791 = vmatprep.subr.bf16.mxu0 %v527
  %1792 = vmatpush1.bf16.msra.mxu0 %v526
  %1793 = vmatprep.subr.bf16.mxu0 %v531
  %1794 = vmatpush1.bf16.msra.mxu0 %v530
  %1795 = vmatprep.subr.bf16.mxu0 %v535
  %1796 = vmatpush1.bf16.msra.mxu0 %v534
  %1797 = vmatprep.subr.bf16.mxu0 %v539
  %1798 = vmatpush1.bf16.msra.mxu0 %v538
  %1799 = vmatprep.subr.bf16.mxu0 %v543
  %1800 = vmatpush1.bf16.msra.mxu0 %v542
  %1801 = vmatprep.subr.bf16.mxu0 %v547
  %1802 = vmatpush1.bf16.msra.mxu0 %v546
  %1803 = vmatprep.mubr.bf16.mxu0 %v1680
  %1804 = vmatmul.mubr.bf16.gmra.mrb[0].mxu0 %v1679
  %v1805 = vpop.f32.mrb[0].mxu0
  %v1806 = vadd.f32 %v171, %v1805
  %v1807 = vpop.f32.mrb[0].mxu0
  %v1808 = vadd.f32 %v175, %v1807
  %v1809 = vpop.f32.mrb[0].mxu0
  %v1810 = vadd.f32 %v171, %v1809
  %v1811 = vpop.f32.mrb[0].mxu0
  %v1812 = vadd.f32 %v175, %v1811
  %1813 = vdwg.mxu0
  %1814 = vmatprep.subr.bf16.mxu0 %v551
  %1815 = vmatpush1.bf16.msra.mxu0 %v550
  %1816 = vmatprep.subr.bf16.mxu0 %v555
  %1817 = vmatpush1.bf16.msra.mxu0 %v554
  %1818 = vmatprep.subr.bf16.mxu0 %v559
  %1819 = vmatpush1.bf16.msra.mxu0 %v558
  %1820 = vmatprep.subr.bf16.mxu0 %v563
  %1821 = vmatpush1.bf16.msra.mxu0 %v562
  %1822 = vmatprep.subr.bf16.mxu0 %v567
  %1823 = vmatpush1.bf16.msra.mxu0 %v566
  %1824 = vmatprep.subr.bf16.mxu0 %v571
  %1825 = vmatpush1.bf16.msra.mxu0 %v570
  %1826 = vmatprep.subr.bf16.mxu0 %v575
  %1827 = vmatpush1.bf16.msra.mxu0 %v574
  %1828 = vmatprep.subr.bf16.mxu0 %v579
  %1829 = vmatpush1.bf16.msra.mxu0 %v578
  %1830 = vmatprep.subr.bf16.mxu0 0
  %1831 = vmatpush1.bf16.msra.mxu0 0
  %1832 = vmatprep.subr.bf16.mxu0 0
  %1833 = vmatpush1.bf16.msra.mxu0 0
  %1834 = vmatprep.subr.bf16.mxu0 0
  %1835 = vmatpush1.bf16.msra.mxu0 0
  %1836 = vmatprep.subr.bf16.mxu0 0
  %1837 = vmatpush1.bf16.msra.mxu0 0
  %1838 = vmatprep.subr.bf16.mxu0 0
  %1839 = vmatpush1.bf16.msra.mxu0 0
  %1840 = vmatprep.subr.bf16.mxu0 0
  %1841 = vmatpush1.bf16.msra.mxu0 0
  %1842 = vmatprep.subr.bf16.mxu0 0
  %1843 = vmatpush1.bf16.msra.mxu0 0
  %1844 = vmatprep.subr.bf16.mxu0 0
  %1845 = vmatpush1.bf16.msra.mxu0 0
  %1846 = vmatprep.mubr.bf16.mxu0 0
  %1847 = vmatmul.mubr.bf16.gmra.mrb[0].mxu0 %v1681
  %v1848 = vpop.f32.mrb[0].mxu0
  %v1849 = vadd.f32 %v1806, %v1848
  %v1850 = vpop.f32.mrb[0].mxu0
  %v1851 = vadd.f32 %v1808, %v1850
  %v1852 = vpop.f32.mrb[0].mxu0
  %v1853 = vadd.f32 %v1810, %v1852
  %v1854 = vpop.f32.mrb[0].mxu0
  %v1855 = vadd.f32 %v1812, %v1854
  %1856 = vdwg.mxu0
  %s1857 = scalar_lea.vmem [#allocation2], 320
  %1858 = vst [vmem:[%s1857] sm:$0xff] %v1763
  %1859 = vst [vmem:[%s1857 + $0x8] sm:$0xff] %v1765
  %1860 = vst [vmem:[%s1857 + $0x10] sm:$0xff] %v1849
  %1861 = vst [vmem:[%s1857 + $0x18] sm:$0xff] %v1851
  %1862 = vst [vmem:[%s1857 + $0x20] sm:$0xff] %v1767
  %1863 = vst [vmem:[%s1857 + $0x28] sm:$0xff] %v1769
  %1864 = vst [vmem:[%s1857 + $0x30] sm:$0xff] %v1853
  %1865 = vst [vmem:[%s1857 + $0x38] sm:$0xff] %v1855
  %s1866 = scalar_lea.vmem %s0, 144
  %v1867 = vld [vmem:[%s1866] sm:$0xff]
  %v1868 = vld [vmem:[%s1866 + $0x8] sm:$0xf]
  %v1869 = vld [vmem:[%s1866 + $0xc] sm:$0xff]
  %v1870 = vld [vmem:[%s1866 + $0x14] sm:$0xf]
  %v1875 = vunpack.c.l.b16 %v1867
  %v1876 = vunpack.c.h.b16 %v1867
  %v1877 = vunpack.c.l.b16 %v1868
  %v1878 = vunpack.c.l.b16 %v1869
  %v1879 = vunpack.c.h.b16 %v1869
  %v1880 = vunpack.c.l.b16 %v1870
  %v1881 = vpack.c.b16 %v1878, %v1875
  %v1882 = vpack.c.b16 %v1879, %v1876
  %v1883 = vpack.c.b16 %v1880, %v1877
  %1887 = vmatprep.subr.bf16.mxu0 %v485
  %1888 = vmatpush1.bf16.msra.mxu0 %v484
  %1889 = vmatprep.subr.bf16.mxu0 %v489
  %1890 = vmatpush1.bf16.msra.mxu0 %v488
  %1891 = vmatprep.subr.bf16.mxu0 %v493
  %1892 = vmatpush1.bf16.msra.mxu0 %v492
  %1893 = vmatprep.subr.bf16.mxu0 %v497
  %1894 = vmatpush1.bf16.msra.mxu0 %v496
  %1895 = vmatprep.subr.bf16.mxu0 %v501
  %1896 = vmatpush1.bf16.msra.mxu0 %v500
  %1897 = vmatprep.subr.bf16.mxu0 %v505
  %1898 = vmatpush1.bf16.msra.mxu0 %v504
  %1899 = vmatprep.subr.bf16.mxu0 %v509
  %1900 = vmatpush1.bf16.msra.mxu0 %v508
  %1901 = vmatprep.subr.bf16.mxu0 %v513
  %1902 = vmatpush1.bf16.msra.mxu0 %v512
  %1903 = vmatprep.subr.bf16.mxu0 %v517
  %1904 = vmatpush1.bf16.msra.mxu0 %v516
  %1905 = vmatprep.subr.bf16.mxu0 %v521
  %1906 = vmatpush1.bf16.msra.mxu0 %v520
  %1907 = vmatprep.subr.bf16.mxu0 %v525
  %1908 = vmatpush1.bf16.msra.mxu0 %v524
  %1909 = vmatprep.subr.bf16.mxu0 %v529
  %1910 = vmatpush1.bf16.msra.mxu0 %v528
  %1911 = vmatprep.subr.bf16.mxu0 %v533
  %1912 = vmatpush1.bf16.msra.mxu0 %v532
  %1913 = vmatprep.subr.bf16.mxu0 %v537
  %1914 = vmatpush1.bf16.msra.mxu0 %v536
  %1915 = vmatprep.subr.bf16.mxu0 %v541
  %1916 = vmatpush1.bf16.msra.mxu0 %v540
  %1917 = vmatprep.subr.bf16.mxu0 %v545
  %1918 = vmatpush1.bf16.msra.mxu0 %v544
  %1919 = vmatprep.mubr.bf16.mxu0 %v1882
  %1920 = vmatmul.mubr.bf16.gmra.mrb[0].mxu0 %v1881
  %v1921 = vpop.f32.mrb[0].mxu0
  %v1922 = vadd.f32 %v163, %v1921
  %v1923 = vpop.f32.mrb[0].mxu0
  %v1924 = vadd.f32 %v167, %v1923
  %v1925 = vpop.f32.mrb[0].mxu0
  %v1926 = vadd.f32 %v163, %v1925
  %v1927 = vpop.f32.mrb[0].mxu0
  %v1928 = vadd.f32 %v167, %v1927
  %1929 = vdwg.mxu0
  %1930 = vmatprep.subr.bf16.mxu0 %v549
  %1931 = vmatpush1.bf16.msra.mxu0 %v548
  %1932 = vmatprep.subr.bf16.mxu0 %v553
  %1933 = vmatpush1.bf16.msra.mxu0 %v552
  %1934 = vmatprep.subr.bf16.mxu0 %v557
  %1935 = vmatpush1.bf16.msra.mxu0 %v556
  %1936 = vmatprep.subr.bf16.mxu0 %v561
  %1937 = vmatpush1.bf16.msra.mxu0 %v560
  %1938 = vmatprep.subr.bf16.mxu0 %v565
  %1939 = vmatpush1.bf16.msra.mxu0 %v564
  %1940 = vmatprep.subr.bf16.mxu0 %v569
  %1941 = vmatpush1.bf16.msra.mxu0 %v568
  %1942 = vmatprep.subr.bf16.mxu0 %v573
  %1943 = vmatpush1.bf16.msra.mxu0 %v572
  %1944 = vmatprep.subr.bf16.mxu0 %v577
  %1945 = vmatpush1.bf16.msra.mxu0 %v576
  %1946 = vmatprep.subr.bf16.mxu0 0
  %1947 = vmatpush1.bf16.msra.mxu0 0
  %1948 = vmatprep.subr.bf16.mxu0 0
  %1949 = vmatpush1.bf16.msra.mxu0 0
  %1950 = vmatprep.subr.bf16.mxu0 0
  %1951 = vmatpush1.bf16.msra.mxu0 0
  %1952 = vmatprep.subr.bf16.mxu0 0
  %1953 = vmatpush1.bf16.msra.mxu0 0
  %1954 = vmatprep.subr.bf16.mxu0 0
  %1955 = vmatpush1.bf16.msra.mxu0 0
  %1956 = vmatprep.subr.bf16.mxu0 0
  %1957 = vmatpush1.bf16.msra.mxu0 0
  %1958 = vmatprep.subr.bf16.mxu0 0
  %1959 = vmatpush1.bf16.msra.mxu0 0
  %1960 = vmatprep.subr.bf16.mxu0 0
  %1961 = vmatpush1.bf16.msra.mxu0 0
  %1962 = vmatprep.mubr.bf16.mxu0 0
  %1963 = vmatmul.mubr.bf16.gmra.mrb[0].mxu0 %v1883
  %v1964 = vpop.f32.mrb[0].mxu0
  %v1965 = vadd.f32 %v1922, %v1964
  %v1966 = vpop.f32.mrb[0].mxu0
  %v1967 = vadd.f32 %v1924, %v1966
  %v1968 = vpop.f32.mrb[0].mxu0
  %v1969 = vadd.f32 %v1926, %v1968
  %v1970 = vpop.f32.mrb[0].mxu0
  %v1971 = vadd.f32 %v1928, %v1970
  %1972 = vdwg.mxu0
  %1973 = vmatprep.subr.bf16.mxu0 %v487
  %1974 = vmatpush1.bf16.msra.mxu0 %v486
  %1975 = vmatprep.subr.bf16.mxu0 %v491
  %1976 = vmatpush1.bf16.msra.mxu0 %v490
  %1977 = vmatprep.subr.bf16.mxu0 %v495
  %1978 = vmatpush1.bf16.msra.mxu0 %v494
  %1979 = vmatprep.subr.bf16.mxu0 %v499
  %1980 = vmatpush1.bf16.msra.mxu0 %v498
  %1981 = vmatprep.subr.bf16.mxu0 %v503
  %1982 = vmatpush1.bf16.msra.mxu0 %v502
  %1983 = vmatprep.subr.bf16.mxu0 %v507
  %1984 = vmatpush1.bf16.msra.mxu0 %v506
  %1985 = vmatprep.subr.bf16.mxu0 %v511
  %1986 = vmatpush1.bf16.msra.mxu0 %v510
  %1987 = vmatprep.subr.bf16.mxu0 %v515
  %1988 = vmatpush1.bf16.msra.mxu0 %v514
  %1989 = vmatprep.subr.bf16.mxu0 %v519
  %1990 = vmatpush1.bf16.msra.mxu0 %v518
  %1991 = vmatprep.subr.bf16.mxu0 %v523
  %1992 = vmatpush1.bf16.msra.mxu0 %v522
  %1993 = vmatprep.subr.bf16.mxu0 %v527
  %1994 = vmatpush1.bf16.msra.mxu0 %v526
  %1995 = vmatprep.subr.bf16.mxu0 %v531
  %1996 = vmatpush1.bf16.msra.mxu0 %v530
  %1997 = vmatprep.subr.bf16.mxu0 %v535
  %1998 = vmatpush1.bf16.msra.mxu0 %v534
  %1999 = vmatprep.subr.bf16.mxu0 %v539
  %2000 = vmatpush1.bf16.msra.mxu0 %v538
  %2001 = vmatprep.subr.bf16.mxu0 %v543
  %2002 = vmatpush1.bf16.msra.mxu0 %v542
  %2003 = vmatprep.subr.bf16.mxu0 %v547
  %2004 = vmatpush1.bf16.msra.mxu0 %v546
  %2005 = vmatprep.mubr.bf16.mxu0 %v1882
  %2006 = vmatmul.mubr.bf16.gmra.mrb[0].mxu0 %v1881
  %v2007 = vpop.f32.mrb[0].mxu0
  %v2008 = vadd.f32 %v171, %v2007
  %v2009 = vpop.f32.mrb[0].mxu0
  %v2010 = vadd.f32 %v175, %v2009
  %v2011 = vpop.f32.mrb[0].mxu0
  %v2012 = vadd.f32 %v171, %v2011
  %v2013 = vpop.f32.mrb[0].mxu0
  %v2014 = vadd.f32 %v175, %v2013
  %2015 = vdwg.mxu0
  %2016 = vmatprep.subr.bf16.mxu0 %v551
  %2017 = vmatpush1.bf16.msra.mxu0 %v550
  %2018 = vmatprep.subr.bf16.mxu0 %v555
  %2019 = vmatpush1.bf16.msra.mxu0 %v554
  %2020 = vmatprep.subr.bf16.mxu0 %v559
  %2021 = vmatpush1.bf16.msra.mxu0 %v558
  %2022 = vmatprep.subr.bf16.mxu0 %v563
  %2023 = vmatpush1.bf16.msra.mxu0 %v562
  %2024 = vmatprep.subr.bf16.mxu0 %v567
  %2025 = vmatpush1.bf16.msra.mxu0 %v566
  %2026 = vmatprep.subr.bf16.mxu0 %v571
  %2027 = vmatpush1.bf16.msra.mxu0 %v570
  %2028 = vmatprep.subr.bf16.mxu0 %v575
  %2029 = vmatpush1.bf16.msra.mxu0 %v574
  %2030 = vmatprep.subr.bf16.mxu0 %v579
  %2031 = vmatpush1.bf16.msra.mxu0 %v578
  %2032 = vmatprep.subr.bf16.mxu0 0
  %2033 = vmatpush1.bf16.msra.mxu0 0
  %2034 = vmatprep.subr.bf16.mxu0 0
  %2035 = vmatpush1.bf16.msra.mxu0 0
  %2036 = vmatprep.subr.bf16.mxu0 0
  %2037 = vmatpush1.bf16.msra.mxu0 0
  %2038 = vmatprep.subr.bf16.mxu0 0
  %2039 = vmatpush1.bf16.msra.mxu0 0
  %2040 = vmatprep.subr.bf16.mxu0 0
  %2041 = vmatpush1.bf16.msra.mxu0 0
  %2042 = vmatprep.subr.bf16.mxu0 0
  %2043 = vmatpush1.bf16.msra.mxu0 0
  %2044 = vmatprep.subr.bf16.mxu0 0
  %2045 = vmatpush1.bf16.msra.mxu0 0
  %2046 = vmatprep.subr.bf16.mxu0 0
  %2047 = vmatpush1.bf16.msra.mxu0 0
  %2048 = vmatprep.mubr.bf16.mxu0 0
  %2049 = vmatmul.mubr.bf16.gmra.mrb[0].mxu0 %v1883
  %v2050 = vpop.f32.mrb[0].mxu0
  %v2051 = vadd.f32 %v2008, %v2050
  %v2052 = vpop.f32.mrb[0].mxu0
  %v2053 = vadd.f32 %v2010, %v2052
  %v2054 = vpop.f32.mrb[0].mxu0
  %v2055 = vadd.f32 %v2012, %v2054
  %v2056 = vpop.f32.mrb[0].mxu0
  %v2057 = vadd.f32 %v2014, %v2056
  %2058 = vdwg.mxu0
  %s2059 = scalar_lea.vmem [#allocation2], 384
  %2060 = vst [vmem:[%s2059] sm:$0xff] %v1965
  %2061 = vst [vmem:[%s2059 + $0x8] sm:$0xff] %v1967
  %2062 = vst [vmem:[%s2059 + $0x10] sm:$0xff] %v2051
  %2063 = vst [vmem:[%s2059 + $0x18] sm:$0xff] %v2053
  %2064 = vst [vmem:[%s2059 + $0x20] sm:$0xff] %v1969
  %2065 = vst [vmem:[%s2059 + $0x28] sm:$0xff] %v1971
  %2066 = vst [vmem:[%s2059 + $0x30] sm:$0xff] %v2055
  %2067 = vst [vmem:[%s2059 + $0x38] sm:$0xff] %v2057
  %s2068 = scalar_lea.vmem %s0, 168
  %v2069 = vld [vmem:[%s2068] sm:$0xff]
  %v2070 = vld [vmem:[%s2068 + $0x8] sm:$0xf]
  %v2071 = vld [vmem:[%s2068 + $0xc] sm:$0xff]
  %v2072 = vld [vmem:[%s2068 + $0x14] sm:$0xf]
  %v2077 = vunpack.c.l.b16 %v2069
  %v2078 = vunpack.c.h.b16 %v2069
  %v2079 = vunpack.c.l.b16 %v2070
  %v2080 = vunpack.c.l.b16 %v2071
  %v2081 = vunpack.c.h.b16 %v2071
  %v2082 = vunpack.c.l.b16 %v2072
  %v2083 = vpack.c.b16 %v2080, %v2077
  %v2084 = vpack.c.b16 %v2081, %v2078
  %v2085 = vpack.c.b16 %v2082, %v2079
  %2089 = vmatprep.subr.bf16.mxu0 %v485
  %2090 = vmatpush1.bf16.msra.mxu0 %v484
  %2091 = vmatprep.subr.bf16.mxu0 %v489
  %2092 = vmatpush1.bf16.msra.mxu0 %v488
  %2093 = vmatprep.subr.bf16.mxu0 %v493
  %2094 = vmatpush1.bf16.msra.mxu0 %v492
  %2095 = vmatprep.subr.bf16.mxu0 %v497
  %2096 = vmatpush1.bf16.msra.mxu0 %v496
  %2097 = vmatprep.subr.bf16.mxu0 %v501
  %2098 = vmatpush1.bf16.msra.mxu0 %v500
  %2099 = vmatprep.subr.bf16.mxu0 %v505
  %2100 = vmatpush1.bf16.msra.mxu0 %v504
  %2101 = vmatprep.subr.bf16.mxu0 %v509
  %2102 = vmatpush1.bf16.msra.mxu0 %v508
  %2103 = vmatprep.subr.bf16.mxu0 %v513
  %2104 = vmatpush1.bf16.msra.mxu0 %v512
  %2105 = vmatprep.subr.bf16.mxu0 %v517
  %2106 = vmatpush1.bf16.msra.mxu0 %v516
  %2107 = vmatprep.subr.bf16.mxu0 %v521
  %2108 = vmatpush1.bf16.msra.mxu0 %v520
  %2109 = vmatprep.subr.bf16.mxu0 %v525
  %2110 = vmatpush1.bf16.msra.mxu0 %v524
  %2111 = vmatprep.subr.bf16.mxu0 %v529
  %2112 = vmatpush1.bf16.msra.mxu0 %v528
  %2113 = vmatprep.subr.bf16.mxu0 %v533
  %2114 = vmatpush1.bf16.msra.mxu0 %v532
  %2115 = vmatprep.subr.bf16.mxu0 %v537
  %2116 = vmatpush1.bf16.msra.mxu0 %v536
  %2117 = vmatprep.subr.bf16.mxu0 %v541
  %2118 = vmatpush1.bf16.msra.mxu0 %v540
  %2119 = vmatprep.subr.bf16.mxu0 %v545
  %2120 = vmatpush1.bf16.msra.mxu0 %v544
  %2121 = vmatprep.mubr.bf16.mxu0 %v2084
  %2122 = vmatmul.mubr.bf16.gmra.mrb[0].mxu0 %v2083
  %v2123 = vpop.f32.mrb[0].mxu0
  %v2124 = vadd.f32 %v163, %v2123
  %v2125 = vpop.f32.mrb[0].mxu0
  %v2126 = vadd.f32 %v167, %v2125
  %v2127 = vpop.f32.mrb[0].mxu0
  %v2128 = vadd.f32 %v163, %v2127
  %v2129 = vpop.f32.mrb[0].mxu0
  %v2130 = vadd.f32 %v167, %v2129
  %2131 = vdwg.mxu0
  %2132 = vmatprep.subr.bf16.mxu0 %v549
  %2133 = vmatpush1.bf16.msra.mxu0 %v548
  %2134 = vmatprep.subr.bf16.mxu0 %v553
  %2135 = vmatpush1.bf16.msra.mxu0 %v552
  %2136 = vmatprep.subr.bf16.mxu0 %v557
  %2137 = vmatpush1.bf16.msra.mxu0 %v556
  %2138 = vmatprep.subr.bf16.mxu0 %v561
  %2139 = vmatpush1.bf16.msra.mxu0 %v560
  %2140 = vmatprep.subr.bf16.mxu0 %v565
  %2141 = vmatpush1.bf16.msra.mxu0 %v564
  %2142 = vmatprep.subr.bf16.mxu0 %v569
  %2143 = vmatpush1.bf16.msra.mxu0 %v568
  %2144 = vmatprep.subr.bf16.mxu0 %v573
  %2145 = vmatpush1.bf16.msra.mxu0 %v572
  %2146 = vmatprep.subr.bf16.mxu0 %v577
  %2147 = vmatpush1.bf16.msra.mxu0 %v576
  %2148 = vmatprep.subr.bf16.mxu0 0
  %2149 = vmatpush1.bf16.msra.mxu0 0
  %2150 = vmatprep.subr.bf16.mxu0 0
  %2151 = vmatpush1.bf16.msra.mxu0 0
  %2152 = vmatprep.subr.bf16.mxu0 0
  %2153 = vmatpush1.bf16.msra.mxu0 0
  %2154 = vmatprep.subr.bf16.mxu0 0
  %2155 = vmatpush1.bf16.msra.mxu0 0
  %2156 = vmatprep.subr.bf16.mxu0 0
  %2157 = vmatpush1.bf16.msra.mxu0 0
  %2158 = vmatprep.subr.bf16.mxu0 0
  %2159 = vmatpush1.bf16.msra.mxu0 0
  %2160 = vmatprep.subr.bf16.mxu0 0
  %2161 = vmatpush1.bf16.msra.mxu0 0
  %2162 = vmatprep.subr.bf16.mxu0 0
  %2163 = vmatpush1.bf16.msra.mxu0 0
  %2164 = vmatprep.mubr.bf16.mxu0 0
  %2165 = vmatmul.mubr.bf16.gmra.mrb[0].mxu0 %v2085
  %v2166 = vpop.f32.mrb[0].mxu0
  %v2167 = vadd.f32 %v2124, %v2166
  %v2168 = vpop.f32.mrb[0].mxu0
  %v2169 = vadd.f32 %v2126, %v2168
  %v2170 = vpop.f32.mrb[0].mxu0
  %v2171 = vadd.f32 %v2128, %v2170
  %v2172 = vpop.f32.mrb[0].mxu0
  %v2173 = vadd.f32 %v2130, %v2172
  %2174 = vdwg.mxu0
  %2175 = vmatprep.subr.bf16.mxu0 %v487
  %2176 = vmatpush1.bf16.msra.mxu0 %v486
  %2177 = vmatprep.subr.bf16.mxu0 %v491
  %2178 = vmatpush1.bf16.msra.mxu0 %v490
  %2179 = vmatprep.subr.bf16.mxu0 %v495
  %2180 = vmatpush1.bf16.msra.mxu0 %v494
  %2181 = vmatprep.subr.bf16.mxu0 %v499
  %2182 = vmatpush1.bf16.msra.mxu0 %v498
  %2183 = vmatprep.subr.bf16.mxu0 %v503
  %2184 = vmatpush1.bf16.msra.mxu0 %v502
  %2185 = vmatprep.subr.bf16.mxu0 %v507
  %2186 = vmatpush1.bf16.msra.mxu0 %v506
  %2187 = vmatprep.subr.bf16.mxu0 %v511
  %2188 = vmatpush1.bf16.msra.mxu0 %v510
  %2189 = vmatprep.subr.bf16.mxu0 %v515
  %2190 = vmatpush1.bf16.msra.mxu0 %v514
  %2191 = vmatprep.subr.bf16.mxu0 %v519
  %2192 = vmatpush1.bf16.msra.mxu0 %v518
  %2193 = vmatprep.subr.bf16.mxu0 %v523
  %2194 = vmatpush1.bf16.msra.mxu0 %v522
  %2195 = vmatprep.subr.bf16.mxu0 %v527
  %2196 = vmatpush1.bf16.msra.mxu0 %v526
  %2197 = vmatprep.subr.bf16.mxu0 %v531
  %2198 = vmatpush1.bf16.msra.mxu0 %v530
  %2199 = vmatprep.subr.bf16.mxu0 %v535
  %2200 = vmatpush1.bf16.msra.mxu0 %v534
  %2201 = vmatprep.subr.bf16.mxu0 %v539
  %2202 = vmatpush1.bf16.msra.mxu0 %v538
  %2203 = vmatprep.subr.bf16.mxu0 %v543
  %2204 = vmatpush1.bf16.msra.mxu0 %v542
  %2205 = vmatprep.subr.bf16.mxu0 %v547
  %2206 = vmatpush1.bf16.msra.mxu0 %v546
  %2207 = vmatprep.mubr.bf16.mxu0 %v2084
  %2208 = vmatmul.mubr.bf16.gmra.mrb[0].mxu0 %v2083
  %v2209 = vpop.f32.mrb[0].mxu0
  %v2210 = vadd.f32 %v171, %v2209
  %v2211 = vpop.f32.mrb[0].mxu0
  %v2212 = vadd.f32 %v175, %v2211
  %v2213 = vpop.f32.mrb[0].mxu0
  %v2214 = vadd.f32 %v171, %v2213
  %v2215 = vpop.f32.mrb[0].mxu0
  %v2216 = vadd.f32 %v175, %v2215
  %2217 = vdwg.mxu0
  %2218 = vmatprep.subr.bf16.mxu0 %v551
  %2219 = vmatpush1.bf16.msra.mxu0 %v550
  %2220 = vmatprep.subr.bf16.mxu0 %v555
  %2221 = vmatpush1.bf16.msra.mxu0 %v554
  %2222 = vmatprep.subr.bf16.mxu0 %v559
  %2223 = vmatpush1.bf16.msra.mxu0 %v558
  %2224 = vmatprep.subr.bf16.mxu0 %v563
  %2225 = vmatpush1.bf16.msra.mxu0 %v562
  %2226 = vmatprep.subr.bf16.mxu0 %v567
  %2227 = vmatpush1.bf16.msra.mxu0 %v566
  %2228 = vmatprep.subr.bf16.mxu0 %v571
  %2229 = vmatpush1.bf16.msra.mxu0 %v570
  %2230 = vmatprep.subr.bf16.mxu0 %v575
  %2231 = vmatpush1.bf16.msra.mxu0 %v574
  %2232 = vmatprep.subr.bf16.mxu0 %v579
  %2233 = vmatpush1.bf16.msra.mxu0 %v578
  %2234 = vmatprep.subr.bf16.mxu0 0
  %2235 = vmatpush1.bf16.msra.mxu0 0
  %2236 = vmatprep.subr.bf16.mxu0 0
  %2237 = vmatpush1.bf16.msra.mxu0 0
  %2238 = vmatprep.subr.bf16.mxu0 0
  %2239 = vmatpush1.bf16.msra.mxu0 0
  %2240 = vmatprep.subr.bf16.mxu0 0
  %2241 = vmatpush1.bf16.msra.mxu0 0
  %2242 = vmatprep.subr.bf16.mxu0 0
  %2243 = vmatpush1.bf16.msra.mxu0 0
  %2244 = vmatprep.subr.bf16.mxu0 0
  %2245 = vmatpush1.bf16.msra.mxu0 0
  %2246 = vmatprep.subr.bf16.mxu0 0
  %2247 = vmatpush1.bf16.msra.mxu0 0
  %2248 = vmatprep.subr.bf16.mxu0 0
  %2249 = vmatpush1.bf16.msra.mxu0 0
  %2250 = vmatprep.mubr.bf16.mxu0 0
  %2251 = vmatmul.mubr.bf16.gmra.mrb[0].mxu0 %v2085
  %v2252 = vpop.f32.mrb[0].mxu0
  %v2253 = vadd.f32 %v2210, %v2252
  %v2254 = vpop.f32.mrb[0].mxu0
  %v2255 = vadd.f32 %v2212, %v2254
  %v2256 = vpop.f32.mrb[0].mxu0
  %v2257 = vadd.f32 %v2214, %v2256
  %v2258 = vpop.f32.mrb[0].mxu0
  %v2259 = vadd.f32 %v2216, %v2258
  %2260 = vdwg.mxu0
  %s2261 = scalar_lea.vmem [#allocation2], 448
  %2262 = vst [vmem:[%s2261] sm:$0xff] %v2167
  %2263 = vst [vmem:[%s2261 + $0x8] sm:$0xff] %v2169
  %2264 = vst [vmem:[%s2261 + $0x10] sm:$0xff] %v2253
  %2265 = vst [vmem:[%s2261 + $0x18] sm:$0xff] %v2255
  %2266 = vst [vmem:[%s2261 + $0x20] sm:$0xff] %v2171
  %2267 = vst [vmem:[%s2261 + $0x28] sm:$0xff] %v2173
  %2268 = vst [vmem:[%s2261 + $0x30] sm:$0xff] %v2257
  %2269 = vst [vmem:[%s2261 + $0x38] sm:$0xff] %v2259
  %s2270 = smul.u32 0, 8
  %s2271 = ssub.s32 8, %s2270
  %p2272 = scmp.lt.s32.totalorder %s2271, 8
  %s2273 = scalar_select %p2272, %s2271, 8
  %v2274 = vld [vmem:[#allocation3] sm:$0xff]
  %v2275 = vld [vmem:[#allocation3 + $0x8] sm:$0xff]
  %v2276 = vld [vmem:[#allocation4] sm:$0xff]
  %v2277 = vld [vmem:[#allocation4 + $0x8] sm:$0xff]
  %v2278 = vpack.c.bf16 %v2275, %v2274
  %v2279 = vld [vmem:[#allocation2] sm:$0xff]
  %v2280 = vld [vmem:[#allocation2 + $0x8] sm:$0xff]
  %v2281 = vld [vmem:[#allocation2 + $0x20] sm:$0xff]
  %v2282 = vld [vmem:[#allocation2 + $0x28] sm:$0xff]
  %v2299 = vunpack.c.l.b16 %v123
  %v2300 = vunpack.c.h.b16 %v123
  %v2301 = vunpack.c.l.b16 %v125
  %v2302 = vunpack.c.h.b16 %v125
  %v2303 = vunpack.c.l.b16 %v127
  %v2304 = vunpack.c.h.b16 %v127
  %v2305 = vunpack.c.l.b16 %v129
  %v2306 = vunpack.c.h.b16 %v129
  %v2307 = vunpack.c.l.b16 %v131
  %v2308 = vunpack.c.h.b16 %v131
  %v2309 = vunpack.c.l.b16 %v133
  %v2310 = vunpack.c.h.b16 %v133
  %v2311 = vunpack.c.l.b16 %v135
  %v2312 = vunpack.c.h.b16 %v135
  %v2313 = vunpack.c.l.b16 %v137
  %v2314 = vunpack.c.h.b16 %v137
  %v2315 = vunpack.c.l.b16 %v139
  %v2316 = vunpack.c.h.b16 %v139
  %v2317 = vunpack.c.l.b16 %v141
  %v2318 = vunpack.c.h.b16 %v141
  %v2319 = vunpack.c.l.b16 %v143
  %v2320 = vunpack.c.h.b16 %v143
  %v2321 = vunpack.c.l.b16 %v145
  %v2322 = vunpack.c.h.b16 %v145
  %v2323 = vunpack.c.l.b16 %v147
  %v2324 = vunpack.c.h.b16 %v147
  %v2325 = vunpack.c.l.b16 %v149
  %v2326 = vunpack.c.h.b16 %v149
  %v2327 = vunpack.c.l.b16 %v151
  %v2328 = vunpack.c.h.b16 %v151
  %v2329 = vunpack.c.l.b16 %v153
  %v2330 = vunpack.c.h.b16 %v153
  %v2331 = vpack.c.b16 %v2301, %v2299
  %v2332 = vpack.c.b16 %v2302, %v2300
  %v2333 = vpack.c.b16 %v2305, %v2303
  %v2334 = vpack.c.b16 %v2306, %v2304
  %v2335 = vpack.c.b16 %v2309, %v2307
  %v2336 = vpack.c.b16 %v2310, %v2308
  %v2337 = vpack.c.b16 %v2313, %v2311
  %v2338 = vpack.c.b16 %v2314, %v2312
  %v2339 = vpack.c.b16 %v2317, %v2315
  %v2340 = vpack.c.b16 %v2318, %v2316
  %v2341 = vpack.c.b16 %v2321, %v2319
  %v2342 = vpack.c.b16 %v2322, %v2320
  %v2343 = vpack.c.b16 %v2325, %v2323
  %v2344 = vpack.c.b16 %v2326, %v2324
  %v2345 = vpack.c.b16 %v2329, %v2327
  %v2346 = vpack.c.b16 %v2330, %v2328
  %2363 = vmatprep.subr.bf16.mxu0 %v2332
  %2364 = vmatpush1.bf16.msra.mxu0 %v2331
  %2365 = vmatprep.subr.bf16.mxu0 %v2334
  %2366 = vmatpush1.bf16.msra.mxu0 %v2333
  %2367 = vmatprep.subr.bf16.mxu0 %v2336
  %2368 = vmatpush1.bf16.msra.mxu0 %v2335
  %2369 = vmatprep.subr.bf16.mxu0 %v2338
  %2370 = vmatpush1.bf16.msra.mxu0 %v2337
  %2371 = vmatprep.subr.bf16.mxu0 %v2340
  %2372 = vmatpush1.bf16.msra.mxu0 %v2339
  %2373 = vmatprep.subr.bf16.mxu0 %v2342
  %2374 = vmatpush1.bf16.msra.mxu0 %v2341
  %2375 = vmatprep.subr.bf16.mxu0 %v2344
  %2376 = vmatpush1.bf16.msra.mxu0 %v2343
  %2377 = vmatprep.subr.bf16.mxu0 %v2346
  %2378 = vmatpush1.bf16.msra.mxu0 %v2345
  %2379 = vmatprep.subr.bf16.mxu0 0
  %2380 = vmatpush1.bf16.msra.mxu0 0
  %2381 = vmatprep.subr.bf16.mxu0 0
  %2382 = vmatpush1.bf16.msra.mxu0 0
  %2383 = vmatprep.subr.bf16.mxu0 0
  %2384 = vmatpush1.bf16.msra.mxu0 0
  %2385 = vmatprep.subr.bf16.mxu0 0
  %2386 = vmatpush1.bf16.msra.mxu0 0
  %2387 = vmatprep.subr.bf16.mxu0 0
  %2388 = vmatpush1.bf16.msra.mxu0 0
  %2389 = vmatprep.subr.bf16.mxu0 0
  %2390 = vmatpush1.bf16.msra.mxu0 0
  %2391 = vmatprep.subr.bf16.mxu0 0
  %2392 = vmatpush1.bf16.msra.mxu0 0
  %2393 = vmatprep.subr.bf16.mxu0 0
  %2394 = vmatpush1.bf16.msra.mxu0 0
  %2395 = vmatprep.mubr.bf16.mxu0 0
  %2396 = vmatmul.mubr.bf16.gmra.mrb[0].mxu0 %v2278
  %v2397 = vpop.f32.mrb[0].mxu0
  %v2398 = vadd.f32 0.0, %v2397
  %v2399 = vpop.f32.mrb[0].mxu0
  %v2400 = vadd.f32 0.0, %v2399
  %v2401 = vpop.f32.mrb[0].mxu0
  %v2402 = vadd.f32 0.0, %v2401
  %v2403 = vpop.f32.mrb[0].mxu0
  %v2404 = vadd.f32 0.0, %v2403
  %2405 = vdwg.mxu0
  %v2406 = vadd.f32 %v2279, %v2398
  %v2407 = vadd.f32 %v2280, %v2400
  %v2408 = vadd.f32 %v2281, %v2402
  %v2409 = vadd.f32 %v2282, %v2404
  %v2410 = vmul.f32 %v2406, 0.5
  %v2411 = vmul.f32 %v2408, 0.5
  %v2412 = vtanh.pop %v2410
  %v2413 = vtanh.pop %v2411
  %v2414 = vmul.f32 %v2412, 0.5
  %v2415 = vmul.f32 %v2413, 0.5
  %v2416 = vadd.f32 %v2414, 0.5
  %v2417 = vadd.f32 %v2415, 0.5
  %v2418 = vmul.f32 %v2407, 0.5
  %v2419 = vmul.f32 %v2409, 0.5
  %v2420 = vtanh.pop %v2418
  %v2421 = vtanh.pop %v2419
  %v2422 = vmul.f32 %v2420, 0.5
  %v2423 = vmul.f32 %v2421, 0.5
  %v2424 = vadd.f32 %v2422, 0.5
  %v2425 = vadd.f32 %v2423, 0.5
  %v2426 = vld [vmem:[#allocation2 + $0x10] sm:$0xff]
  %v2427 = vld [vmem:[#allocation2 + $0x18] sm:$0xff]
  %v2428 = vld [vmem:[#allocation2 + $0x30] sm:$0xff]
  %v2429 = vld [vmem:[#allocation2 + $0x38] sm:$0xff]
  %v2446 = vunpack.c.l.b16 %v124
  %v2447 = vunpack.c.h.b16 %v124
  %v2448 = vunpack.c.l.b16 %v126
  %v2449 = vunpack.c.h.b16 %v126
  %v2450 = vunpack.c.l.b16 %v128
  %v2451 = vunpack.c.h.b16 %v128
  %v2452 = vunpack.c.l.b16 %v130
  %v2453 = vunpack.c.h.b16 %v130
  %v2454 = vunpack.c.l.b16 %v132
  %v2455 = vunpack.c.h.b16 %v132
  %v2456 = vunpack.c.l.b16 %v134
  %v2457 = vunpack.c.h.b16 %v134
  %v2458 = vunpack.c.l.b16 %v136
  %v2459 = vunpack.c.h.b16 %v136
  %v2460 = vunpack.c.l.b16 %v138
  %v2461 = vunpack.c.h.b16 %v138
  %v2462 = vunpack.c.l.b16 %v140
  %v2463 = vunpack.c.h.b16 %v140
  %v2464 = vunpack.c.l.b16 %v142
  %v2465 = vunpack.c.h.b16 %v142
  %v2466 = vunpack.c.l.b16 %v144
  %v2467 = vunpack.c.h.b16 %v144
  %v2468 = vunpack.c.l.b16 %v146
  %v2469 = vunpack.c.h.b16 %v146
  %v2470 = vunpack.c.l.b16 %v148
  %v2471 = vunpack.c.h.b16 %v148
  %v2472 = vunpack.c.l.b16 %v150
  %v2473 = vunpack.c.h.b16 %v150
  %v2474 = vunpack.c.l.b16 %v152
  %v2475 = vunpack.c.h.b16 %v152
  %v2476 = vunpack.c.l.b16 %v154
  %v2477 = vunpack.c.h.b16 %v154
  %v2478 = vpack.c.b16 %v2448, %v2446
  %v2479 = vpack.c.b16 %v2449, %v2447
  %v2480 = vpack.c.b16 %v2452, %v2450
  %v2481 = vpack.c.b16 %v2453, %v2451
  %v2482 = vpack.c.b16 %v2456, %v2454
  %v2483 = vpack.c.b16 %v2457, %v2455
  %v2484 = vpack.c.b16 %v2460, %v2458
  %v2485 = vpack.c.b16 %v2461, %v2459
  %v2486 = vpack.c.b16 %v2464, %v2462
  %v2487 = vpack.c.b16 %v2465, %v2463
  %v2488 = vpack.c.b16 %v2468, %v2466
  %v2489 = vpack.c.b16 %v2469, %v2467
  %v2490 = vpack.c.b16 %v2472, %v2470
  %v2491 = vpack.c.b16 %v2473, %v2471
  %v2492 = vpack.c.b16 %v2476, %v2474
  %v2493 = vpack.c.b16 %v2477, %v2475
  %2510 = vmatprep.subr.bf16.mxu0 %v2479
  %2511 = vmatpush1.bf16.msra.mxu0 %v2478
  %2512 = vmatprep.subr.bf16.mxu0 %v2481
  %2513 = vmatpush1.bf16.msra.mxu0 %v2480
  %2514 = vmatprep.subr.bf16.mxu0 %v2483
  %2515 = vmatpush1.bf16.msra.mxu0 %v2482
  %2516 = vmatprep.subr.bf16.mxu0 %v2485
  %2517 = vmatpush1.bf16.msra.mxu0 %v2484
  %2518 = vmatprep.subr.bf16.mxu0 %v2487
  %2519 = vmatpush1.bf16.msra.mxu0 %v2486
  %2520 = vmatprep.subr.bf16.mxu0 %v2489
  %2521 = vmatpush1.bf16.msra.mxu0 %v2488
  %2522 = vmatprep.subr.bf16.mxu0 %v2491
  %2523 = vmatpush1.bf16.msra.mxu0 %v2490
  %2524 = vmatprep.subr.bf16.mxu0 %v2493
  %2525 = vmatpush1.bf16.msra.mxu0 %v2492
  %2526 = vmatprep.subr.bf16.mxu0 0
  %2527 = vmatpush1.bf16.msra.mxu0 0
  %2528 = vmatprep.subr.bf16.mxu0 0
  %2529 = vmatpush1.bf16.msra.mxu0 0
  %2530 = vmatprep.subr.bf16.mxu0 0
  %2531 = vmatpush1.bf16.msra.mxu0 0
  %2532 = vmatprep.subr.bf16.mxu0 0
  %2533 = vmatpush1.bf16.msra.mxu0 0
  %2534 = vmatprep.subr.bf16.mxu0 0
  %2535 = vmatpush1.bf16.msra.mxu0 0
  %2536 = vmatprep.subr.bf16.mxu0 0
  %2537 = vmatpush1.bf16.msra.mxu0 0
  %2538 = vmatprep.subr.bf16.mxu0 0
  %2539 = vmatpush1.bf16.msra.mxu0 0
  %2540 = vmatprep.subr.bf16.mxu0 0
  %2541 = vmatpush1.bf16.msra.mxu0 0
  %2542 = vmatprep.mubr.bf16.mxu0 0
  %2543 = vmatmul.mubr.bf16.gmra.mrb[0].mxu0 %v2278
  %v2544 = vpop.f32.mrb[0].mxu0
  %v2545 = vadd.f32 0.0, %v2544
  %v2546 = vpop.f32.mrb[0].mxu0
  %v2547 = vadd.f32 0.0, %v2546
  %v2548 = vpop.f32.mrb[0].mxu0
  %v2549 = vadd.f32 0.0, %v2548
  %v2550 = vpop.f32.mrb[0].mxu0
  %v2551 = vadd.f32 0.0, %v2550
  %2552 = vdwg.mxu0
  %v2553 = vadd.f32 %v2426, %v2545
  %v2554 = vadd.f32 %v2427, %v2547
  %v2555 = vadd.f32 %v2428, %v2549
  %v2556 = vadd.f32 %v2429, %v2551
  %v2557 = vtanh.pop %v2553
  %v2558 = vtanh.pop %v2555
  %v2559 = vmul.f32 %v2554, 0.5
  %v2560 = vmul.f32 %v2556, 0.5
  %v2561 = vtanh.pop %v2559
  %v2562 = vtanh.pop %v2560
  %v2563 = vmul.f32 %v2561, 0.5
  %v2564 = vmul.f32 %v2562, 0.5
  %v2565 = vadd.f32 %v2563, 0.5
  %v2566 = vadd.f32 %v2564, 0.5
  %v2567 = vmul.f32 %v2424, %v2276
  %v2568 = vmul.f32 %v2425, %v2277
  %v2569 = vmul.f32 %v2416, %v2557
  %v2570 = vmul.f32 %v2417, %v2558
  %v2571 = vadd.f32 %v2567, %v2569
  %v2572 = vadd.f32 %v2568, %v2570
  %v2573 = vtanh.pop %v2571
  %v2574 = vtanh.pop %v2572
  %v2575 = vmul.f32 %v2565, %v2573
  %v2576 = vmul.f32 %v2566, %v2574
  %p2577 = scmp.gt.s32.totalorder %s2273, 0
  %s2578 = scalar_select %p2577, 1, 0
  %v2579 = vstv %s2578
  %vm2580 = vcmp.eq.s32.totalorder %v2579, 1
  %v2581 = vsel %vm2580, %v2575, %v2274
  %v2582 = vsel %vm2580, %v2576, %v2275
  %v2583 = vsel %vm2580, %v2571, %v2276
  %v2584 = vsel %vm2580, %v2572, %v2277
  %v2585 = vpack.c.bf16 %v2582, %v2581
  %v2586 = vld [vmem:[%s1049] sm:$0xff]
  %v2587 = vld [vmem:[%s1049 + $0x8] sm:$0xff]
  %v2588 = vld [vmem:[%s1049 + $0x20] sm:$0xff]
  %v2589 = vld [vmem:[%s1049 + $0x28] sm:$0xff]
  %2590 = vmatprep.subr.bf16.mxu0 %v2332
  %2591 = vmatpush1.bf16.msra.mxu0 %v2331
  %2592 = vmatprep.subr.bf16.mxu0 %v2334
  %2593 = vmatpush1.bf16.msra.mxu0 %v2333
  %2594 = vmatprep.subr.bf16.mxu0 %v2336
  %2595 = vmatpush1.bf16.msra.mxu0 %v2335
  %2596 = vmatprep.subr.bf16.mxu0 %v2338
  %2597 = vmatpush1.bf16.msra.mxu0 %v2337
  %2598 = vmatprep.subr.bf16.mxu0 %v2340
  %2599 = vmatpush1.bf16.msra.mxu0 %v2339
  %2600 = vmatprep.subr.bf16.mxu0 %v2342
  %2601 = vmatpush1.bf16.msra.mxu0 %v2341
  %2602 = vmatprep.subr.bf16.mxu0 %v2344
  %2603 = vmatpush1.bf16.msra.mxu0 %v2343
  %2604 = vmatprep.subr.bf16.mxu0 %v2346
  %2605 = vmatpush1.bf16.msra.mxu0 %v2345
  %2606 = vmatprep.subr.bf16.mxu0 0
  %2607 = vmatpush1.bf16.msra.mxu0 0
  %2608 = vmatprep.subr.bf16.mxu0 0
  %2609 = vmatpush1.bf16.msra.mxu0 0
  %2610 = vmatprep.subr.bf16.mxu0 0
  %2611 = vmatpush1.bf16.msra.mxu0 0
  %2612 = vmatprep.subr.bf16.mxu0 0
  %2613 = vmatpush1.bf16.msra.mxu0 0
  %2614 = vmatprep.subr.bf16.mxu0 0
  %2615 = vmatpush1.bf16.msra.mxu0 0
  %2616 = vmatprep.subr.bf16.mxu0 0
  %2617 = vmatpush1.bf16.msra.mxu0 0
  %2618 = vmatprep.subr.bf16.mxu0 0
  %2619 = vmatpush1.bf16.msra.mxu0 0
  %2620 = vmatprep.subr.bf16.mxu0 0
  %2621 = vmatpush1.bf16.msra.mxu0 0
  %2622 = vmatprep.mubr.bf16.mxu0 0
  %2623 = vmatmul.mubr.bf16.gmra.mrb[0].mxu0 %v2585
  %v2624 = vpop.f32.mrb[0].mxu0
  %v2625 = vadd.f32 0.0, %v2624
  %v2626 = vpop.f32.mrb[0].mxu0
  %v2627 = vadd.f32 0.0, %v2626
  %v2628 = vpop.f32.mrb[0].mxu0
  %v2629 = vadd.f32 0.0, %v2628
  %v2630 = vpop.f32.mrb[0].mxu0
  %v2631 = vadd.f32 0.0, %v2630
  %2632 = vdwg.mxu0
  %v2633 = vadd.f32 %v2586, %v2625
  %v2634 = vadd.f32 %v2587, %v2627
  %v2635 = vadd.f32 %v2588, %v2629
  %v2636 = vadd.f32 %v2589, %v2631
  %v2637 = vmul.f32 %v2633, 0.5
  %v2638 = vmul.f32 %v2635, 0.5
  %v2639 = vtanh.pop %v2637
  %v2640 = vtanh.pop %v2638
  %v2641 = vmul.f32 %v2639, 0.5
  %v2642 = vmul.f32 %v2640, 0.5
  %v2643 = vadd.f32 %v2641, 0.5
  %v2644 = vadd.f32 %v2642, 0.5
  %v2645 = vmul.f32 %v2634, 0.5
  %v2646 = vmul.f32 %v2636, 0.5
  %v2647 = vtanh.pop %v2645
  %v2648 = vtanh.pop %v2646
  %v2649 = vmul.f32 %v2647, 0.5
  %v2650 = vmul.f32 %v2648, 0.5
  %v2651 = vadd.f32 %v2649, 0.5
  %v2652 = vadd.f32 %v2650, 0.5
  %v2653 = vld [vmem:[%s1049 + $0x10] sm:$0xff]
  %v2654 = vld [vmem:[%s1049 + $0x18] sm:$0xff]
  %v2655 = vld [vmem:[%s1049 + $0x30] sm:$0xff]
  %v2656 = vld [vmem:[%s1049 + $0x38] sm:$0xff]
  %2657 = vmatprep.subr.bf16.mxu0 %v2479
  %2658 = vmatpush1.bf16.msra.mxu0 %v2478
  %2659 = vmatprep.subr.bf16.mxu0 %v2481
  %2660 = vmatpush1.bf16.msra.mxu0 %v2480
  %2661 = vmatprep.subr.bf16.mxu0 %v2483
  %2662 = vmatpush1.bf16.msra.mxu0 %v2482
  %2663 = vmatprep.subr.bf16.mxu0 %v2485
  %2664 = vmatpush1.bf16.msra.mxu0 %v2484
  %2665 = vmatprep.subr.bf16.mxu0 %v2487
  %2666 = vmatpush1.bf16.msra.mxu0 %v2486
  %2667 = vmatprep.subr.bf16.mxu0 %v2489
  %2668 = vmatpush1.bf16.msra.mxu0 %v2488
  %2669 = vmatprep.subr.bf16.mxu0 %v2491
  %2670 = vmatpush1.bf16.msra.mxu0 %v2490
  %2671 = vmatprep.subr.bf16.mxu0 %v2493
  %2672 = vmatpush1.bf16.msra.mxu0 %v2492
  %2673 = vmatprep.subr.bf16.mxu0 0
  %2674 = vmatpush1.bf16.msra.mxu0 0
  %2675 = vmatprep.subr.bf16.mxu0 0
  %2676 = vmatpush1.bf16.msra.mxu0 0
  %2677 = vmatprep.subr.bf16.mxu0 0
  %2678 = vmatpush1.bf16.msra.mxu0 0
  %2679 = vmatprep.subr.bf16.mxu0 0
  %2680 = vmatpush1.bf16.msra.mxu0 0
  %2681 = vmatprep.subr.bf16.mxu0 0
  %2682 = vmatpush1.bf16.msra.mxu0 0
  %2683 = vmatprep.subr.bf16.mxu0 0
  %2684 = vmatpush1.bf16.msra.mxu0 0
  %2685 = vmatprep.subr.bf16.mxu0 0
  %2686 = vmatpush1.bf16.msra.mxu0 0
  %2687 = vmatprep.subr.bf16.mxu0 0
  %2688 = vmatpush1.bf16.msra.mxu0 0
  %2689 = vmatprep.mubr.bf16.mxu0 0
  %2690 = vmatmul.mubr.bf16.gmra.mrb[0].mxu0 %v2585
  %v2691 = vpop.f32.mrb[0].mxu0
  %v2692 = vadd.f32 0.0, %v2691
  %v2693 = vpop.f32.mrb[0].mxu0
  %v2694 = vadd.f32 0.0, %v2693
  %v2695 = vpop.f32.mrb[0].mxu0
  %v2696 = vadd.f32 0.0, %v2695
  %v2697 = vpop.f32.mrb[0].mxu0
  %v2698 = vadd.f32 0.0, %v2697
  %2699 = vdwg.mxu0
  %v2700 = vadd.f32 %v2653, %v2692
  %v2701 = vadd.f32 %v2654, %v2694
  %v2702 = vadd.f32 %v2655, %v2696
  %v2703 = vadd.f32 %v2656, %v2698
  %v2704 = vtanh.pop %v2700
  %v2705 = vtanh.pop %v2702
  %v2706 = vmul.f32 %v2701, 0.5
  %v2707 = vmul.f32 %v2703, 0.5
  %v2708 = vtanh.pop %v2706
  %v2709 = vtanh.pop %v2707
  %v2710 = vmul.f32 %v2708, 0.5
  %v2711 = vmul.f32 %v2709, 0.5
  %v2712 = vadd.f32 %v2710, 0.5
  %v2713 = vadd.f32 %v2711, 0.5
  %v2714 = vmul.f32 %v2651, %v2583
  %v2715 = vmul.f32 %v2652, %v2584
  %v2716 = vmul.f32 %v2643, %v2704
  %v2717 = vmul.f32 %v2644, %v2705
  %v2718 = vadd.f32 %v2714, %v2716
  %v2719 = vadd.f32 %v2715, %v2717
  %v2720 = vtanh.pop %v2718
  %v2721 = vtanh.pop %v2719
  %v2722 = vmul.f32 %v2712, %v2720
  %v2723 = vmul.f32 %v2713, %v2721
  %p2724 = scmp.gt.s32.totalorder %s2273, 1
  %s2725 = scalar_select %p2724, 1, 0
  %v2726 = vstv %s2725
  %vm2727 = vcmp.eq.s32.totalorder %v2726, 1
  %v2728 = vsel %vm2727, %v2722, %v2581
  %v2729 = vsel %vm2727, %v2723, %v2582
  %v2730 = vsel %vm2727, %v2718, %v2583
  %v2731 = vsel %vm2727, %v2719, %v2584
  %v2732 = vpack.c.bf16 %v2729, %v2728
  %v2733 = vld [vmem:[%s1251] sm:$0xff]
  %v2734 = vld [vmem:[%s1251 + $0x8] sm:$0xff]
  %v2735 = vld [vmem:[%s1251 + $0x20] sm:$0xff]
  %v2736 = vld [vmem:[%s1251 + $0x28] sm:$0xff]
  %2737 = vmatprep.subr.bf16.mxu0 %v2332
  %2738 = vmatpush1.bf16.msra.mxu0 %v2331
  %2739 = vmatprep.subr.bf16.mxu0 %v2334
  %2740 = vmatpush1.bf16.msra.mxu0 %v2333
  %2741 = vmatprep.subr.bf16.mxu0 %v2336
  %2742 = vmatpush1.bf16.msra.mxu0 %v2335
  %2743 = vmatprep.subr.bf16.mxu0 %v2338
  %2744 = vmatpush1.bf16.msra.mxu0 %v2337
  %2745 = vmatprep.subr.bf16.mxu0 %v2340
  %2746 = vmatpush1.bf16.msra.mxu0 %v2339
  %2747 = vmatprep.subr.bf16.mxu0 %v2342
  %2748 = vmatpush1.bf16.msra.mxu0 %v2341
  %2749 = vmatprep.subr.bf16.mxu0 %v2344
  %2750 = vmatpush1.bf16.msra.mxu0 %v2343
  %2751 = vmatprep.subr.bf16.mxu0 %v2346
  %2752 = vmatpush1.bf16.msra.mxu0 %v2345
  %2753 = vmatprep.subr.bf16.mxu0 0
  %2754 = vmatpush1.bf16.msra.mxu0 0
  %2755 = vmatprep.subr.bf16.mxu0 0
  %2756 = vmatpush1.bf16.msra.mxu0 0
  %2757 = vmatprep.subr.bf16.mxu0 0
  %2758 = vmatpush1.bf16.msra.mxu0 0
  %2759 = vmatprep.subr.bf16.mxu0 0
  %2760 = vmatpush1.bf16.msra.mxu0 0
  %2761 = vmatprep.subr.bf16.mxu0 0
  %2762 = vmatpush1.bf16.msra.mxu0 0
  %2763 = vmatprep.subr.bf16.mxu0 0
  %2764 = vmatpush1.bf16.msra.mxu0 0
  %2765 = vmatprep.subr.bf16.mxu0 0
  %2766 = vmatpush1.bf16.msra.mxu0 0
  %2767 = vmatprep.subr.bf16.mxu0 0
  %2768 = vmatpush1.bf16.msra.mxu0 0
  %2769 = vmatprep.mubr.bf16.mxu0 0
  %2770 = vmatmul.mubr.bf16.gmra.mrb[0].mxu0 %v2732
  %v2771 = vpop.f32.mrb[0].mxu0
  %v2772 = vadd.f32 0.0, %v2771
  %v2773 = vpop.f32.mrb[0].mxu0
  %v2774 = vadd.f32 0.0, %v2773
  %v2775 = vpop.f32.mrb[0].mxu0
  %v2776 = vadd.f32 0.0, %v2775
  %v2777 = vpop.f32.mrb[0].mxu0
  %v2778 = vadd.f32 0.0, %v2777
  %2779 = vdwg.mxu0
  %v2780 = vadd.f32 %v2733, %v2772
  %v2781 = vadd.f32 %v2734, %v2774
  %v2782 = vadd.f32 %v2735, %v2776
  %v2783 = vadd.f32 %v2736, %v2778
  %v2784 = vmul.f32 %v2780, 0.5
  %v2785 = vmul.f32 %v2782, 0.5
  %v2786 = vtanh.pop %v2784
  %v2787 = vtanh.pop %v2785
  %v2788 = vmul.f32 %v2786, 0.5
  %v2789 = vmul.f32 %v2787, 0.5
  %v2790 = vadd.f32 %v2788, 0.5
  %v2791 = vadd.f32 %v2789, 0.5
  %v2792 = vmul.f32 %v2781, 0.5
  %v2793 = vmul.f32 %v2783, 0.5
  %v2794 = vtanh.pop %v2792
  %v2795 = vtanh.pop %v2793
  %v2796 = vmul.f32 %v2794, 0.5
  %v2797 = vmul.f32 %v2795, 0.5
  %v2798 = vadd.f32 %v2796, 0.5
  %v2799 = vadd.f32 %v2797, 0.5
  %v2800 = vld [vmem:[%s1251 + $0x10] sm:$0xff]
  %v2801 = vld [vmem:[%s1251 + $0x18] sm:$0xff]
  %v2802 = vld [vmem:[%s1251 + $0x30] sm:$0xff]
  %v2803 = vld [vmem:[%s1251 + $0x38] sm:$0xff]
  %2804 = vmatprep.subr.bf16.mxu0 %v2479
  %2805 = vmatpush1.bf16.msra.mxu0 %v2478
  %2806 = vmatprep.subr.bf16.mxu0 %v2481
  %2807 = vmatpush1.bf16.msra.mxu0 %v2480
  %2808 = vmatprep.subr.bf16.mxu0 %v2483
  %2809 = vmatpush1.bf16.msra.mxu0 %v2482
  %2810 = vmatprep.subr.bf16.mxu0 %v2485
  %2811 = vmatpush1.bf16.msra.mxu0 %v2484
  %2812 = vmatprep.subr.bf16.mxu0 %v2487
  %2813 = vmatpush1.bf16.msra.mxu0 %v2486
  %2814 = vmatprep.subr.bf16.mxu0 %v2489
  %2815 = vmatpush1.bf16.msra.mxu0 %v2488
  %2816 = vmatprep.subr.bf16.mxu0 %v2491
  %2817 = vmatpush1.bf16.msra.mxu0 %v2490
  %2818 = vmatprep.subr.bf16.mxu0 %v2493
  %2819 = vmatpush1.bf16.msra.mxu0 %v2492
  %2820 = vmatprep.subr.bf16.mxu0 0
  %2821 = vmatpush1.bf16.msra.mxu0 0
  %2822 = vmatprep.subr.bf16.mxu0 0
  %2823 = vmatpush1.bf16.msra.mxu0 0
  %2824 = vmatprep.subr.bf16.mxu0 0
  %2825 = vmatpush1.bf16.msra.mxu0 0
  %2826 = vmatprep.subr.bf16.mxu0 0
  %2827 = vmatpush1.bf16.msra.mxu0 0
  %2828 = vmatprep.subr.bf16.mxu0 0
  %2829 = vmatpush1.bf16.msra.mxu0 0
  %2830 = vmatprep.subr.bf16.mxu0 0
  %2831 = vmatpush1.bf16.msra.mxu0 0
  %2832 = vmatprep.subr.bf16.mxu0 0
  %2833 = vmatpush1.bf16.msra.mxu0 0
  %2834 = vmatprep.subr.bf16.mxu0 0
  %2835 = vmatpush1.bf16.msra.mxu0 0
  %2836 = vmatprep.mubr.bf16.mxu0 0
  %2837 = vmatmul.mubr.bf16.gmra.mrb[0].mxu0 %v2732
  %v2838 = vpop.f32.mrb[0].mxu0
  %v2839 = vadd.f32 0.0, %v2838
  %v2840 = vpop.f32.mrb[0].mxu0
  %v2841 = vadd.f32 0.0, %v2840
  %v2842 = vpop.f32.mrb[0].mxu0
  %v2843 = vadd.f32 0.0, %v2842
  %v2844 = vpop.f32.mrb[0].mxu0
  %v2845 = vadd.f32 0.0, %v2844
  %2846 = vdwg.mxu0
  %v2847 = vadd.f32 %v2800, %v2839
  %v2848 = vadd.f32 %v2801, %v2841
  %v2849 = vadd.f32 %v2802, %v2843
  %v2850 = vadd.f32 %v2803, %v2845
  %v2851 = vtanh.pop %v2847
  %v2852 = vtanh.pop %v2849
  %v2853 = vmul.f32 %v2848, 0.5
  %v2854 = vmul.f32 %v2850, 0.5
  %v2855 = vtanh.pop %v2853
  %v2856 = vtanh.pop %v2854
  %v2857 = vmul.f32 %v2855, 0.5
  %v2858 = vmul.f32 %v2856, 0.5
  %v2859 = vadd.f32 %v2857, 0.5
  %v2860 = vadd.f32 %v2858, 0.5
  %v2861 = vmul.f32 %v2798, %v2730
  %v2862 = vmul.f32 %v2799, %v2731
  %v2863 = vmul.f32 %v2790, %v2851
  %v2864 = vmul.f32 %v2791, %v2852
  %v2865 = vadd.f32 %v2861, %v2863
  %v2866 = vadd.f32 %v2862, %v2864
  %v2867 = vtanh.pop %v2865
  %v2868 = vtanh.pop %v2866
  %v2869 = vmul.f32 %v2859, %v2867
  %v2870 = vmul.f32 %v2860, %v2868
  %p2871 = scmp.gt.s32.totalorder %s2273, 2
  %s2872 = scalar_select %p2871, 1, 0
  %v2873 = vstv %s2872
  %vm2874 = vcmp.eq.s32.totalorder %v2873, 1
  %v2875 = vsel %vm2874, %v2869, %v2728
  %v2876 = vsel %vm2874, %v2870, %v2729
  %v2877 = vsel %vm2874, %v2865, %v2730
  %v2878 = vsel %vm2874, %v2866, %v2731
  %v2879 = vpack.c.bf16 %v2876, %v2875
  %v2880 = vld [vmem:[%s1453] sm:$0xff]
  %v2881 = vld [vmem:[%s1453 + $0x8] sm:$0xff]
  %v2882 = vld [vmem:[%s1453 + $0x20] sm:$0xff]
  %v2883 = vld [vmem:[%s1453 + $0x28] sm:$0xff]
  %2884 = vmatprep.subr.bf16.mxu0 %v2332
  %2885 = vmatpush1.bf16.msra.mxu0 %v2331
  %2886 = vmatprep.subr.bf16.mxu0 %v2334
  %2887 = vmatpush1.bf16.msra.mxu0 %v2333
  %2888 = vmatprep.subr.bf16.mxu0 %v2336
  %2889 = vmatpush1.bf16.msra.mxu0 %v2335
  %2890 = vmatprep.subr.bf16.mxu0 %v2338
  %2891 = vmatpush1.bf16.msra.mxu0 %v2337
  %2892 = vmatprep.subr.bf16.mxu0 %v2340
  %2893 = vmatpush1.bf16.msra.mxu0 %v2339
  %2894 = vmatprep.subr.bf16.mxu0 %v2342
  %2895 = vmatpush1.bf16.msra.mxu0 %v2341
  %2896 = vmatprep.subr.bf16.mxu0 %v2344
  %2897 = vmatpush1.bf16.msra.mxu0 %v2343
  %2898 = vmatprep.subr.bf16.mxu0 %v2346
  %2899 = vmatpush1.bf16.msra.mxu0 %v2345
  %2900 = vmatprep.subr.bf16.mxu0 0
  %2901 = vmatpush1.bf16.msra.mxu0 0
  %2902 = vmatprep.subr.bf16.mxu0 0
  %2903 = vmatpush1.bf16.msra.mxu0 0
  %2904 = vmatprep.subr.bf16.mxu0 0
  %2905 = vmatpush1.bf16.msra.mxu0 0
  %2906 = vmatprep.subr.bf16.mxu0 0
  %2907 = vmatpush1.bf16.msra.mxu0 0
  %2908 = vmatprep.subr.bf16.mxu0 0
  %2909 = vmatpush1.bf16.msra.mxu0 0
  %2910 = vmatprep.subr.bf16.mxu0 0
  %2911 = vmatpush1.bf16.msra.mxu0 0
  %2912 = vmatprep.subr.bf16.mxu0 0
  %2913 = vmatpush1.bf16.msra.mxu0 0
  %2914 = vmatprep.subr.bf16.mxu0 0
  %2915 = vmatpush1.bf16.msra.mxu0 0
  %2916 = vmatprep.mubr.bf16.mxu0 0
  %2917 = vmatmul.mubr.bf16.gmra.mrb[0].mxu0 %v2879
  %v2918 = vpop.f32.mrb[0].mxu0
  %v2919 = vadd.f32 0.0, %v2918
  %v2920 = vpop.f32.mrb[0].mxu0
  %v2921 = vadd.f32 0.0, %v2920
  %v2922 = vpop.f32.mrb[0].mxu0
  %v2923 = vadd.f32 0.0, %v2922
  %v2924 = vpop.f32.mrb[0].mxu0
  %v2925 = vadd.f32 0.0, %v2924
  %2926 = vdwg.mxu0
  %v2927 = vadd.f32 %v2880, %v2919
  %v2928 = vadd.f32 %v2881, %v2921
  %v2929 = vadd.f32 %v2882, %v2923
  %v2930 = vadd.f32 %v2883, %v2925
  %v2931 = vmul.f32 %v2927, 0.5
  %v2932 = vmul.f32 %v2929, 0.5
  %v2933 = vtanh.pop %v2931
  %v2934 = vtanh.pop %v2932
  %v2935 = vmul.f32 %v2933, 0.5
  %v2936 = vmul.f32 %v2934, 0.5
  %v2937 = vadd.f32 %v2935, 0.5
  %v2938 = vadd.f32 %v2936, 0.5
  %v2939 = vmul.f32 %v2928, 0.5
  %v2940 = vmul.f32 %v2930, 0.5
  %v2941 = vtanh.pop %v2939
  %v2942 = vtanh.pop %v2940
  %v2943 = vmul.f32 %v2941, 0.5
  %v2944 = vmul.f32 %v2942, 0.5
  %v2945 = vadd.f32 %v2943, 0.5
  %v2946 = vadd.f32 %v2944, 0.5
  %v2947 = vld [vmem:[%s1453 + $0x10] sm:$0xff]
  %v2948 = vld [vmem:[%s1453 + $0x18] sm:$0xff]
  %v2949 = vld [vmem:[%s1453 + $0x30] sm:$0xff]
  %v2950 = vld [vmem:[%s1453 + $0x38] sm:$0xff]
  %2951 = vmatprep.subr.bf16.mxu0 %v2479
  %2952 = vmatpush1.bf16.msra.mxu0 %v2478
  %2953 = vmatprep.subr.bf16.mxu0 %v2481
  %2954 = vmatpush1.bf16.msra.mxu0 %v2480
  %2955 = vmatprep.subr.bf16.mxu0 %v2483
  %2956 = vmatpush1.bf16.msra.mxu0 %v2482
  %2957 = vmatprep.subr.bf16.mxu0 %v2485
  %2958 = vmatpush1.bf16.msra.mxu0 %v2484
  %2959 = vmatprep.subr.bf16.mxu0 %v2487
  %2960 = vmatpush1.bf16.msra.mxu0 %v2486
  %2961 = vmatprep.subr.bf16.mxu0 %v2489
  %2962 = vmatpush1.bf16.msra.mxu0 %v2488
  %2963 = vmatprep.subr.bf16.mxu0 %v2491
  %2964 = vmatpush1.bf16.msra.mxu0 %v2490
  %2965 = vmatprep.subr.bf16.mxu0 %v2493
  %2966 = vmatpush1.bf16.msra.mxu0 %v2492
  %2967 = vmatprep.subr.bf16.mxu0 0
  %2968 = vmatpush1.bf16.msra.mxu0 0
  %2969 = vmatprep.subr.bf16.mxu0 0
  %2970 = vmatpush1.bf16.msra.mxu0 0
  %2971 = vmatprep.subr.bf16.mxu0 0
  %2972 = vmatpush1.bf16.msra.mxu0 0
  %2973 = vmatprep.subr.bf16.mxu0 0
  %2974 = vmatpush1.bf16.msra.mxu0 0
  %2975 = vmatprep.subr.bf16.mxu0 0
  %2976 = vmatpush1.bf16.msra.mxu0 0
  %2977 = vmatprep.subr.bf16.mxu0 0
  %2978 = vmatpush1.bf16.msra.mxu0 0
  %2979 = vmatprep.subr.bf16.mxu0 0
  %2980 = vmatpush1.bf16.msra.mxu0 0
  %2981 = vmatprep.subr.bf16.mxu0 0
  %2982 = vmatpush1.bf16.msra.mxu0 0
  %2983 = vmatprep.mubr.bf16.mxu0 0
  %2984 = vmatmul.mubr.bf16.gmra.mrb[0].mxu0 %v2879
  %v2985 = vpop.f32.mrb[0].mxu0
  %v2986 = vadd.f32 0.0, %v2985
  %v2987 = vpop.f32.mrb[0].mxu0
  %v2988 = vadd.f32 0.0, %v2987
  %v2989 = vpop.f32.mrb[0].mxu0
  %v2990 = vadd.f32 0.0, %v2989
  %v2991 = vpop.f32.mrb[0].mxu0
  %v2992 = vadd.f32 0.0, %v2991
  %2993 = vdwg.mxu0
  %v2994 = vadd.f32 %v2947, %v2986
  %v2995 = vadd.f32 %v2948, %v2988
  %v2996 = vadd.f32 %v2949, %v2990
  %v2997 = vadd.f32 %v2950, %v2992
  %v2998 = vtanh.pop %v2994
  %v2999 = vtanh.pop %v2996
  %v3000 = vmul.f32 %v2995, 0.5
  %v3001 = vmul.f32 %v2997, 0.5
  %v3002 = vtanh.pop %v3000
  %v3003 = vtanh.pop %v3001
  %v3004 = vmul.f32 %v3002, 0.5
  %v3005 = vmul.f32 %v3003, 0.5
  %v3006 = vadd.f32 %v3004, 0.5
  %v3007 = vadd.f32 %v3005, 0.5
  %v3008 = vmul.f32 %v2945, %v2877
  %v3009 = vmul.f32 %v2946, %v2878
  %v3010 = vmul.f32 %v2937, %v2998
  %v3011 = vmul.f32 %v2938, %v2999
  %v3012 = vadd.f32 %v3008, %v3010
  %v3013 = vadd.f32 %v3009, %v3011
  %v3014 = vtanh.pop %v3012
  %v3015 = vtanh.pop %v3013
  %v3016 = vmul.f32 %v3006, %v3014
  %v3017 = vmul.f32 %v3007, %v3015
  %p3018 = scmp.gt.s32.totalorder %s2273, 3
  %s3019 = scalar_select %p3018, 1, 0
  %v3020 = vstv %s3019
  %vm3021 = vcmp.eq.s32.totalorder %v3020, 1
  %v3022 = vsel %vm3021, %v3016, %v2875
  %v3023 = vsel %vm3021, %v3017, %v2876
  %v3024 = vsel %vm3021, %v3012, %v2877
  %v3025 = vsel %vm3021, %v3013, %v2878
  %v3026 = vpack.c.bf16 %v3023, %v3022
  %v3027 = vld [vmem:[%s1655] sm:$0xff]
  %v3028 = vld [vmem:[%s1655 + $0x8] sm:$0xff]
  %v3029 = vld [vmem:[%s1655 + $0x20] sm:$0xff]
  %v3030 = vld [vmem:[%s1655 + $0x28] sm:$0xff]
  %3031 = vmatprep.subr.bf16.mxu0 %v2332
  %3032 = vmatpush1.bf16.msra.mxu0 %v2331
  %3033 = vmatprep.subr.bf16.mxu0 %v2334
  %3034 = vmatpush1.bf16.msra.mxu0 %v2333
  %3035 = vmatprep.subr.bf16.mxu0 %v2336
  %3036 = vmatpush1.bf16.msra.mxu0 %v2335
  %3037 = vmatprep.subr.bf16.mxu0 %v2338
  %3038 = vmatpush1.bf16.msra.mxu0 %v2337
  %3039 = vmatprep.subr.bf16.mxu0 %v2340
  %3040 = vmatpush1.bf16.msra.mxu0 %v2339
  %3041 = vmatprep.subr.bf16.mxu0 %v2342
  %3042 = vmatpush1.bf16.msra.mxu0 %v2341
  %3043 = vmatprep.subr.bf16.mxu0 %v2344
  %3044 = vmatpush1.bf16.msra.mxu0 %v2343
  %3045 = vmatprep.subr.bf16.mxu0 %v2346
  %3046 = vmatpush1.bf16.msra.mxu0 %v2345
  %3047 = vmatprep.subr.bf16.mxu0 0
  %3048 = vmatpush1.bf16.msra.mxu0 0
  %3049 = vmatprep.subr.bf16.mxu0 0
  %3050 = vmatpush1.bf16.msra.mxu0 0
  %3051 = vmatprep.subr.bf16.mxu0 0
  %3052 = vmatpush1.bf16.msra.mxu0 0
  %3053 = vmatprep.subr.bf16.mxu0 0
  %3054 = vmatpush1.bf16.msra.mxu0 0
  %3055 = vmatprep.subr.bf16.mxu0 0
  %3056 = vmatpush1.bf16.msra.mxu0 0
  %3057 = vmatprep.subr.bf16.mxu0 0
  %3058 = vmatpush1.bf16.msra.mxu0 0
  %3059 = vmatprep.subr.bf16.mxu0 0
  %3060 = vmatpush1.bf16.msra.mxu0 0
  %3061 = vmatprep.subr.bf16.mxu0 0
  %3062 = vmatpush1.bf16.msra.mxu0 0
  %3063 = vmatprep.mubr.bf16.mxu0 0
  %3064 = vmatmul.mubr.bf16.gmra.mrb[0].mxu0 %v3026
  %v3065 = vpop.f32.mrb[0].mxu0
  %v3066 = vadd.f32 0.0, %v3065
  %v3067 = vpop.f32.mrb[0].mxu0
  %v3068 = vadd.f32 0.0, %v3067
  %v3069 = vpop.f32.mrb[0].mxu0
  %v3070 = vadd.f32 0.0, %v3069
  %v3071 = vpop.f32.mrb[0].mxu0
  %v3072 = vadd.f32 0.0, %v3071
  %3073 = vdwg.mxu0
  %v3074 = vadd.f32 %v3027, %v3066
  %v3075 = vadd.f32 %v3028, %v3068
  %v3076 = vadd.f32 %v3029, %v3070
  %v3077 = vadd.f32 %v3030, %v3072
  %v3078 = vmul.f32 %v3074, 0.5
  %v3079 = vmul.f32 %v3076, 0.5
  %v3080 = vtanh.pop %v3078
  %v3081 = vtanh.pop %v3079
  %v3082 = vmul.f32 %v3080, 0.5
  %v3083 = vmul.f32 %v3081, 0.5
  %v3084 = vadd.f32 %v3082, 0.5
  %v3085 = vadd.f32 %v3083, 0.5
  %v3086 = vmul.f32 %v3075, 0.5
  %v3087 = vmul.f32 %v3077, 0.5
  %v3088 = vtanh.pop %v3086
  %v3089 = vtanh.pop %v3087
  %v3090 = vmul.f32 %v3088, 0.5
  %v3091 = vmul.f32 %v3089, 0.5
  %v3092 = vadd.f32 %v3090, 0.5
  %v3093 = vadd.f32 %v3091, 0.5
  %v3094 = vld [vmem:[%s1655 + $0x10] sm:$0xff]
  %v3095 = vld [vmem:[%s1655 + $0x18] sm:$0xff]
  %v3096 = vld [vmem:[%s1655 + $0x30] sm:$0xff]
  %v3097 = vld [vmem:[%s1655 + $0x38] sm:$0xff]
  %3098 = vmatprep.subr.bf16.mxu0 %v2479
  %3099 = vmatpush1.bf16.msra.mxu0 %v2478
  %3100 = vmatprep.subr.bf16.mxu0 %v2481
  %3101 = vmatpush1.bf16.msra.mxu0 %v2480
  %3102 = vmatprep.subr.bf16.mxu0 %v2483
  %3103 = vmatpush1.bf16.msra.mxu0 %v2482
  %3104 = vmatprep.subr.bf16.mxu0 %v2485
  %3105 = vmatpush1.bf16.msra.mxu0 %v2484
  %3106 = vmatprep.subr.bf16.mxu0 %v2487
  %3107 = vmatpush1.bf16.msra.mxu0 %v2486
  %3108 = vmatprep.subr.bf16.mxu0 %v2489
  %3109 = vmatpush1.bf16.msra.mxu0 %v2488
  %3110 = vmatprep.subr.bf16.mxu0 %v2491
  %3111 = vmatpush1.bf16.msra.mxu0 %v2490
  %3112 = vmatprep.subr.bf16.mxu0 %v2493
  %3113 = vmatpush1.bf16.msra.mxu0 %v2492
  %3114 = vmatprep.subr.bf16.mxu0 0
  %3115 = vmatpush1.bf16.msra.mxu0 0
  %3116 = vmatprep.subr.bf16.mxu0 0
  %3117 = vmatpush1.bf16.msra.mxu0 0
  %3118 = vmatprep.subr.bf16.mxu0 0
  %3119 = vmatpush1.bf16.msra.mxu0 0
  %3120 = vmatprep.subr.bf16.mxu0 0
  %3121 = vmatpush1.bf16.msra.mxu0 0
  %3122 = vmatprep.subr.bf16.mxu0 0
  %3123 = vmatpush1.bf16.msra.mxu0 0
  %3124 = vmatprep.subr.bf16.mxu0 0
  %3125 = vmatpush1.bf16.msra.mxu0 0
  %3126 = vmatprep.subr.bf16.mxu0 0
  %3127 = vmatpush1.bf16.msra.mxu0 0
  %3128 = vmatprep.subr.bf16.mxu0 0
  %3129 = vmatpush1.bf16.msra.mxu0 0
  %3130 = vmatprep.mubr.bf16.mxu0 0
  %3131 = vmatmul.mubr.bf16.gmra.mrb[0].mxu0 %v3026
  %v3132 = vpop.f32.mrb[0].mxu0
  %v3133 = vadd.f32 0.0, %v3132
  %v3134 = vpop.f32.mrb[0].mxu0
  %v3135 = vadd.f32 0.0, %v3134
  %v3136 = vpop.f32.mrb[0].mxu0
  %v3137 = vadd.f32 0.0, %v3136
  %v3138 = vpop.f32.mrb[0].mxu0
  %v3139 = vadd.f32 0.0, %v3138
  %3140 = vdwg.mxu0
  %v3141 = vadd.f32 %v3094, %v3133
  %v3142 = vadd.f32 %v3095, %v3135
  %v3143 = vadd.f32 %v3096, %v3137
  %v3144 = vadd.f32 %v3097, %v3139
  %v3145 = vtanh.pop %v3141
  %v3146 = vtanh.pop %v3143
  %v3147 = vmul.f32 %v3142, 0.5
  %v3148 = vmul.f32 %v3144, 0.5
  %v3149 = vtanh.pop %v3147
  %v3150 = vtanh.pop %v3148
  %v3151 = vmul.f32 %v3149, 0.5
  %v3152 = vmul.f32 %v3150, 0.5
  %v3153 = vadd.f32 %v3151, 0.5
  %v3154 = vadd.f32 %v3152, 0.5
  %v3155 = vmul.f32 %v3092, %v3024
  %v3156 = vmul.f32 %v3093, %v3025
  %v3157 = vmul.f32 %v3084, %v3145
  %v3158 = vmul.f32 %v3085, %v3146
  %v3159 = vadd.f32 %v3155, %v3157
  %v3160 = vadd.f32 %v3156, %v3158
  %v3161 = vtanh.pop %v3159
  %v3162 = vtanh.pop %v3160
  %v3163 = vmul.f32 %v3153, %v3161
  %v3164 = vmul.f32 %v3154, %v3162
  %p3165 = scmp.gt.s32.totalorder %s2273, 4
  %s3166 = scalar_select %p3165, 1, 0
  %v3167 = vstv %s3166
  %vm3168 = vcmp.eq.s32.totalorder %v3167, 1
  %v3169 = vsel %vm3168, %v3163, %v3022
  %v3170 = vsel %vm3168, %v3164, %v3023
  %v3171 = vsel %vm3168, %v3159, %v3024
  %v3172 = vsel %vm3168, %v3160, %v3025
  %v3173 = vpack.c.bf16 %v3170, %v3169
  %v3174 = vld [vmem:[%s1857] sm:$0xff]
  %v3175 = vld [vmem:[%s1857 + $0x8] sm:$0xff]
  %v3176 = vld [vmem:[%s1857 + $0x20] sm:$0xff]
  %v3177 = vld [vmem:[%s1857 + $0x28] sm:$0xff]
  %3178 = vmatprep.subr.bf16.mxu0 %v2332
  %3179 = vmatpush1.bf16.msra.mxu0 %v2331
  %3180 = vmatprep.subr.bf16.mxu0 %v2334
  %3181 = vmatpush1.bf16.msra.mxu0 %v2333
  %3182 = vmatprep.subr.bf16.mxu0 %v2336
  %3183 = vmatpush1.bf16.msra.mxu0 %v2335
  %3184 = vmatprep.subr.bf16.mxu0 %v2338
  %3185 = vmatpush1.bf16.msra.mxu0 %v2337
  %3186 = vmatprep.subr.bf16.mxu0 %v2340
  %3187 = vmatpush1.bf16.msra.mxu0 %v2339
  %3188 = vmatprep.subr.bf16.mxu0 %v2342
  %3189 = vmatpush1.bf16.msra.mxu0 %v2341
  %3190 = vmatprep.subr.bf16.mxu0 %v2344
  %3191 = vmatpush1.bf16.msra.mxu0 %v2343
  %3192 = vmatprep.subr.bf16.mxu0 %v2346
  %3193 = vmatpush1.bf16.msra.mxu0 %v2345
  %3194 = vmatprep.subr.bf16.mxu0 0
  %3195 = vmatpush1.bf16.msra.mxu0 0
  %3196 = vmatprep.subr.bf16.mxu0 0
  %3197 = vmatpush1.bf16.msra.mxu0 0
  %3198 = vmatprep.subr.bf16.mxu0 0
  %3199 = vmatpush1.bf16.msra.mxu0 0
  %3200 = vmatprep.subr.bf16.mxu0 0
  %3201 = vmatpush1.bf16.msra.mxu0 0
  %3202 = vmatprep.subr.bf16.mxu0 0
  %3203 = vmatpush1.bf16.msra.mxu0 0
  %3204 = vmatprep.subr.bf16.mxu0 0
  %3205 = vmatpush1.bf16.msra.mxu0 0
  %3206 = vmatprep.subr.bf16.mxu0 0
  %3207 = vmatpush1.bf16.msra.mxu0 0
  %3208 = vmatprep.subr.bf16.mxu0 0
  %3209 = vmatpush1.bf16.msra.mxu0 0
  %3210 = vmatprep.mubr.bf16.mxu0 0
  %3211 = vmatmul.mubr.bf16.gmra.mrb[0].mxu0 %v3173
  %v3212 = vpop.f32.mrb[0].mxu0
  %v3213 = vadd.f32 0.0, %v3212
  %v3214 = vpop.f32.mrb[0].mxu0
  %v3215 = vadd.f32 0.0, %v3214
  %v3216 = vpop.f32.mrb[0].mxu0
  %v3217 = vadd.f32 0.0, %v3216
  %v3218 = vpop.f32.mrb[0].mxu0
  %v3219 = vadd.f32 0.0, %v3218
  %3220 = vdwg.mxu0
  %v3221 = vadd.f32 %v3174, %v3213
  %v3222 = vadd.f32 %v3175, %v3215
  %v3223 = vadd.f32 %v3176, %v3217
  %v3224 = vadd.f32 %v3177, %v3219
  %v3225 = vmul.f32 %v3221, 0.5
  %v3226 = vmul.f32 %v3223, 0.5
  %v3227 = vtanh.pop %v3225
  %v3228 = vtanh.pop %v3226
  %v3229 = vmul.f32 %v3227, 0.5
  %v3230 = vmul.f32 %v3228, 0.5
  %v3231 = vadd.f32 %v3229, 0.5
  %v3232 = vadd.f32 %v3230, 0.5
  %v3233 = vmul.f32 %v3222, 0.5
  %v3234 = vmul.f32 %v3224, 0.5
  %v3235 = vtanh.pop %v3233
  %v3236 = vtanh.pop %v3234
  %v3237 = vmul.f32 %v3235, 0.5
  %v3238 = vmul.f32 %v3236, 0.5
  %v3239 = vadd.f32 %v3237, 0.5
  %v3240 = vadd.f32 %v3238, 0.5
  %v3241 = vld [vmem:[%s1857 + $0x10] sm:$0xff]
  %v3242 = vld [vmem:[%s1857 + $0x18] sm:$0xff]
  %v3243 = vld [vmem:[%s1857 + $0x30] sm:$0xff]
  %v3244 = vld [vmem:[%s1857 + $0x38] sm:$0xff]
  %3245 = vmatprep.subr.bf16.mxu0 %v2479
  %3246 = vmatpush1.bf16.msra.mxu0 %v2478
  %3247 = vmatprep.subr.bf16.mxu0 %v2481
  %3248 = vmatpush1.bf16.msra.mxu0 %v2480
  %3249 = vmatprep.subr.bf16.mxu0 %v2483
  %3250 = vmatpush1.bf16.msra.mxu0 %v2482
  %3251 = vmatprep.subr.bf16.mxu0 %v2485
  %3252 = vmatpush1.bf16.msra.mxu0 %v2484
  %3253 = vmatprep.subr.bf16.mxu0 %v2487
  %3254 = vmatpush1.bf16.msra.mxu0 %v2486
  %3255 = vmatprep.subr.bf16.mxu0 %v2489
  %3256 = vmatpush1.bf16.msra.mxu0 %v2488
  %3257 = vmatprep.subr.bf16.mxu0 %v2491
  %3258 = vmatpush1.bf16.msra.mxu0 %v2490
  %3259 = vmatprep.subr.bf16.mxu0 %v2493
  %3260 = vmatpush1.bf16.msra.mxu0 %v2492
  %3261 = vmatprep.subr.bf16.mxu0 0
  %3262 = vmatpush1.bf16.msra.mxu0 0
  %3263 = vmatprep.subr.bf16.mxu0 0
  %3264 = vmatpush1.bf16.msra.mxu0 0
  %3265 = vmatprep.subr.bf16.mxu0 0
  %3266 = vmatpush1.bf16.msra.mxu0 0
  %3267 = vmatprep.subr.bf16.mxu0 0
  %3268 = vmatpush1.bf16.msra.mxu0 0
  %3269 = vmatprep.subr.bf16.mxu0 0
  %3270 = vmatpush1.bf16.msra.mxu0 0
  %3271 = vmatprep.subr.bf16.mxu0 0
  %3272 = vmatpush1.bf16.msra.mxu0 0
  %3273 = vmatprep.subr.bf16.mxu0 0
  %3274 = vmatpush1.bf16.msra.mxu0 0
  %3275 = vmatprep.subr.bf16.mxu0 0
  %3276 = vmatpush1.bf16.msra.mxu0 0
  %3277 = vmatprep.mubr.bf16.mxu0 0
  %3278 = vmatmul.mubr.bf16.gmra.mrb[0].mxu0 %v3173
  %v3279 = vpop.f32.mrb[0].mxu0
  %v3280 = vadd.f32 0.0, %v3279
  %v3281 = vpop.f32.mrb[0].mxu0
  %v3282 = vadd.f32 0.0, %v3281
  %v3283 = vpop.f32.mrb[0].mxu0
  %v3284 = vadd.f32 0.0, %v3283
  %v3285 = vpop.f32.mrb[0].mxu0
  %v3286 = vadd.f32 0.0, %v3285
  %3287 = vdwg.mxu0
  %v3288 = vadd.f32 %v3241, %v3280
  %v3289 = vadd.f32 %v3242, %v3282
  %v3290 = vadd.f32 %v3243, %v3284
  %v3291 = vadd.f32 %v3244, %v3286
  %v3292 = vtanh.pop %v3288
  %v3293 = vtanh.pop %v3290
  %v3294 = vmul.f32 %v3289, 0.5
  %v3295 = vmul.f32 %v3291, 0.5
  %v3296 = vtanh.pop %v3294
  %v3297 = vtanh.pop %v3295
  %v3298 = vmul.f32 %v3296, 0.5
  %v3299 = vmul.f32 %v3297, 0.5
  %v3300 = vadd.f32 %v3298, 0.5
  %v3301 = vadd.f32 %v3299, 0.5
  %v3302 = vmul.f32 %v3239, %v3171
  %v3303 = vmul.f32 %v3240, %v3172
  %v3304 = vmul.f32 %v3231, %v3292
  %v3305 = vmul.f32 %v3232, %v3293
  %v3306 = vadd.f32 %v3302, %v3304
  %v3307 = vadd.f32 %v3303, %v3305
  %v3308 = vtanh.pop %v3306
  %v3309 = vtanh.pop %v3307
  %v3310 = vmul.f32 %v3300, %v3308
  %v3311 = vmul.f32 %v3301, %v3309
  %p3312 = scmp.gt.s32.totalorder %s2273, 5
  %s3313 = scalar_select %p3312, 1, 0
  %v3314 = vstv %s3313
  %vm3315 = vcmp.eq.s32.totalorder %v3314, 1
  %v3316 = vsel %vm3315, %v3310, %v3169
  %v3317 = vsel %vm3315, %v3311, %v3170
  %v3318 = vsel %vm3315, %v3306, %v3171
  %v3319 = vsel %vm3315, %v3307, %v3172
  %v3320 = vpack.c.bf16 %v3317, %v3316
  %v3321 = vld [vmem:[%s2059] sm:$0xff]
  %v3322 = vld [vmem:[%s2059 + $0x8] sm:$0xff]
  %v3323 = vld [vmem:[%s2059 + $0x20] sm:$0xff]
  %v3324 = vld [vmem:[%s2059 + $0x28] sm:$0xff]
  %3325 = vmatprep.subr.bf16.mxu0 %v2332
  %3326 = vmatpush1.bf16.msra.mxu0 %v2331
  %3327 = vmatprep.subr.bf16.mxu0 %v2334
  %3328 = vmatpush1.bf16.msra.mxu0 %v2333
  %3329 = vmatprep.subr.bf16.mxu0 %v2336
  %3330 = vmatpush1.bf16.msra.mxu0 %v2335
  %3331 = vmatprep.subr.bf16.mxu0 %v2338
  %3332 = vmatpush1.bf16.msra.mxu0 %v2337
  %3333 = vmatprep.subr.bf16.mxu0 %v2340
  %3334 = vmatpush1.bf16.msra.mxu0 %v2339
  %3335 = vmatprep.subr.bf16.mxu0 %v2342
  %3336 = vmatpush1.bf16.msra.mxu0 %v2341
  %3337 = vmatprep.subr.bf16.mxu0 %v2344
  %3338 = vmatpush1.bf16.msra.mxu0 %v2343
  %3339 = vmatprep.subr.bf16.mxu0 %v2346
  %3340 = vmatpush1.bf16.msra.mxu0 %v2345
  %3341 = vmatprep.subr.bf16.mxu0 0
  %3342 = vmatpush1.bf16.msra.mxu0 0
  %3343 = vmatprep.subr.bf16.mxu0 0
  %3344 = vmatpush1.bf16.msra.mxu0 0
  %3345 = vmatprep.subr.bf16.mxu0 0
  %3346 = vmatpush1.bf16.msra.mxu0 0
  %3347 = vmatprep.subr.bf16.mxu0 0
  %3348 = vmatpush1.bf16.msra.mxu0 0
  %3349 = vmatprep.subr.bf16.mxu0 0
  %3350 = vmatpush1.bf16.msra.mxu0 0
  %3351 = vmatprep.subr.bf16.mxu0 0
  %3352 = vmatpush1.bf16.msra.mxu0 0
  %3353 = vmatprep.subr.bf16.mxu0 0
  %3354 = vmatpush1.bf16.msra.mxu0 0
  %3355 = vmatprep.subr.bf16.mxu0 0
  %3356 = vmatpush1.bf16.msra.mxu0 0
  %3357 = vmatprep.mubr.bf16.mxu0 0
  %3358 = vmatmul.mubr.bf16.gmra.mrb[0].mxu0 %v3320
  %v3359 = vpop.f32.mrb[0].mxu0
  %v3360 = vadd.f32 0.0, %v3359
  %v3361 = vpop.f32.mrb[0].mxu0
  %v3362 = vadd.f32 0.0, %v3361
  %v3363 = vpop.f32.mrb[0].mxu0
  %v3364 = vadd.f32 0.0, %v3363
  %v3365 = vpop.f32.mrb[0].mxu0
  %v3366 = vadd.f32 0.0, %v3365
  %3367 = vdwg.mxu0
  %v3368 = vadd.f32 %v3321, %v3360
  %v3369 = vadd.f32 %v3322, %v3362
  %v3370 = vadd.f32 %v3323, %v3364
  %v3371 = vadd.f32 %v3324, %v3366
  %v3372 = vmul.f32 %v3368, 0.5
  %v3373 = vmul.f32 %v3370, 0.5
  %v3374 = vtanh.pop %v3372
  %v3375 = vtanh.pop %v3373
  %v3376 = vmul.f32 %v3374, 0.5
  %v3377 = vmul.f32 %v3375, 0.5
  %v3378 = vadd.f32 %v3376, 0.5
  %v3379 = vadd.f32 %v3377, 0.5
  %v3380 = vmul.f32 %v3369, 0.5
  %v3381 = vmul.f32 %v3371, 0.5
  %v3382 = vtanh.pop %v3380
  %v3383 = vtanh.pop %v3381
  %v3384 = vmul.f32 %v3382, 0.5
  %v3385 = vmul.f32 %v3383, 0.5
  %v3386 = vadd.f32 %v3384, 0.5
  %v3387 = vadd.f32 %v3385, 0.5
  %v3388 = vld [vmem:[%s2059 + $0x10] sm:$0xff]
  %v3389 = vld [vmem:[%s2059 + $0x18] sm:$0xff]
  %v3390 = vld [vmem:[%s2059 + $0x30] sm:$0xff]
  %v3391 = vld [vmem:[%s2059 + $0x38] sm:$0xff]
  %3392 = vmatprep.subr.bf16.mxu0 %v2479
  %3393 = vmatpush1.bf16.msra.mxu0 %v2478
  %3394 = vmatprep.subr.bf16.mxu0 %v2481
  %3395 = vmatpush1.bf16.msra.mxu0 %v2480
  %3396 = vmatprep.subr.bf16.mxu0 %v2483
  %3397 = vmatpush1.bf16.msra.mxu0 %v2482
  %3398 = vmatprep.subr.bf16.mxu0 %v2485
  %3399 = vmatpush1.bf16.msra.mxu0 %v2484
  %3400 = vmatprep.subr.bf16.mxu0 %v2487
  %3401 = vmatpush1.bf16.msra.mxu0 %v2486
  %3402 = vmatprep.subr.bf16.mxu0 %v2489
  %3403 = vmatpush1.bf16.msra.mxu0 %v2488
  %3404 = vmatprep.subr.bf16.mxu0 %v2491
  %3405 = vmatpush1.bf16.msra.mxu0 %v2490
  %3406 = vmatprep.subr.bf16.mxu0 %v2493
  %3407 = vmatpush1.bf16.msra.mxu0 %v2492
  %3408 = vmatprep.subr.bf16.mxu0 0
  %3409 = vmatpush1.bf16.msra.mxu0 0
  %3410 = vmatprep.subr.bf16.mxu0 0
  %3411 = vmatpush1.bf16.msra.mxu0 0
  %3412 = vmatprep.subr.bf16.mxu0 0
  %3413 = vmatpush1.bf16.msra.mxu0 0
  %3414 = vmatprep.subr.bf16.mxu0 0
  %3415 = vmatpush1.bf16.msra.mxu0 0
  %3416 = vmatprep.subr.bf16.mxu0 0
  %3417 = vmatpush1.bf16.msra.mxu0 0
  %3418 = vmatprep.subr.bf16.mxu0 0
  %3419 = vmatpush1.bf16.msra.mxu0 0
  %3420 = vmatprep.subr.bf16.mxu0 0
  %3421 = vmatpush1.bf16.msra.mxu0 0
  %3422 = vmatprep.subr.bf16.mxu0 0
  %3423 = vmatpush1.bf16.msra.mxu0 0
  %3424 = vmatprep.mubr.bf16.mxu0 0
  %3425 = vmatmul.mubr.bf16.gmra.mrb[0].mxu0 %v3320
  %v3426 = vpop.f32.mrb[0].mxu0
  %v3427 = vadd.f32 0.0, %v3426
  %v3428 = vpop.f32.mrb[0].mxu0
  %v3429 = vadd.f32 0.0, %v3428
  %v3430 = vpop.f32.mrb[0].mxu0
  %v3431 = vadd.f32 0.0, %v3430
  %v3432 = vpop.f32.mrb[0].mxu0
  %v3433 = vadd.f32 0.0, %v3432
  %3434 = vdwg.mxu0
  %v3435 = vadd.f32 %v3388, %v3427
  %v3436 = vadd.f32 %v3389, %v3429
  %v3437 = vadd.f32 %v3390, %v3431
  %v3438 = vadd.f32 %v3391, %v3433
  %v3439 = vtanh.pop %v3435
  %v3440 = vtanh.pop %v3437
  %v3441 = vmul.f32 %v3436, 0.5
  %v3442 = vmul.f32 %v3438, 0.5
  %v3443 = vtanh.pop %v3441
  %v3444 = vtanh.pop %v3442
  %v3445 = vmul.f32 %v3443, 0.5
  %v3446 = vmul.f32 %v3444, 0.5
  %v3447 = vadd.f32 %v3445, 0.5
  %v3448 = vadd.f32 %v3446, 0.5
  %v3449 = vmul.f32 %v3386, %v3318
  %v3450 = vmul.f32 %v3387, %v3319
  %v3451 = vmul.f32 %v3378, %v3439
  %v3452 = vmul.f32 %v3379, %v3440
  %v3453 = vadd.f32 %v3449, %v3451
  %v3454 = vadd.f32 %v3450, %v3452
  %v3455 = vtanh.pop %v3453
  %v3456 = vtanh.pop %v3454
  %v3457 = vmul.f32 %v3447, %v3455
  %v3458 = vmul.f32 %v3448, %v3456
  %p3459 = scmp.gt.s32.totalorder %s2273, 6
  %s3460 = scalar_select %p3459, 1, 0
  %v3461 = vstv %s3460
  %vm3462 = vcmp.eq.s32.totalorder %v3461, 1
  %v3463 = vsel %vm3462, %v3457, %v3316
  %v3464 = vsel %vm3462, %v3458, %v3317
  %v3465 = vsel %vm3462, %v3453, %v3318
  %v3466 = vsel %vm3462, %v3454, %v3319
  %v3467 = vpack.c.bf16 %v3464, %v3463
  %v3468 = vld [vmem:[%s2261] sm:$0xff]
  %v3469 = vld [vmem:[%s2261 + $0x8] sm:$0xff]
  %v3470 = vld [vmem:[%s2261 + $0x20] sm:$0xff]
  %v3471 = vld [vmem:[%s2261 + $0x28] sm:$0xff]
  %3472 = vmatprep.subr.bf16.mxu0 %v2332
  %3473 = vmatpush1.bf16.msra.mxu0 %v2331
  %3474 = vmatprep.subr.bf16.mxu0 %v2334
  %3475 = vmatpush1.bf16.msra.mxu0 %v2333
  %3476 = vmatprep.subr.bf16.mxu0 %v2336
  %3477 = vmatpush1.bf16.msra.mxu0 %v2335
  %3478 = vmatprep.subr.bf16.mxu0 %v2338
  %3479 = vmatpush1.bf16.msra.mxu0 %v2337
  %3480 = vmatprep.subr.bf16.mxu0 %v2340
  %3481 = vmatpush1.bf16.msra.mxu0 %v2339
  %3482 = vmatprep.subr.bf16.mxu0 %v2342
  %3483 = vmatpush1.bf16.msra.mxu0 %v2341
  %3484 = vmatprep.subr.bf16.mxu0 %v2344
  %3485 = vmatpush1.bf16.msra.mxu0 %v2343
  %3486 = vmatprep.subr.bf16.mxu0 %v2346
  %3487 = vmatpush1.bf16.msra.mxu0 %v2345
  %3488 = vmatprep.subr.bf16.mxu0 0
  %3489 = vmatpush1.bf16.msra.mxu0 0
  %3490 = vmatprep.subr.bf16.mxu0 0
  %3491 = vmatpush1.bf16.msra.mxu0 0
  %3492 = vmatprep.subr.bf16.mxu0 0
  %3493 = vmatpush1.bf16.msra.mxu0 0
  %3494 = vmatprep.subr.bf16.mxu0 0
  %3495 = vmatpush1.bf16.msra.mxu0 0
  %3496 = vmatprep.subr.bf16.mxu0 0
  %3497 = vmatpush1.bf16.msra.mxu0 0
  %3498 = vmatprep.subr.bf16.mxu0 0
  %3499 = vmatpush1.bf16.msra.mxu0 0
  %3500 = vmatprep.subr.bf16.mxu0 0
  %3501 = vmatpush1.bf16.msra.mxu0 0
  %3502 = vmatprep.subr.bf16.mxu0 0
  %3503 = vmatpush1.bf16.msra.mxu0 0
  %3504 = vmatprep.mubr.bf16.mxu0 0
  %3505 = vmatmul.mubr.bf16.gmra.mrb[0].mxu0 %v3467
  %v3506 = vpop.f32.mrb[0].mxu0
  %v3507 = vadd.f32 0.0, %v3506
  %v3508 = vpop.f32.mrb[0].mxu0
  %v3509 = vadd.f32 0.0, %v3508
  %v3510 = vpop.f32.mrb[0].mxu0
  %v3511 = vadd.f32 0.0, %v3510
  %v3512 = vpop.f32.mrb[0].mxu0
  %v3513 = vadd.f32 0.0, %v3512
  %3514 = vdwg.mxu0
  %v3515 = vadd.f32 %v3468, %v3507
  %v3516 = vadd.f32 %v3469, %v3509
  %v3517 = vadd.f32 %v3470, %v3511
  %v3518 = vadd.f32 %v3471, %v3513
  %v3519 = vmul.f32 %v3515, 0.5
  %v3520 = vmul.f32 %v3517, 0.5
  %v3521 = vtanh.pop %v3519
  %v3522 = vtanh.pop %v3520
  %v3523 = vmul.f32 %v3521, 0.5
  %v3524 = vmul.f32 %v3522, 0.5
  %v3525 = vadd.f32 %v3523, 0.5
  %v3526 = vadd.f32 %v3524, 0.5
  %v3527 = vmul.f32 %v3516, 0.5
  %v3528 = vmul.f32 %v3518, 0.5
  %v3529 = vtanh.pop %v3527
  %v3530 = vtanh.pop %v3528
  %v3531 = vmul.f32 %v3529, 0.5
  %v3532 = vmul.f32 %v3530, 0.5
  %v3533 = vadd.f32 %v3531, 0.5
  %v3534 = vadd.f32 %v3532, 0.5
  %v3535 = vld [vmem:[%s2261 + $0x10] sm:$0xff]
  %v3536 = vld [vmem:[%s2261 + $0x18] sm:$0xff]
  %v3537 = vld [vmem:[%s2261 + $0x30] sm:$0xff]
  %v3538 = vld [vmem:[%s2261 + $0x38] sm:$0xff]
  %3539 = vmatprep.subr.bf16.mxu0 %v2479
  %3540 = vmatpush1.bf16.msra.mxu0 %v2478
  %3541 = vmatprep.subr.bf16.mxu0 %v2481
  %3542 = vmatpush1.bf16.msra.mxu0 %v2480
  %3543 = vmatprep.subr.bf16.mxu0 %v2483
  %3544 = vmatpush1.bf16.msra.mxu0 %v2482
  %3545 = vmatprep.subr.bf16.mxu0 %v2485
  %3546 = vmatpush1.bf16.msra.mxu0 %v2484
  %3547 = vmatprep.subr.bf16.mxu0 %v2487
  %3548 = vmatpush1.bf16.msra.mxu0 %v2486
  %3549 = vmatprep.subr.bf16.mxu0 %v2489
  %3550 = vmatpush1.bf16.msra.mxu0 %v2488
  %3551 = vmatprep.subr.bf16.mxu0 %v2491
  %3552 = vmatpush1.bf16.msra.mxu0 %v2490
  %3553 = vmatprep.subr.bf16.mxu0 %v2493
  %3554 = vmatpush1.bf16.msra.mxu0 %v2492
  %3555 = vmatprep.subr.bf16.mxu0 0
  %3556 = vmatpush1.bf16.msra.mxu0 0
  %3557 = vmatprep.subr.bf16.mxu0 0
  %3558 = vmatpush1.bf16.msra.mxu0 0
  %3559 = vmatprep.subr.bf16.mxu0 0
  %3560 = vmatpush1.bf16.msra.mxu0 0
  %3561 = vmatprep.subr.bf16.mxu0 0
  %3562 = vmatpush1.bf16.msra.mxu0 0
  %3563 = vmatprep.subr.bf16.mxu0 0
  %3564 = vmatpush1.bf16.msra.mxu0 0
  %3565 = vmatprep.subr.bf16.mxu0 0
  %3566 = vmatpush1.bf16.msra.mxu0 0
  %3567 = vmatprep.subr.bf16.mxu0 0
  %3568 = vmatpush1.bf16.msra.mxu0 0
  %3569 = vmatprep.subr.bf16.mxu0 0
  %3570 = vmatpush1.bf16.msra.mxu0 0
  %3571 = vmatprep.mubr.bf16.mxu0 0
  %3572 = vmatmul.mubr.bf16.gmra.mrb[0].mxu0 %v3467
  %v3573 = vpop.f32.mrb[0].mxu0
  %v3574 = vadd.f32 0.0, %v3573
  %v3575 = vpop.f32.mrb[0].mxu0
  %v3576 = vadd.f32 0.0, %v3575
  %v3577 = vpop.f32.mrb[0].mxu0
  %v3578 = vadd.f32 0.0, %v3577
  %v3579 = vpop.f32.mrb[0].mxu0
  %v3580 = vadd.f32 0.0, %v3579
  %3581 = vdwg.mxu0
  %v3582 = vadd.f32 %v3535, %v3574
  %v3583 = vadd.f32 %v3536, %v3576
  %v3584 = vadd.f32 %v3537, %v3578
  %v3585 = vadd.f32 %v3538, %v3580
  %v3586 = vtanh.pop %v3582
  %v3587 = vtanh.pop %v3584
  %v3588 = vmul.f32 %v3583, 0.5
  %v3589 = vmul.f32 %v3585, 0.5
  %v3590 = vtanh.pop %v3588
  %v3591 = vtanh.pop %v3589
  %v3592 = vmul.f32 %v3590, 0.5
  %v3593 = vmul.f32 %v3591, 0.5
  %v3594 = vadd.f32 %v3592, 0.5
  %v3595 = vadd.f32 %v3593, 0.5
  %v3596 = vmul.f32 %v3533, %v3465
  %v3597 = vmul.f32 %v3534, %v3466
  %v3598 = vmul.f32 %v3525, %v3586
  %v3599 = vmul.f32 %v3526, %v3587
  %v3600 = vadd.f32 %v3596, %v3598
  %v3601 = vadd.f32 %v3597, %v3599
  %v3602 = vtanh.pop %v3600
  %v3603 = vtanh.pop %v3601
  %v3604 = vmul.f32 %v3594, %v3602
  %v3605 = vmul.f32 %v3595, %v3603
  %p3606 = scmp.gt.s32.totalorder %s2273, 7
  %s3607 = scalar_select %p3606, 1, 0
  %v3608 = vstv %s3607
  %vm3609 = vcmp.eq.s32.totalorder %v3608, 1
  %v3610 = vsel %vm3609, %v3604, %v3463
  %v3611 = vsel %vm3609, %v3605, %v3464
  %v3612 = vsel %vm3609, %v3600, %v3465
  %v3613 = vsel %vm3609, %v3601, %v3466
  %3614 = vst [vmem:[#allocation3] sm:$0xff] %v3610
  %3615 = vst [vmem:[#allocation3 + $0x8] sm:$0xff] %v3611
  %3616 = vst [vmem:[#allocation4] sm:$0xff] %v3612
  %3617 = vst [vmem:[#allocation4 + $0x8] sm:$0xff] %v3613
  // Predicated region
  $region22: #{lstm_forward.1} parent=0 // pred_check
    %p3618 = pneg %p18
  $region23: #{lstm_forward.1} parent=0 // pred_check_branch
    %3620 = sbr.rel (%p3618) target = $region25
  $region24: #{lstm_forward.1} parent=0 // pred_region
    %3621 = vst [vmem:[%s4] sm:$0xff] %v3610
    %3622 = vst [vmem:[%s4 + $0x8] sm:$0xff] %v3611
  $region25: #{lstm_forward.1} parent=0 // pred_fallthru
    _
  // Predicated region
  $region26: #{lstm_forward.1} parent=0 // pred_check
    _
  $region27: #{lstm_forward.1} parent=0 // pred_check_branch
    %3624 = sbr.rel (0) target = $region29
  $region28: #{lstm_forward.1} parent=0 // pred_region
    _
  $region29: #{lstm_forward.1} parent=0 // pred_fallthru
    _
  // Predicated region
  $region30: #{lstm_forward.1} parent=0 // pred_check
    _
  $region31: #{lstm_forward.1} parent=0 // pred_check_branch
    %3626 = sbr.rel (0) target = $region33
  $region32: #{lstm_forward.1} parent=0 // pred_region
    _
  $region33: #{lstm_forward.1} parent=0 // pred_fallthru
    _

</llo_original>
